<compile_context>
chip_gen: v7x
topology: tpu7x:2x2x1
jax: 0.10.0
libtpu: 0.0.40
codegen_flags: <defaults>
</compile_context>

<pallas_src>
import functools

import jax
import jax.numpy as jnp
from jax import lax
from jax.experimental import pallas as pl
from jax.experimental.pallas import tpu as pltpu


def make_emg_lstm_kernel(num_layers, T, B, H, use_bf16_gates):
    """Builds the Pallas kernel body for the whole forward pass."""
    H3 = 3 * H

    def gates_to_hc(gates, c):
        # gate column order is (i, f, o, g): one contiguous sigmoid over 3H.
        if use_bf16_gates:
            # v6e/v7x: EUP/VPU support bf16; keep cell-state accumulation f32.
            g16 = gates.astype(jnp.bfloat16)
            sig = jax.nn.sigmoid(g16[:, :H3])
            i = sig[:, 0:H]
            f = sig[:, H:2 * H]
            o = sig[:, 2 * H:H3]
            g = jnp.tanh(g16[:, H3:])
            c_new = f * c + (i * g).astype(jnp.float32)      # f32 accumulation
            h_bf = o * jnp.tanh(c_new.astype(jnp.bfloat16))  # bf16 where produced
        else:
            # v5e and older: no bf16 VPU/EUP -> keep gate math in f32.
            sig = jax.nn.sigmoid(gates[:, :H3])
            i = sig[:, 0:H]
            f = sig[:, H:2 * H]
            o = sig[:, 2 * H:H3]
            g = jnp.tanh(gates[:, H3:])
            c_new = f * c + i * g
            h_bf = (o * jnp.tanh(c_new)).astype(jnp.bfloat16)
        return h_bf, c_new

    def kernel(*refs):
        idx = 0
        x_ref = refs[idx]; idx += 1                    # (T*B, D)  bf16, time-major
        w_ih0_ref = refs[idx]; idx += 1                # (D, 4H)   bf16
        b0_ref = refs[idx]; idx += 1                   # (1, 4H)   f32
        w_hh0_ref = refs[idx]; idx += 1                # (H, 4H)   bf16
        deep_refs = []
        for _ in range(num_layers - 1):
            # (H,4H) bf16 w_ih, (H,4H) bf16 w_hh, (B,4H) f32 bias (pre-broadcast)
            deep_refs.append((refs[idx], refs[idx + 1], refs[idx + 2]))
            idx += 3
        fc1_w, bn1_s, bn1_b = refs[idx:idx + 3]; idx += 3
        fc2_w, bn2_s, bn2_b = refs[idx:idx + 3]; idx += 3
        out_w, out_b = refs[idx:idx + 2]; idx += 2
        out_ref = refs[idx]; idx += 1                  # (B, 128)  f32 (lane-dense)
        xg0_ref = refs[idx]                            # scratch (T*B, 4H) f32

        # --- Hoisted layer-0 input projection (one large MXU call), bias folded.
        xg0_ref[...] = (
            jnp.dot(x_ref[...], w_ih0_ref[...], preferred_element_type=jnp.float32)
            + b0_ref[...]
        )

        def time_step(t, carry):
            hs, cs = carry                 # hs: bf16 (B,H), cs: f32 (B,H)

            # Recurrent partials for ALL layers first: they depend only on the
            # previous step's h, so their MXU pushes and the bias adds overlap
            # the serial intra-step gate chain instead of sitting on it.
            hh = [jnp.dot(hs[0], w_hh0_ref[...],
                          preferred_element_type=jnp.float32)]
            for l in range(1, num_layers):
                _, w_hh_ref, b_ref = deep_refs[l - 1]
                hh.append(
                    jnp.dot(hs[l], w_hh_ref[...],
                            preferred_element_type=jnp.float32)
                    + b_ref[...]
                )

            # Serial chain: layer 0 uses the precomputed input projection.
            start = pl.multiple_of(t * B, B)
            gates0 = xg0_ref[pl.ds(start, B), :] + hh[0]
            h, c = gates_to_hc(gates0, cs[0])
            new_hs = [h]
            new_cs = [c]
            inp = h
            for l in range(1, num_layers):
                w_ih_ref, _, _ = deep_refs[l - 1]
                gates = (
                    jnp.dot(inp, w_ih_ref[...],
                            preferred_element_type=jnp.float32)
                    + hh[l]
                )
                h, c = gates_to_hc(gates, cs[l])
                new_hs.append(h)
                new_cs.append(c)
                inp = h
            return tuple(new_hs), tuple(new_cs)

        h0 = tuple(jnp.zeros((B, H), jnp.bfloat16) for _ in range(num_layers))
        c0 = tuple(jnp.zeros((B, H), jnp.float32) for _ in range(num_layers))
        hs, _ = lax.fori_loop(0, T, time_step, (h0, c0), unroll=True)
        feat = hs[-1]                                   # out[:, -1, :] of top layer

        # fc1 -> bn1 (fc1 bias folded) -> relu   (dropout = identity, see TODO)
        z1 = jnp.dot(feat, fc1_w[...], preferred_element_type=jnp.float32)
        z1 = jnp.maximum(z1 * bn1_s[...] + bn1_b[...], 0.0)
        # fc2 -> bn2 -> relu (padded to 128 lanes; pad scale/bias are zero)
        z2 = jnp.dot(z1.astype(jnp.bfloat16), fc2_w[...],
                     preferred_element_type=jnp.float32)
        z2 = jnp.maximum(z2 * bn2_s[...] + bn2_b[...], 0.0)
        # output projection (lane-dense padded to 128 columns)
        out_ref[...] = (
            jnp.dot(z2.astype(jnp.bfloat16), out_w[...],
                    preferred_element_type=jnp.float32)
            + out_b[...]
        )

    return kernel


def _full_spec(a):
    nd = a.ndim
    return pl.BlockSpec(a.shape, lambda i, _nd=nd: (0,) * _nd)


def _reorder_gates(a, axis=0):
    """Permute gate blocks from PyTorch order (i, f, g, o) to (i, f, o, g)."""
    i, f, g, o = jnp.split(a, 4, axis=axis)
    return jnp.concatenate([i, f, o, g], axis=axis)


def _use_bf16_gate_math():
    """bf16 gate nonlinearities only where the VPU/EUP support it (v6e/v7x)."""
    try:
        kind = jax.devices()[0].device_kind.lower()
    except Exception:
        return False
    return any(tag in kind for tag in ("v6", "v7", "7x"))


def emg_lstm_forward(x, params, *, num_layers, hidden_size, num_classes):
    """x: (B, T, input_size) float32 (batch_first, like the PyTorch module)."""
    B, T, D = x.shape
    H = hidden_size
    eps = 1e-5
    NOUT = 128   # lane-dense padded output width
    FC2P = 128   # fc2/bn2 path padded to full 128 lanes
    assert num_classes <= NOUT
    assert B % 8 == 0, "batch must be a multiple of 8 (sublane-aligned time slices)"

    # time-major, flattened: row t*B + b == x[b, t, :]
    x_tb = jnp.transpose(x, (1, 0, 2)).reshape(T * B, D).astype(jnp.bfloat16)

    inputs = [x_tb]

    # layer 0: separate w_ih (hoisted projection) and w_hh (recurrent)
    w_ih0, w_hh0, b_ih0, b_hh0 = params["lstm"][0]
    b0 = _reorder_gates((b_ih0 + b_hh0).astype(jnp.float32)).reshape(1, 4 * H)
    inputs += [
        _reorder_gates(w_ih0).T.astype(jnp.bfloat16),          # (D, 4H)
        b0,                                                    # (1, 4H)
        _reorder_gates(w_hh0).T.astype(jnp.bfloat16),          # (H, 4H)
    ]
    # deeper layers: SEPARATE w_ih / w_hh refs (un-fused) + pre-broadcast bias
    for l in range(1, num_layers):
        w_ih, w_hh, b_ih, b_hh = params["lstm"][l]
        b = _reorder_gates((b_ih + b_hh).astype(jnp.float32)).reshape(1, 4 * H)
        inputs += [
            _reorder_gates(w_ih).T.astype(jnp.bfloat16),       # (H, 4H)
            _reorder_gates(w_hh).T.astype(jnp.bfloat16),       # (H, 4H)
            jnp.broadcast_to(b, (B, 4 * H)).astype(jnp.float32),
        ]

    def bn_fold(gamma, beta, mean, var, lin_bias):
        scale = gamma / jnp.sqrt(var + eps)
        bias = beta - mean * scale + scale * lin_bias          # fold linear bias too
        return (scale.reshape(1, -1).astype(jnp.float32),
                bias.reshape(1, -1).astype(jnp.float32))

    fc1_w, fc1_b = params["fc1"]
    fc2_w, fc2_b = params["fc2"]
    out_w, out_b = params["out"]
    bn1_s, bn1_bias = bn_fold(*params["bn1"], fc1_b)
    bn2_s, bn2_bias = bn_fold(*params["bn2"], fc2_b)

    n_fc2 = fc2_w.shape[0]                                     # 64
    # fc2 path padded to 128 lanes (pad scale/bias zero -> relu gives 0 there)
    fc2_w_pad = jnp.zeros((fc2_w.shape[1], FC2P), jnp.float32).at[:, :n_fc2].set(fc2_w.T)
    bn2_s_pad = jnp.zeros((1, FC2P), jnp.float32).at[:, :n_fc2].set(bn2_s)
    bn2_b_pad = jnp.zeros((1, FC2P), jnp.float32).at[:, :n_fc2].set(bn2_bias)
    # out projection: pad contraction dim to 128 and output dim to NOUT
    out_w_pad = jnp.zeros((FC2P, NOUT), jnp.float32).at[:n_fc2, :num_classes].set(out_w.T)
    out_b_pad = jnp.zeros((1, NOUT), jnp.float32).at[:, :num_classes].set(out_b.reshape(1, -1))

    inputs += [
        fc1_w.T.astype(jnp.bfloat16), bn1_s, bn1_bias,
        fc2_w_pad.astype(jnp.bfloat16), bn2_s_pad, bn2_b_pad,
        out_w_pad.astype(jnp.bfloat16), out_b_pad,
    ]

    use_bf16_gates = _use_bf16_gate_math()
    kernel = make_emg_lstm_kernel(num_layers, T, B, H, use_bf16_gates)

    # Advisory cost estimate so XLA schedules sensibly around the custom call.
    flops = 2 * T * B * D * 4 * H                              # hoisted input proj
    flops += 2 * T * B * H * 4 * H                             # layer-0 recurrent
    flops += (num_layers - 1) * 2 * (2 * T * B * H * 4 * H)    # deep layers: ih + hh
    flops += 2 * B * H * 128 + 2 * B * 128 * FC2P + 2 * B * FC2P * NOUT
    transcendentals = T * num_layers * B * 5 * H               # sigmoid(3H)+tanh(2H)
    bytes_accessed = sum(int(a.size) * a.dtype.itemsize for a in inputs) + B * NOUT * 4
    cost = pl.CostEstimate(flops=flops, transcendentals=transcendentals,
                           bytes_accessed=bytes_accessed)

    # NOTE: on v7x with batch >= 16, a leading 'parallel' grid axis over batch
    # halves would use the second TensorCore; at B=8 it stays grid=(1,).
    out_pad = pl.pallas_call(
        kernel,
        out_shape=jax.ShapeDtypeStruct((B, NOUT), jnp.float32),
        grid=(1,),
        in_specs=[_full_spec(a) for a in inputs],
        out_specs=pl.BlockSpec((B, NOUT), lambda i: (0, 0)),
        scratch_shapes=[pltpu.VMEM((T * B, 4 * H), jnp.float32)],
        compiler_params=pltpu.CompilerParams(dimension_semantics=("arbitrary",)),
        cost_estimate=cost,
    )(*inputs)
    return out_pad[:, :num_classes]


def init_params(key, input_size, hidden_size, num_layers, num_classes):
    """Deterministic synthetic parameters mirroring the nn.Module shapes."""
    H = hidden_size
    params = {"lstm": []}
    k = 1.0 / jnp.sqrt(jnp.asarray(H, jnp.float32))

    def u(key, shape, scale):
        return jax.random.uniform(key, shape, jnp.float32, -1.0, 1.0) * scale

    keys = iter(jax.random.split(key, 4 * num_layers + 6))
    for l in range(num_layers):
        in_dim = input_size if l == 0 else H
        w_ih = u(next(keys), (4 * H, in_dim), k)
        w_hh = u(next(keys), (4 * H, H), k)
        b_ih = u(next(keys), (4 * H,), k)
        b_hh = u(next(keys), (4 * H,), k)
        params["lstm"].append((w_ih, w_hh, b_ih, b_hh))

    def linear(key, out_f, in_f):
        kk = 1.0 / jnp.sqrt(jnp.asarray(in_f, jnp.float32))
        k1, k2 = jax.random.split(key)
        return (u(k1, (out_f, in_f), kk), u(k2, (out_f,), kk))

    params["fc1"] = linear(next(keys), 128, H)
    params["fc2"] = linear(next(keys), 64, 128)
    params["out"] = linear(next(keys), num_classes, 64)
    # BatchNorm (eval): gamma, beta, running_mean, running_var
    params["bn1"] = (jnp.ones((128,)), jnp.zeros((128,)), jnp.zeros((128,)), jnp.ones((128,)))
    params["bn2"] = (jnp.ones((64,)), jnp.zeros((64,)), jnp.zeros((64,)), jnp.ones((64,)))
    return params


if __name__ == "__main__":
    # Small shapes consistent with the module: hidden_size must be 128 (see note).
    B, T = 8, 8
    input_size, hidden_size, num_layers, num_classes = 16, 128, 2, 10

    root = jax.random.PRNGKey(0)
    kx, kp = jax.random.split(root)
    x = jax.random.normal(kx, (B, T, input_size), jnp.float32)
    params = init_params(kp, input_size, hidden_size, num_layers, num_classes)

    fwd = functools.partial(
        emg_lstm_forward,
        num_layers=num_layers,
        hidden_size=hidden_size,
        num_classes=num_classes,
    )
    out = fwd(x, params)
    jax.block_until_ready(out)
    assert out.shape == (B, num_classes)
    print("KERNEL_OK")
</pallas_src>

<mosaic_0001>
module attributes {stable_mosaic.version = 11 : i64} {
  func.func @kernel(%arg0: i32, %arg1: memref<64x16xbf16, #tpu.memory_space<vmem>>, %arg2: memref<16x512xbf16, #tpu.memory_space<vmem>>, %arg3: memref<1x512xf32, #tpu.memory_space<vmem>>, %arg4: memref<128x512xbf16, #tpu.memory_space<vmem>>, %arg5: memref<128x512xbf16, #tpu.memory_space<vmem>>, %arg6: memref<128x512xbf16, #tpu.memory_space<vmem>>, %arg7: memref<8x512xf32, #tpu.memory_space<vmem>>, %arg8: memref<128x128xbf16, #tpu.memory_space<vmem>>, %arg9: memref<1x128xf32, #tpu.memory_space<vmem>>, %arg10: memref<1x128xf32, #tpu.memory_space<vmem>>, %arg11: memref<128x128xbf16, #tpu.memory_space<vmem>>, %arg12: memref<1x128xf32, #tpu.memory_space<vmem>>, %arg13: memref<1x128xf32, #tpu.memory_space<vmem>>, %arg14: memref<128x128xbf16, #tpu.memory_space<vmem>>, %arg15: memref<1x128xf32, #tpu.memory_space<vmem>>, %arg16: memref<8x128xf32, #tpu.memory_space<vmem>>, %arg17: memref<64x512xf32, #tpu.memory_space<vmem>>) attributes {dimension_semantics = [#tpu.dimension_semantics<arbitrary>], iteration_bounds = array<i64: 1>, scalar_prefetch = 0 : i64, scratch_operands = 1 : i64, tpu.core_type = #tpu.core_type<tc>, window_params = [{pipeline_mode = #tpu.pipeline_mode<synchronous>, transform_indices = @transform_0, window_bounds = array<i64: 64, 16>}, {pipeline_mode = #tpu.pipeline_mode<synchronous>, transform_indices = @transform_1, window_bounds = array<i64: 16, 512>}, {pipeline_mode = #tpu.pipeline_mode<synchronous>, transform_indices = @transform_2, window_bounds = array<i64: 1, 512>}, {pipeline_mode = #tpu.pipeline_mode<synchronous>, transform_indices = @transform_3, window_bounds = array<i64: 128, 512>}, {pipeline_mode = #tpu.pipeline_mode<synchronous>, transform_indices = @transform_4, window_bounds = array<i64: 128, 512>}, {pipeline_mode = #tpu.pipeline_mode<synchronous>, transform_indices = @transform_5, window_bounds = array<i64: 128, 512>}, {pipeline_mode = #tpu.pipeline_mode<synchronous>, transform_indices = @transform_6, window_bounds = array<i64: 8, 512>}, {pipeline_mode = #tpu.pipeline_mode<synchronous>, transform_indices = @transform_7, window_bounds = array<i64: 128, 128>}, {pipeline_mode = #tpu.pipeline_mode<synchronous>, transform_indices = @transform_8, window_bounds = array<i64: 1, 128>}, {pipeline_mode = #tpu.pipeline_mode<synchronous>, transform_indices = @transform_9, window_bounds = array<i64: 1, 128>}, {pipeline_mode = #tpu.pipeline_mode<synchronous>, transform_indices = @transform_10, window_bounds = array<i64: 128, 128>}, {pipeline_mode = #tpu.pipeline_mode<synchronous>, transform_indices = @transform_11, window_bounds = array<i64: 1, 128>}, {pipeline_mode = #tpu.pipeline_mode<synchronous>, transform_indices = @transform_12, window_bounds = array<i64: 1, 128>}, {pipeline_mode = #tpu.pipeline_mode<synchronous>, transform_indices = @transform_13, window_bounds = array<i64: 128, 128>}, {pipeline_mode = #tpu.pipeline_mode<synchronous>, transform_indices = @transform_14, window_bounds = array<i64: 1, 128>}, {pipeline_mode = #tpu.pipeline_mode<synchronous>, transform_indices = @transform_15, window_bounds = array<i64: 8, 128>}]} {
    %c0 = arith.constant 0 : index
    %c0_0 = arith.constant 0 : index
    %0 = vector.load %arg1[%c0, %c0_0] : memref<64x16xbf16, #tpu.memory_space<vmem>>, vector<64x16xbf16>
    %c0_1 = arith.constant 0 : index
    %c0_2 = arith.constant 0 : index
    %1 = vector.load %arg2[%c0_1, %c0_2] : memref<16x512xbf16, #tpu.memory_space<vmem>>, vector<16x512xbf16>
    %cst = arith.constant dense<0.000000e+00> : vector<64x512xf32>
    %2 = tpu.matmul %0, %1, %cst {dimension_numbers = #tpu.dot_dimension_numbers<[1], [0], [0], [1], [0, 0, 1, 1], [], []>} : vector<64x16xbf16>, vector<16x512xbf16>, vector<64x512xf32> -> vector<64x512xf32>
    %c0_3 = arith.constant 0 : index
    %c0_4 = arith.constant 0 : index
    %3 = vector.load %arg3[%c0_3, %c0_4] : memref<1x512xf32, #tpu.memory_space<vmem>>, vector<1x512xf32>
    %4 = vector.broadcast %3 : vector<1x512xf32> to vector<64x512xf32>
    %5 = arith.addf %2, %4 : vector<64x512xf32>
    %c0_5 = arith.constant 0 : index
    %c0_6 = arith.constant 0 : index
    %6 = vector.load %arg17[%c0_5, %c0_6] : memref<64x512xf32, #tpu.memory_space<vmem>>, vector<64x512xf32>
    tpu.vector_store %arg17[%c0_5, %c0_6], %5 {strides = array<i32>} : memref<64x512xf32, #tpu.memory_space<vmem>>, vector<64x512xf32>,
    %cst_7 = arith.constant 0.000000e+00 : bf16
    %7 = vector.broadcast %cst_7 : bf16 to vector<8x128xbf16>
    %cst_8 = arith.constant 0.000000e+00 : bf16
    %8 = vector.broadcast %cst_8 : bf16 to vector<8x128xbf16>
    %cst_9 = arith.constant 0.000000e+00 : f32
    %9 = vector.broadcast %cst_9 : f32 to vector<8x128xf32>
    %cst_10 = arith.constant 0.000000e+00 : f32
    %10 = vector.broadcast %cst_10 : f32 to vector<8x128xf32>
    %c0_i32 = arith.constant 0 : i32
    %c0_11 = arith.constant 0 : index
    %c0_12 = arith.constant 0 : index
    %11 = vector.load %arg4[%c0_11, %c0_12] : memref<128x512xbf16, #tpu.memory_space<vmem>>, vector<128x512xbf16>
    %cst_13 = arith.constant dense<0.000000e+00> : vector<8x512xf32>
    %12 = tpu.matmul %7, %11, %cst_13 {dimension_numbers = #tpu.dot_dimension_numbers<[1], [0], [0], [1], [0, 0, 1, 1], [], []>} : vector<8x128xbf16>, vector<128x512xbf16>, vector<8x512xf32> -> vector<8x512xf32>
    %c0_14 = arith.constant 0 : index
    %c0_15 = arith.constant 0 : index
    %13 = vector.load %arg6[%c0_14, %c0_15] : memref<128x512xbf16, #tpu.memory_space<vmem>>, vector<128x512xbf16>
    %cst_16 = arith.constant dense<0.000000e+00> : vector<8x512xf32>
    %14 = tpu.matmul %8, %13, %cst_16 {dimension_numbers = #tpu.dot_dimension_numbers<[1], [0], [0], [1], [0, 0, 1, 1], [], []>} : vector<8x128xbf16>, vector<128x512xbf16>, vector<8x512xf32> -> vector<8x512xf32>
    %c0_17 = arith.constant 0 : index
    %c0_18 = arith.constant 0 : index
    %15 = vector.load %arg7[%c0_17, %c0_18] : memref<8x512xf32, #tpu.memory_space<vmem>>, vector<8x512xf32>
    %16 = arith.addf %14, %15 : vector<8x512xf32>
    %c8_i32 = arith.constant 8 : i32
    %17 = arith.muli %c0_i32, %c8_i32 : i32
    %18 = tpu.assume_multiple %17, 8 : i32
    %19 = arith.index_cast %18 : i32 to index
    %c0_19 = arith.constant 0 : index
    %20 = vector.load %arg17[%19, %c0_19] : memref<64x512xf32, #tpu.memory_space<vmem>>, vector<8x512xf32>
    %21 = arith.addf %20, %12 : vector<8x512xf32>
    %22 = vector.extract_strided_slice %21 {offsets = [0, 0], sizes = [8, 384], strides = [1, 1]} : vector<8x512xf32> to vector<8x384xf32>
    %23 = arith.negf %22 : vector<8x384xf32>
    %24 = math.exp %23 : vector<8x384xf32>
    %cst_20 = arith.constant 1.000000e+00 : f32
    %25 = vector.broadcast %cst_20 : f32 to vector<8x384xf32>
    %26 = arith.addf %25, %24 : vector<8x384xf32>
    %27 = arith.divf %25, %26 : vector<8x384xf32>
    %28 = vector.extract_strided_slice %27 {offsets = [0, 0], sizes = [8, 128], strides = [1, 1]} : vector<8x384xf32> to vector<8x128xf32>
    %29 = vector.extract_strided_slice %27 {offsets = [0, 128], sizes = [8, 128], strides = [1, 1]} : vector<8x384xf32> to vector<8x128xf32>
    %30 = vector.extract_strided_slice %27 {offsets = [0, 256], sizes = [8, 128], strides = [1, 1]} : vector<8x384xf32> to vector<8x128xf32>
    %31 = vector.extract_strided_slice %21 {offsets = [0, 384], sizes = [8, 128], strides = [1, 1]} : vector<8x512xf32> to vector<8x128xf32>
    %32 = math.tanh %31 : vector<8x128xf32>
    %33 = arith.mulf %29, %9 : vector<8x128xf32>
    %34 = arith.mulf %28, %32 : vector<8x128xf32>
    %35 = arith.addf %33, %34 : vector<8x128xf32>
    %36 = math.tanh %35 : vector<8x128xf32>
    %37 = arith.mulf %30, %36 : vector<8x128xf32>
    %38 = arith.truncf %37 : vector<8x128xf32> to vector<8x128xbf16>
    %c0_21 = arith.constant 0 : index
    %c0_22 = arith.constant 0 : index
    %39 = vector.load %arg5[%c0_21, %c0_22] : memref<128x512xbf16, #tpu.memory_space<vmem>>, vector<128x512xbf16>
    %cst_23 = arith.constant dense<0.000000e+00> : vector<8x512xf32>
    %40 = tpu.matmul %38, %39, %cst_23 {dimension_numbers = #tpu.dot_dimension_numbers<[1], [0], [0], [1], [0, 0, 1, 1], [], []>} : vector<8x128xbf16>, vector<128x512xbf16>, vector<8x512xf32> -> vector<8x512xf32>
    %41 = arith.addf %40, %16 : vector<8x512xf32>
    %42 = vector.extract_strided_slice %41 {offsets = [0, 0], sizes = [8, 384], strides = [1, 1]} : vector<8x512xf32> to vector<8x384xf32>
    %43 = arith.negf %42 : vector<8x384xf32>
    %44 = math.exp %43 : vector<8x384xf32>
    %cst_24 = arith.constant 1.000000e+00 : f32
    %45 = vector.broadcast %cst_24 : f32 to vector<8x384xf32>
    %46 = arith.addf %45, %44 : vector<8x384xf32>
    %47 = arith.divf %45, %46 : vector<8x384xf32>
    %48 = vector.extract_strided_slice %47 {offsets = [0, 0], sizes = [8, 128], strides = [1, 1]} : vector<8x384xf32> to vector<8x128xf32>
    %49 = vector.extract_strided_slice %47 {offsets = [0, 128], sizes = [8, 128], strides = [1, 1]} : vector<8x384xf32> to vector<8x128xf32>
    %50 = vector.extract_strided_slice %47 {offsets = [0, 256], sizes = [8, 128], strides = [1, 1]} : vector<8x384xf32> to vector<8x128xf32>
    %51 = vector.extract_strided_slice %41 {offsets = [0, 384], sizes = [8, 128], strides = [1, 1]} : vector<8x512xf32> to vector<8x128xf32>
    %52 = math.tanh %51 : vector<8x128xf32>
    %53 = arith.mulf %49, %10 : vector<8x128xf32>
    %54 = arith.mulf %48, %52 : vector<8x128xf32>
    %55 = arith.addf %53, %54 : vector<8x128xf32>
    %56 = math.tanh %55 : vector<8x128xf32>
    %57 = arith.mulf %50, %56 : vector<8x128xf32>
    %58 = arith.truncf %57 : vector<8x128xf32> to vector<8x128xbf16>
    %c1_i32 = arith.constant 1 : i32
    %c0_25 = arith.constant 0 : index
    %c0_26 = arith.constant 0 : index
    %59 = vector.load %arg4[%c0_25, %c0_26] : memref<128x512xbf16, #tpu.memory_space<vmem>>, vector<128x512xbf16>
    %cst_27 = arith.constant dense<0.000000e+00> : vector<8x512xf32>
    %60 = tpu.matmul %38, %59, %cst_27 {dimension_numbers = #tpu.dot_dimension_numbers<[1], [0], [0], [1], [0, 0, 1, 1], [], []>} : vector<8x128xbf16>, vector<128x512xbf16>, vector<8x512xf32> -> vector<8x512xf32>
    %c0_28 = arith.constant 0 : index
    %c0_29 = arith.constant 0 : index
    %61 = vector.load %arg6[%c0_28, %c0_29] : memref<128x512xbf16, #tpu.memory_space<vmem>>, vector<128x512xbf16>
    %cst_30 = arith.constant dense<0.000000e+00> : vector<8x512xf32>
    %62 = tpu.matmul %58, %61, %cst_30 {dimension_numbers = #tpu.dot_dimension_numbers<[1], [0], [0], [1], [0, 0, 1, 1], [], []>} : vector<8x128xbf16>, vector<128x512xbf16>, vector<8x512xf32> -> vector<8x512xf32>
    %c0_31 = arith.constant 0 : index
    %c0_32 = arith.constant 0 : index
    %63 = vector.load %arg7[%c0_31, %c0_32] : memref<8x512xf32, #tpu.memory_space<vmem>>, vector<8x512xf32>
    %64 = arith.addf %62, %63 : vector<8x512xf32>
    %c8_i32_33 = arith.constant 8 : i32
    %65 = arith.muli %c1_i32, %c8_i32_33 : i32
    %66 = tpu.assume_multiple %65, 8 : i32
    %67 = arith.index_cast %66 : i32 to index
    %c0_34 = arith.constant 0 : index
    %68 = vector.load %arg17[%67, %c0_34] : memref<64x512xf32, #tpu.memory_space<vmem>>, vector<8x512xf32>
    %69 = arith.addf %68, %60 : vector<8x512xf32>
    %70 = vector.extract_strided_slice %69 {offsets = [0, 0], sizes = [8, 384], strides = [1, 1]} : vector<8x512xf32> to vector<8x384xf32>
    %71 = arith.negf %70 : vector<8x384xf32>
    %72 = math.exp %71 : vector<8x384xf32>
    %cst_35 = arith.constant 1.000000e+00 : f32
    %73 = vector.broadcast %cst_35 : f32 to vector<8x384xf32>
    %74 = arith.addf %73, %72 : vector<8x384xf32>
    %75 = arith.divf %73, %74 : vector<8x384xf32>
    %76 = vector.extract_strided_slice %75 {offsets = [0, 0], sizes = [8, 128], strides = [1, 1]} : vector<8x384xf32> to vector<8x128xf32>
    %77 = vector.extract_strided_slice %75 {offsets = [0, 128], sizes = [8, 128], strides = [1, 1]} : vector<8x384xf32> to vector<8x128xf32>
    %78 = vector.extract_strided_slice %75 {offsets = [0, 256], sizes = [8, 128], strides = [1, 1]} : vector<8x384xf32> to vector<8x128xf32>
    %79 = vector.extract_strided_slice %69 {offsets = [0, 384], sizes = [8, 128], strides = [1, 1]} : vector<8x512xf32> to vector<8x128xf32>
    %80 = math.tanh %79 : vector<8x128xf32>
    %81 = arith.mulf %77, %35 : vector<8x128xf32>
    %82 = arith.mulf %76, %80 : vector<8x128xf32>
    %83 = arith.addf %81, %82 : vector<8x128xf32>
    %84 = math.tanh %83 : vector<8x128xf32>
    %85 = arith.mulf %78, %84 : vector<8x128xf32>
    %86 = arith.truncf %85 : vector<8x128xf32> to vector<8x128xbf16>
    %c0_36 = arith.constant 0 : index
    %c0_37 = arith.constant 0 : index
    %87 = vector.load %arg5[%c0_36, %c0_37] : memref<128x512xbf16, #tpu.memory_space<vmem>>, vector<128x512xbf16>
    %cst_38 = arith.constant dense<0.000000e+00> : vector<8x512xf32>
    %88 = tpu.matmul %86, %87, %cst_38 {dimension_numbers = #tpu.dot_dimension_numbers<[1], [0], [0], [1], [0, 0, 1, 1], [], []>} : vector<8x128xbf16>, vector<128x512xbf16>, vector<8x512xf32> -> vector<8x512xf32>
    %89 = arith.addf %88, %64 : vector<8x512xf32>
    %90 = vector.extract_strided_slice %89 {offsets = [0, 0], sizes = [8, 384], strides = [1, 1]} : vector<8x512xf32> to vector<8x384xf32>
    %91 = arith.negf %90 : vector<8x384xf32>
    %92 = math.exp %91 : vector<8x384xf32>
    %cst_39 = arith.constant 1.000000e+00 : f32
    %93 = vector.broadcast %cst_39 : f32 to vector<8x384xf32>
    %94 = arith.addf %93, %92 : vector<8x384xf32>
    %95 = arith.divf %93, %94 : vector<8x384xf32>
    %96 = vector.extract_strided_slice %95 {offsets = [0, 0], sizes = [8, 128], strides = [1, 1]} : vector<8x384xf32> to vector<8x128xf32>
    %97 = vector.extract_strided_slice %95 {offsets = [0, 128], sizes = [8, 128], strides = [1, 1]} : vector<8x384xf32> to vector<8x128xf32>
    %98 = vector.extract_strided_slice %95 {offsets = [0, 256], sizes = [8, 128], strides = [1, 1]} : vector<8x384xf32> to vector<8x128xf32>
    %99 = vector.extract_strided_slice %89 {offsets = [0, 384], sizes = [8, 128], strides = [1, 1]} : vector<8x512xf32> to vector<8x128xf32>
    %100 = math.tanh %99 : vector<8x128xf32>
    %101 = arith.mulf %97, %55 : vector<8x128xf32>
    %102 = arith.mulf %96, %100 : vector<8x128xf32>
    %103 = arith.addf %101, %102 : vector<8x128xf32>
    %104 = math.tanh %103 : vector<8x128xf32>
    %105 = arith.mulf %98, %104 : vector<8x128xf32>
    %106 = arith.truncf %105 : vector<8x128xf32> to vector<8x128xbf16>
    %c2_i32 = arith.constant 2 : i32
    %c0_40 = arith.constant 0 : index
    %c0_41 = arith.constant 0 : index
    %107 = vector.load %arg4[%c0_40, %c0_41] : memref<128x512xbf16, #tpu.memory_space<vmem>>, vector<128x512xbf16>
    %cst_42 = arith.constant dense<0.000000e+00> : vector<8x512xf32>
    %108 = tpu.matmul %86, %107, %cst_42 {dimension_numbers = #tpu.dot_dimension_numbers<[1], [0], [0], [1], [0, 0, 1, 1], [], []>} : vector<8x128xbf16>, vector<128x512xbf16>, vector<8x512xf32> -> vector<8x512xf32>
    %c0_43 = arith.constant 0 : index
    %c0_44 = arith.constant 0 : index
    %109 = vector.load %arg6[%c0_43, %c0_44] : memref<128x512xbf16, #tpu.memory_space<vmem>>, vector<128x512xbf16>
    %cst_45 = arith.constant dense<0.000000e+00> : vector<8x512xf32>
    %110 = tpu.matmul %106, %109, %cst_45 {dimension_numbers = #tpu.dot_dimension_numbers<[1], [0], [0], [1], [0, 0, 1, 1], [], []>} : vector<8x128xbf16>, vector<128x512xbf16>, vector<8x512xf32> -> vector<8x512xf32>
    %c0_46 = arith.constant 0 : index
    %c0_47 = arith.constant 0 : index
    %111 = vector.load %arg7[%c0_46, %c0_47] : memref<8x512xf32, #tpu.memory_space<vmem>>, vector<8x512xf32>
    %112 = arith.addf %110, %111 : vector<8x512xf32>
    %c8_i32_48 = arith.constant 8 : i32
    %113 = arith.muli %c2_i32, %c8_i32_48 : i32
    %114 = tpu.assume_multiple %113, 8 : i32
    %115 = arith.index_cast %114 : i32 to index
    %c0_49 = arith.constant 0 : index
    %116 = vector.load %arg17[%115, %c0_49] : memref<64x512xf32, #tpu.memory_space<vmem>>, vector<8x512xf32>
    %117 = arith.addf %116, %108 : vector<8x512xf32>
    %118 = vector.extract_strided_slice %117 {offsets = [0, 0], sizes = [8, 384], strides = [1, 1]} : vector<8x512xf32> to vector<8x384xf32>
    %119 = arith.negf %118 : vector<8x384xf32>
    %120 = math.exp %119 : vector<8x384xf32>
    %cst_50 = arith.constant 1.000000e+00 : f32
    %121 = vector.broadcast %cst_50 : f32 to vector<8x384xf32>
    %122 = arith.addf %121, %120 : vector<8x384xf32>
    %123 = arith.divf %121, %122 : vector<8x384xf32>
    %124 = vector.extract_strided_slice %123 {offsets = [0, 0], sizes = [8, 128], strides = [1, 1]} : vector<8x384xf32> to vector<8x128xf32>
    %125 = vector.extract_strided_slice %123 {offsets = [0, 128], sizes = [8, 128], strides = [1, 1]} : vector<8x384xf32> to vector<8x128xf32>
    %126 = vector.extract_strided_slice %123 {offsets = [0, 256], sizes = [8, 128], strides = [1, 1]} : vector<8x384xf32> to vector<8x128xf32>
    %127 = vector.extract_strided_slice %117 {offsets = [0, 384], sizes = [8, 128], strides = [1, 1]} : vector<8x512xf32> to vector<8x128xf32>
    %128 = math.tanh %127 : vector<8x128xf32>
    %129 = arith.mulf %125, %83 : vector<8x128xf32>
    %130 = arith.mulf %124, %128 : vector<8x128xf32>
    %131 = arith.addf %129, %130 : vector<8x128xf32>
    %132 = math.tanh %131 : vector<8x128xf32>
    %133 = arith.mulf %126, %132 : vector<8x128xf32>
    %134 = arith.truncf %133 : vector<8x128xf32> to vector<8x128xbf16>
    %c0_51 = arith.constant 0 : index
    %c0_52 = arith.constant 0 : index
    %135 = vector.load %arg5[%c0_51, %c0_52] : memref<128x512xbf16, #tpu.memory_space<vmem>>, vector<128x512xbf16>
    %cst_53 = arith.constant dense<0.000000e+00> : vector<8x512xf32>
    %136 = tpu.matmul %134, %135, %cst_53 {dimension_numbers = #tpu.dot_dimension_numbers<[1], [0], [0], [1], [0, 0, 1, 1], [], []>} : vector<8x128xbf16>, vector<128x512xbf16>, vector<8x512xf32> -> vector<8x512xf32>
    %137 = arith.addf %136, %112 : vector<8x512xf32>
    %138 = vector.extract_strided_slice %137 {offsets = [0, 0], sizes = [8, 384], strides = [1, 1]} : vector<8x512xf32> to vector<8x384xf32>
    %139 = arith.negf %138 : vector<8x384xf32>
    %140 = math.exp %139 : vector<8x384xf32>
    %cst_54 = arith.constant 1.000000e+00 : f32
    %141 = vector.broadcast %cst_54 : f32 to vector<8x384xf32>
    %142 = arith.addf %141, %140 : vector<8x384xf32>
    %143 = arith.divf %141, %142 : vector<8x384xf32>
    %144 = vector.extract_strided_slice %143 {offsets = [0, 0], sizes = [8, 128], strides = [1, 1]} : vector<8x384xf32> to vector<8x128xf32>
    %145 = vector.extract_strided_slice %143 {offsets = [0, 128], sizes = [8, 128], strides = [1, 1]} : vector<8x384xf32> to vector<8x128xf32>
    %146 = vector.extract_strided_slice %143 {offsets = [0, 256], sizes = [8, 128], strides = [1, 1]} : vector<8x384xf32> to vector<8x128xf32>
    %147 = vector.extract_strided_slice %137 {offsets = [0, 384], sizes = [8, 128], strides = [1, 1]} : vector<8x512xf32> to vector<8x128xf32>
    %148 = math.tanh %147 : vector<8x128xf32>
    %149 = arith.mulf %145, %103 : vector<8x128xf32>
    %150 = arith.mulf %144, %148 : vector<8x128xf32>
    %151 = arith.addf %149, %150 : vector<8x128xf32>
    %152 = math.tanh %151 : vector<8x128xf32>
    %153 = arith.mulf %146, %152 : vector<8x128xf32>
    %154 = arith.truncf %153 : vector<8x128xf32> to vector<8x128xbf16>
    %c3_i32 = arith.constant 3 : i32
    %c0_55 = arith.constant 0 : index
    %c0_56 = arith.constant 0 : index
    %155 = vector.load %arg4[%c0_55, %c0_56] : memref<128x512xbf16, #tpu.memory_space<vmem>>, vector<128x512xbf16>
    %cst_57 = arith.constant dense<0.000000e+00> : vector<8x512xf32>
    %156 = tpu.matmul %134, %155, %cst_57 {dimension_numbers = #tpu.dot_dimension_numbers<[1], [0], [0], [1], [0, 0, 1, 1], [], []>} : vector<8x128xbf16>, vector<128x512xbf16>, vector<8x512xf32> -> vector<8x512xf32>
    %c0_58 = arith.constant 0 : index
    %c0_59 = arith.constant 0 : index
    %157 = vector.load %arg6[%c0_58, %c0_59] : memref<128x512xbf16, #tpu.memory_space<vmem>>, vector<128x512xbf16>
    %cst_60 = arith.constant dense<0.000000e+00> : vector<8x512xf32>
    %158 = tpu.matmul %154, %157, %cst_60 {dimension_numbers = #tpu.dot_dimension_numbers<[1], [0], [0], [1], [0, 0, 1, 1], [], []>} : vector<8x128xbf16>, vector<128x512xbf16>, vector<8x512xf32> -> vector<8x512xf32>
    %c0_61 = arith.constant 0 : index
    %c0_62 = arith.constant 0 : index
    %159 = vector.load %arg7[%c0_61, %c0_62] : memref<8x512xf32, #tpu.memory_space<vmem>>, vector<8x512xf32>
    %160 = arith.addf %158, %159 : vector<8x512xf32>
    %c8_i32_63 = arith.constant 8 : i32
    %161 = arith.muli %c3_i32, %c8_i32_63 : i32
    %162 = tpu.assume_multiple %161, 8 : i32
    %163 = arith.index_cast %162 : i32 to index
    %c0_64 = arith.constant 0 : index
    %164 = vector.load %arg17[%163, %c0_64] : memref<64x512xf32, #tpu.memory_space<vmem>>, vector<8x512xf32>
    %165 = arith.addf %164, %156 : vector<8x512xf32>
    %166 = vector.extract_strided_slice %165 {offsets = [0, 0], sizes = [8, 384], strides = [1, 1]} : vector<8x512xf32> to vector<8x384xf32>
    %167 = arith.negf %166 : vector<8x384xf32>
    %168 = math.exp %167 : vector<8x384xf32>
    %cst_65 = arith.constant 1.000000e+00 : f32
    %169 = vector.broadcast %cst_65 : f32 to vector<8x384xf32>
    %170 = arith.addf %169, %168 : vector<8x384xf32>
    %171 = arith.divf %169, %170 : vector<8x384xf32>
    %172 = vector.extract_strided_slice %171 {offsets = [0, 0], sizes = [8, 128], strides = [1, 1]} : vector<8x384xf32> to vector<8x128xf32>
    %173 = vector.extract_strided_slice %171 {offsets = [0, 128], sizes = [8, 128], strides = [1, 1]} : vector<8x384xf32> to vector<8x128xf32>
    %174 = vector.extract_strided_slice %171 {offsets = [0, 256], sizes = [8, 128], strides = [1, 1]} : vector<8x384xf32> to vector<8x128xf32>
    %175 = vector.extract_strided_slice %165 {offsets = [0, 384], sizes = [8, 128], strides = [1, 1]} : vector<8x512xf32> to vector<8x128xf32>
    %176 = math.tanh %175 : vector<8x128xf32>
    %177 = arith.mulf %173, %131 : vector<8x128xf32>
    %178 = arith.mulf %172, %176 : vector<8x128xf32>
    %179 = arith.addf %177, %178 : vector<8x128xf32>
    %180 = math.tanh %179 : vector<8x128xf32>
    %181 = arith.mulf %174, %180 : vector<8x128xf32>
    %182 = arith.truncf %181 : vector<8x128xf32> to vector<8x128xbf16>
    %c0_66 = arith.constant 0 : index
    %c0_67 = arith.constant 0 : index
    %183 = vector.load %arg5[%c0_66, %c0_67] : memref<128x512xbf16, #tpu.memory_space<vmem>>, vector<128x512xbf16>
    %cst_68 = arith.constant dense<0.000000e+00> : vector<8x512xf32>
    %184 = tpu.matmul %182, %183, %cst_68 {dimension_numbers = #tpu.dot_dimension_numbers<[1], [0], [0], [1], [0, 0, 1, 1], [], []>} : vector<8x128xbf16>, vector<128x512xbf16>, vector<8x512xf32> -> vector<8x512xf32>
    %185 = arith.addf %184, %160 : vector<8x512xf32>
    %186 = vector.extract_strided_slice %185 {offsets = [0, 0], sizes = [8, 384], strides = [1, 1]} : vector<8x512xf32> to vector<8x384xf32>
    %187 = arith.negf %186 : vector<8x384xf32>
    %188 = math.exp %187 : vector<8x384xf32>
    %cst_69 = arith.constant 1.000000e+00 : f32
    %189 = vector.broadcast %cst_69 : f32 to vector<8x384xf32>
    %190 = arith.addf %189, %188 : vector<8x384xf32>
    %191 = arith.divf %189, %190 : vector<8x384xf32>
    %192 = vector.extract_strided_slice %191 {offsets = [0, 0], sizes = [8, 128], strides = [1, 1]} : vector<8x384xf32> to vector<8x128xf32>
    %193 = vector.extract_strided_slice %191 {offsets = [0, 128], sizes = [8, 128], strides = [1, 1]} : vector<8x384xf32> to vector<8x128xf32>
    %194 = vector.extract_strided_slice %191 {offsets = [0, 256], sizes = [8, 128], strides = [1, 1]} : vector<8x384xf32> to vector<8x128xf32>
    %195 = vector.extract_strided_slice %185 {offsets = [0, 384], sizes = [8, 128], strides = [1, 1]} : vector<8x512xf32> to vector<8x128xf32>
    %196 = math.tanh %195 : vector<8x128xf32>
    %197 = arith.mulf %193, %151 : vector<8x128xf32>
    %198 = arith.mulf %192, %196 : vector<8x128xf32>
    %199 = arith.addf %197, %198 : vector<8x128xf32>
    %200 = math.tanh %199 : vector<8x128xf32>
    %201 = arith.mulf %194, %200 : vector<8x128xf32>
    %202 = arith.truncf %201 : vector<8x128xf32> to vector<8x128xbf16>
    %c4_i32 = arith.constant 4 : i32
    %c0_70 = arith.constant 0 : index
    %c0_71 = arith.constant 0 : index
    %203 = vector.load %arg4[%c0_70, %c0_71] : memref<128x512xbf16, #tpu.memory_space<vmem>>, vector<128x512xbf16>
    %cst_72 = arith.constant dense<0.000000e+00> : vector<8x512xf32>
    %204 = tpu.matmul %182, %203, %cst_72 {dimension_numbers = #tpu.dot_dimension_numbers<[1], [0], [0], [1], [0, 0, 1, 1], [], []>} : vector<8x128xbf16>, vector<128x512xbf16>, vector<8x512xf32> -> vector<8x512xf32>
    %c0_73 = arith.constant 0 : index
    %c0_74 = arith.constant 0 : index
    %205 = vector.load %arg6[%c0_73, %c0_74] : memref<128x512xbf16, #tpu.memory_space<vmem>>, vector<128x512xbf16>
    %cst_75 = arith.constant dense<0.000000e+00> : vector<8x512xf32>
    %206 = tpu.matmul %202, %205, %cst_75 {dimension_numbers = #tpu.dot_dimension_numbers<[1], [0], [0], [1], [0, 0, 1, 1], [], []>} : vector<8x128xbf16>, vector<128x512xbf16>, vector<8x512xf32> -> vector<8x512xf32>
    %c0_76 = arith.constant 0 : index
    %c0_77 = arith.constant 0 : index
    %207 = vector.load %arg7[%c0_76, %c0_77] : memref<8x512xf32, #tpu.memory_space<vmem>>, vector<8x512xf32>
    %208 = arith.addf %206, %207 : vector<8x512xf32>
    %c8_i32_78 = arith.constant 8 : i32
    %209 = arith.muli %c4_i32, %c8_i32_78 : i32
    %210 = tpu.assume_multiple %209, 8 : i32
    %211 = arith.index_cast %210 : i32 to index
    %c0_79 = arith.constant 0 : index
    %212 = vector.load %arg17[%211, %c0_79] : memref<64x512xf32, #tpu.memory_space<vmem>>, vector<8x512xf32>
    %213 = arith.addf %212, %204 : vector<8x512xf32>
    %214 = vector.extract_strided_slice %213 {offsets = [0, 0], sizes = [8, 384], strides = [1, 1]} : vector<8x512xf32> to vector<8x384xf32>
    %215 = arith.negf %214 : vector<8x384xf32>
    %216 = math.exp %215 : vector<8x384xf32>
    %cst_80 = arith.constant 1.000000e+00 : f32
    %217 = vector.broadcast %cst_80 : f32 to vector<8x384xf32>
    %218 = arith.addf %217, %216 : vector<8x384xf32>
    %219 = arith.divf %217, %218 : vector<8x384xf32>
    %220 = vector.extract_strided_slice %219 {offsets = [0, 0], sizes = [8, 128], strides = [1, 1]} : vector<8x384xf32> to vector<8x128xf32>
    %221 = vector.extract_strided_slice %219 {offsets = [0, 128], sizes = [8, 128], strides = [1, 1]} : vector<8x384xf32> to vector<8x128xf32>
    %222 = vector.extract_strided_slice %219 {offsets = [0, 256], sizes = [8, 128], strides = [1, 1]} : vector<8x384xf32> to vector<8x128xf32>
    %223 = vector.extract_strided_slice %213 {offsets = [0, 384], sizes = [8, 128], strides = [1, 1]} : vector<8x512xf32> to vector<8x128xf32>
    %224 = math.tanh %223 : vector<8x128xf32>
    %225 = arith.mulf %221, %179 : vector<8x128xf32>
    %226 = arith.mulf %220, %224 : vector<8x128xf32>
    %227 = arith.addf %225, %226 : vector<8x128xf32>
    %228 = math.tanh %227 : vector<8x128xf32>
    %229 = arith.mulf %222, %228 : vector<8x128xf32>
    %230 = arith.truncf %229 : vector<8x128xf32> to vector<8x128xbf16>
    %c0_81 = arith.constant 0 : index
    %c0_82 = arith.constant 0 : index
    %231 = vector.load %arg5[%c0_81, %c0_82] : memref<128x512xbf16, #tpu.memory_space<vmem>>, vector<128x512xbf16>
    %cst_83 = arith.constant dense<0.000000e+00> : vector<8x512xf32>
    %232 = tpu.matmul %230, %231, %cst_83 {dimension_numbers = #tpu.dot_dimension_numbers<[1], [0], [0], [1], [0, 0, 1, 1], [], []>} : vector<8x128xbf16>, vector<128x512xbf16>, vector<8x512xf32> -> vector<8x512xf32>
    %233 = arith.addf %232, %208 : vector<8x512xf32>
    %234 = vector.extract_strided_slice %233 {offsets = [0, 0], sizes = [8, 384], strides = [1, 1]} : vector<8x512xf32> to vector<8x384xf32>
    %235 = arith.negf %234 : vector<8x384xf32>
    %236 = math.exp %235 : vector<8x384xf32>
    %cst_84 = arith.constant 1.000000e+00 : f32
    %237 = vector.broadcast %cst_84 : f32 to vector<8x384xf32>
    %238 = arith.addf %237, %236 : vector<8x384xf32>
    %239 = arith.divf %237, %238 : vector<8x384xf32>
    %240 = vector.extract_strided_slice %239 {offsets = [0, 0], sizes = [8, 128], strides = [1, 1]} : vector<8x384xf32> to vector<8x128xf32>
    %241 = vector.extract_strided_slice %239 {offsets = [0, 128], sizes = [8, 128], strides = [1, 1]} : vector<8x384xf32> to vector<8x128xf32>
    %242 = vector.extract_strided_slice %239 {offsets = [0, 256], sizes = [8, 128], strides = [1, 1]} : vector<8x384xf32> to vector<8x128xf32>
    %243 = vector.extract_strided_slice %233 {offsets = [0, 384], sizes = [8, 128], strides = [1, 1]} : vector<8x512xf32> to vector<8x128xf32>
    %244 = math.tanh %243 : vector<8x128xf32>
    %245 = arith.mulf %241, %199 : vector<8x128xf32>
    %246 = arith.mulf %240, %244 : vector<8x128xf32>
    %247 = arith.addf %245, %246 : vector<8x128xf32>
    %248 = math.tanh %247 : vector<8x128xf32>
    %249 = arith.mulf %242, %248 : vector<8x128xf32>
    %250 = arith.truncf %249 : vector<8x128xf32> to vector<8x128xbf16>
    %c5_i32 = arith.constant 5 : i32
    %c0_85 = arith.constant 0 : index
    %c0_86 = arith.constant 0 : index
    %251 = vector.load %arg4[%c0_85, %c0_86] : memref<128x512xbf16, #tpu.memory_space<vmem>>, vector<128x512xbf16>
    %cst_87 = arith.constant dense<0.000000e+00> : vector<8x512xf32>
    %252 = tpu.matmul %230, %251, %cst_87 {dimension_numbers = #tpu.dot_dimension_numbers<[1], [0], [0], [1], [0, 0, 1, 1], [], []>} : vector<8x128xbf16>, vector<128x512xbf16>, vector<8x512xf32> -> vector<8x512xf32>
    %c0_88 = arith.constant 0 : index
    %c0_89 = arith.constant 0 : index
    %253 = vector.load %arg6[%c0_88, %c0_89] : memref<128x512xbf16, #tpu.memory_space<vmem>>, vector<128x512xbf16>
    %cst_90 = arith.constant dense<0.000000e+00> : vector<8x512xf32>
    %254 = tpu.matmul %250, %253, %cst_90 {dimension_numbers = #tpu.dot_dimension_numbers<[1], [0], [0], [1], [0, 0, 1, 1], [], []>} : vector<8x128xbf16>, vector<128x512xbf16>, vector<8x512xf32> -> vector<8x512xf32>
    %c0_91 = arith.constant 0 : index
    %c0_92 = arith.constant 0 : index
    %255 = vector.load %arg7[%c0_91, %c0_92] : memref<8x512xf32, #tpu.memory_space<vmem>>, vector<8x512xf32>
    %256 = arith.addf %254, %255 : vector<8x512xf32>
    %c8_i32_93 = arith.constant 8 : i32
    %257 = arith.muli %c5_i32, %c8_i32_93 : i32
    %258 = tpu.assume_multiple %257, 8 : i32
    %259 = arith.index_cast %258 : i32 to index
    %c0_94 = arith.constant 0 : index
    %260 = vector.load %arg17[%259, %c0_94] : memref<64x512xf32, #tpu.memory_space<vmem>>, vector<8x512xf32>
    %261 = arith.addf %260, %252 : vector<8x512xf32>
    %262 = vector.extract_strided_slice %261 {offsets = [0, 0], sizes = [8, 384], strides = [1, 1]} : vector<8x512xf32> to vector<8x384xf32>
    %263 = arith.negf %262 : vector<8x384xf32>
    %264 = math.exp %263 : vector<8x384xf32>
    %cst_95 = arith.constant 1.000000e+00 : f32
    %265 = vector.broadcast %cst_95 : f32 to vector<8x384xf32>
    %266 = arith.addf %265, %264 : vector<8x384xf32>
    %267 = arith.divf %265, %266 : vector<8x384xf32>
    %268 = vector.extract_strided_slice %267 {offsets = [0, 0], sizes = [8, 128], strides = [1, 1]} : vector<8x384xf32> to vector<8x128xf32>
    %269 = vector.extract_strided_slice %267 {offsets = [0, 128], sizes = [8, 128], strides = [1, 1]} : vector<8x384xf32> to vector<8x128xf32>
    %270 = vector.extract_strided_slice %267 {offsets = [0, 256], sizes = [8, 128], strides = [1, 1]} : vector<8x384xf32> to vector<8x128xf32>
    %271 = vector.extract_strided_slice %261 {offsets = [0, 384], sizes = [8, 128], strides = [1, 1]} : vector<8x512xf32> to vector<8x128xf32>
    %272 = math.tanh %271 : vector<8x128xf32>
    %273 = arith.mulf %269, %227 : vector<8x128xf32>
    %274 = arith.mulf %268, %272 : vector<8x128xf32>
    %275 = arith.addf %273, %274 : vector<8x128xf32>
    %276 = math.tanh %275 : vector<8x128xf32>
    %277 = arith.mulf %270, %276 : vector<8x128xf32>
    %278 = arith.truncf %277 : vector<8x128xf32> to vector<8x128xbf16>
    %c0_96 = arith.constant 0 : index
    %c0_97 = arith.constant 0 : index
    %279 = vector.load %arg5[%c0_96, %c0_97] : memref<128x512xbf16, #tpu.memory_space<vmem>>, vector<128x512xbf16>
    %cst_98 = arith.constant dense<0.000000e+00> : vector<8x512xf32>
    %280 = tpu.matmul %278, %279, %cst_98 {dimension_numbers = #tpu.dot_dimension_numbers<[1], [0], [0], [1], [0, 0, 1, 1], [], []>} : vector<8x128xbf16>, vector<128x512xbf16>, vector<8x512xf32> -> vector<8x512xf32>
    %281 = arith.addf %280, %256 : vector<8x512xf32>
    %282 = vector.extract_strided_slice %281 {offsets = [0, 0], sizes = [8, 384], strides = [1, 1]} : vector<8x512xf32> to vector<8x384xf32>
    %283 = arith.negf %282 : vector<8x384xf32>
    %284 = math.exp %283 : vector<8x384xf32>
    %cst_99 = arith.constant 1.000000e+00 : f32
    %285 = vector.broadcast %cst_99 : f32 to vector<8x384xf32>
    %286 = arith.addf %285, %284 : vector<8x384xf32>
    %287 = arith.divf %285, %286 : vector<8x384xf32>
    %288 = vector.extract_strided_slice %287 {offsets = [0, 0], sizes = [8, 128], strides = [1, 1]} : vector<8x384xf32> to vector<8x128xf32>
    %289 = vector.extract_strided_slice %287 {offsets = [0, 128], sizes = [8, 128], strides = [1, 1]} : vector<8x384xf32> to vector<8x128xf32>
    %290 = vector.extract_strided_slice %287 {offsets = [0, 256], sizes = [8, 128], strides = [1, 1]} : vector<8x384xf32> to vector<8x128xf32>
    %291 = vector.extract_strided_slice %281 {offsets = [0, 384], sizes = [8, 128], strides = [1, 1]} : vector<8x512xf32> to vector<8x128xf32>
    %292 = math.tanh %291 : vector<8x128xf32>
    %293 = arith.mulf %289, %247 : vector<8x128xf32>
    %294 = arith.mulf %288, %292 : vector<8x128xf32>
    %295 = arith.addf %293, %294 : vector<8x128xf32>
    %296 = math.tanh %295 : vector<8x128xf32>
    %297 = arith.mulf %290, %296 : vector<8x128xf32>
    %298 = arith.truncf %297 : vector<8x128xf32> to vector<8x128xbf16>
    %c6_i32 = arith.constant 6 : i32
    %c0_100 = arith.constant 0 : index
    %c0_101 = arith.constant 0 : index
    %299 = vector.load %arg4[%c0_100, %c0_101] : memref<128x512xbf16, #tpu.memory_space<vmem>>, vector<128x512xbf16>
    %cst_102 = arith.constant dense<0.000000e+00> : vector<8x512xf32>
    %300 = tpu.matmul %278, %299, %cst_102 {dimension_numbers = #tpu.dot_dimension_numbers<[1], [0], [0], [1], [0, 0, 1, 1], [], []>} : vector<8x128xbf16>, vector<128x512xbf16>, vector<8x512xf32> -> vector<8x512xf32>
    %c0_103 = arith.constant 0 : index
    %c0_104 = arith.constant 0 : index
    %301 = vector.load %arg6[%c0_103, %c0_104] : memref<128x512xbf16, #tpu.memory_space<vmem>>, vector<128x512xbf16>
    %cst_105 = arith.constant dense<0.000000e+00> : vector<8x512xf32>
    %302 = tpu.matmul %298, %301, %cst_105 {dimension_numbers = #tpu.dot_dimension_numbers<[1], [0], [0], [1], [0, 0, 1, 1], [], []>} : vector<8x128xbf16>, vector<128x512xbf16>, vector<8x512xf32> -> vector<8x512xf32>
    %c0_106 = arith.constant 0 : index
    %c0_107 = arith.constant 0 : index
    %303 = vector.load %arg7[%c0_106, %c0_107] : memref<8x512xf32, #tpu.memory_space<vmem>>, vector<8x512xf32>
    %304 = arith.addf %302, %303 : vector<8x512xf32>
    %c8_i32_108 = arith.constant 8 : i32
    %305 = arith.muli %c6_i32, %c8_i32_108 : i32
    %306 = tpu.assume_multiple %305, 8 : i32
    %307 = arith.index_cast %306 : i32 to index
    %c0_109 = arith.constant 0 : index
    %308 = vector.load %arg17[%307, %c0_109] : memref<64x512xf32, #tpu.memory_space<vmem>>, vector<8x512xf32>
    %309 = arith.addf %308, %300 : vector<8x512xf32>
    %310 = vector.extract_strided_slice %309 {offsets = [0, 0], sizes = [8, 384], strides = [1, 1]} : vector<8x512xf32> to vector<8x384xf32>
    %311 = arith.negf %310 : vector<8x384xf32>
    %312 = math.exp %311 : vector<8x384xf32>
    %cst_110 = arith.constant 1.000000e+00 : f32
    %313 = vector.broadcast %cst_110 : f32 to vector<8x384xf32>
    %314 = arith.addf %313, %312 : vector<8x384xf32>
    %315 = arith.divf %313, %314 : vector<8x384xf32>
    %316 = vector.extract_strided_slice %315 {offsets = [0, 0], sizes = [8, 128], strides = [1, 1]} : vector<8x384xf32> to vector<8x128xf32>
    %317 = vector.extract_strided_slice %315 {offsets = [0, 128], sizes = [8, 128], strides = [1, 1]} : vector<8x384xf32> to vector<8x128xf32>
    %318 = vector.extract_strided_slice %315 {offsets = [0, 256], sizes = [8, 128], strides = [1, 1]} : vector<8x384xf32> to vector<8x128xf32>
    %319 = vector.extract_strided_slice %309 {offsets = [0, 384], sizes = [8, 128], strides = [1, 1]} : vector<8x512xf32> to vector<8x128xf32>
    %320 = math.tanh %319 : vector<8x128xf32>
    %321 = arith.mulf %317, %275 : vector<8x128xf32>
    %322 = arith.mulf %316, %320 : vector<8x128xf32>
    %323 = arith.addf %321, %322 : vector<8x128xf32>
    %324 = math.tanh %323 : vector<8x128xf32>
    %325 = arith.mulf %318, %324 : vector<8x128xf32>
    %326 = arith.truncf %325 : vector<8x128xf32> to vector<8x128xbf16>
    %c0_111 = arith.constant 0 : index
    %c0_112 = arith.constant 0 : index
    %327 = vector.load %arg5[%c0_111, %c0_112] : memref<128x512xbf16, #tpu.memory_space<vmem>>, vector<128x512xbf16>
    %cst_113 = arith.constant dense<0.000000e+00> : vector<8x512xf32>
    %328 = tpu.matmul %326, %327, %cst_113 {dimension_numbers = #tpu.dot_dimension_numbers<[1], [0], [0], [1], [0, 0, 1, 1], [], []>} : vector<8x128xbf16>, vector<128x512xbf16>, vector<8x512xf32> -> vector<8x512xf32>
    %329 = arith.addf %328, %304 : vector<8x512xf32>
    %330 = vector.extract_strided_slice %329 {offsets = [0, 0], sizes = [8, 384], strides = [1, 1]} : vector<8x512xf32> to vector<8x384xf32>
    %331 = arith.negf %330 : vector<8x384xf32>
    %332 = math.exp %331 : vector<8x384xf32>
    %cst_114 = arith.constant 1.000000e+00 : f32
    %333 = vector.broadcast %cst_114 : f32 to vector<8x384xf32>
    %334 = arith.addf %333, %332 : vector<8x384xf32>
    %335 = arith.divf %333, %334 : vector<8x384xf32>
    %336 = vector.extract_strided_slice %335 {offsets = [0, 0], sizes = [8, 128], strides = [1, 1]} : vector<8x384xf32> to vector<8x128xf32>
    %337 = vector.extract_strided_slice %335 {offsets = [0, 128], sizes = [8, 128], strides = [1, 1]} : vector<8x384xf32> to vector<8x128xf32>
    %338 = vector.extract_strided_slice %335 {offsets = [0, 256], sizes = [8, 128], strides = [1, 1]} : vector<8x384xf32> to vector<8x128xf32>
    %339 = vector.extract_strided_slice %329 {offsets = [0, 384], sizes = [8, 128], strides = [1, 1]} : vector<8x512xf32> to vector<8x128xf32>
    %340 = math.tanh %339 : vector<8x128xf32>
    %341 = arith.mulf %337, %295 : vector<8x128xf32>
    %342 = arith.mulf %336, %340 : vector<8x128xf32>
    %343 = arith.addf %341, %342 : vector<8x128xf32>
    %344 = math.tanh %343 : vector<8x128xf32>
    %345 = arith.mulf %338, %344 : vector<8x128xf32>
    %346 = arith.truncf %345 : vector<8x128xf32> to vector<8x128xbf16>
    %c7_i32 = arith.constant 7 : i32
    %c0_115 = arith.constant 0 : index
    %c0_116 = arith.constant 0 : index
    %347 = vector.load %arg4[%c0_115, %c0_116] : memref<128x512xbf16, #tpu.memory_space<vmem>>, vector<128x512xbf16>
    %cst_117 = arith.constant dense<0.000000e+00> : vector<8x512xf32>
    %348 = tpu.matmul %326, %347, %cst_117 {dimension_numbers = #tpu.dot_dimension_numbers<[1], [0], [0], [1], [0, 0, 1, 1], [], []>} : vector<8x128xbf16>, vector<128x512xbf16>, vector<8x512xf32> -> vector<8x512xf32>
    %c0_118 = arith.constant 0 : index
    %c0_119 = arith.constant 0 : index
    %349 = vector.load %arg6[%c0_118, %c0_119] : memref<128x512xbf16, #tpu.memory_space<vmem>>, vector<128x512xbf16>
    %cst_120 = arith.constant dense<0.000000e+00> : vector<8x512xf32>
    %350 = tpu.matmul %346, %349, %cst_120 {dimension_numbers = #tpu.dot_dimension_numbers<[1], [0], [0], [1], [0, 0, 1, 1], [], []>} : vector<8x128xbf16>, vector<128x512xbf16>, vector<8x512xf32> -> vector<8x512xf32>
    %c0_121 = arith.constant 0 : index
    %c0_122 = arith.constant 0 : index
    %351 = vector.load %arg7[%c0_121, %c0_122] : memref<8x512xf32, #tpu.memory_space<vmem>>, vector<8x512xf32>
    %352 = arith.addf %350, %351 : vector<8x512xf32>
    %c8_i32_123 = arith.constant 8 : i32
    %353 = arith.muli %c7_i32, %c8_i32_123 : i32
    %354 = tpu.assume_multiple %353, 8 : i32
    %355 = arith.index_cast %354 : i32 to index
    %c0_124 = arith.constant 0 : index
    %356 = vector.load %arg17[%355, %c0_124] : memref<64x512xf32, #tpu.memory_space<vmem>>, vector<8x512xf32>
    %357 = arith.addf %356, %348 : vector<8x512xf32>
    %358 = vector.extract_strided_slice %357 {offsets = [0, 0], sizes = [8, 384], strides = [1, 1]} : vector<8x512xf32> to vector<8x384xf32>
    %359 = arith.negf %358 : vector<8x384xf32>
    %360 = math.exp %359 : vector<8x384xf32>
    %cst_125 = arith.constant 1.000000e+00 : f32
    %361 = vector.broadcast %cst_125 : f32 to vector<8x384xf32>
    %362 = arith.addf %361, %360 : vector<8x384xf32>
    %363 = arith.divf %361, %362 : vector<8x384xf32>
    %364 = vector.extract_strided_slice %363 {offsets = [0, 0], sizes = [8, 128], strides = [1, 1]} : vector<8x384xf32> to vector<8x128xf32>
    %365 = vector.extract_strided_slice %363 {offsets = [0, 128], sizes = [8, 128], strides = [1, 1]} : vector<8x384xf32> to vector<8x128xf32>
    %366 = vector.extract_strided_slice %363 {offsets = [0, 256], sizes = [8, 128], strides = [1, 1]} : vector<8x384xf32> to vector<8x128xf32>
    %367 = vector.extract_strided_slice %357 {offsets = [0, 384], sizes = [8, 128], strides = [1, 1]} : vector<8x512xf32> to vector<8x128xf32>
    %368 = math.tanh %367 : vector<8x128xf32>
    %369 = arith.mulf %365, %323 : vector<8x128xf32>
    %370 = arith.mulf %364, %368 : vector<8x128xf32>
    %371 = arith.addf %369, %370 : vector<8x128xf32>
    %372 = math.tanh %371 : vector<8x128xf32>
    %373 = arith.mulf %366, %372 : vector<8x128xf32>
    %374 = arith.truncf %373 : vector<8x128xf32> to vector<8x128xbf16>
    %c0_126 = arith.constant 0 : index
    %c0_127 = arith.constant 0 : index
    %375 = vector.load %arg5[%c0_126, %c0_127] : memref<128x512xbf16, #tpu.memory_space<vmem>>, vector<128x512xbf16>
    %cst_128 = arith.constant dense<0.000000e+00> : vector<8x512xf32>
    %376 = tpu.matmul %374, %375, %cst_128 {dimension_numbers = #tpu.dot_dimension_numbers<[1], [0], [0], [1], [0, 0, 1, 1], [], []>} : vector<8x128xbf16>, vector<128x512xbf16>, vector<8x512xf32> -> vector<8x512xf32>
    %377 = arith.addf %376, %352 : vector<8x512xf32>
    %378 = vector.extract_strided_slice %377 {offsets = [0, 0], sizes = [8, 384], strides = [1, 1]} : vector<8x512xf32> to vector<8x384xf32>
    %379 = arith.negf %378 : vector<8x384xf32>
    %380 = math.exp %379 : vector<8x384xf32>
    %cst_129 = arith.constant 1.000000e+00 : f32
    %381 = vector.broadcast %cst_129 : f32 to vector<8x384xf32>
    %382 = arith.addf %381, %380 : vector<8x384xf32>
    %383 = arith.divf %381, %382 : vector<8x384xf32>
    %384 = vector.extract_strided_slice %383 {offsets = [0, 0], sizes = [8, 128], strides = [1, 1]} : vector<8x384xf32> to vector<8x128xf32>
    %385 = vector.extract_strided_slice %383 {offsets = [0, 128], sizes = [8, 128], strides = [1, 1]} : vector<8x384xf32> to vector<8x128xf32>
    %386 = vector.extract_strided_slice %383 {offsets = [0, 256], sizes = [8, 128], strides = [1, 1]} : vector<8x384xf32> to vector<8x128xf32>
    %387 = vector.extract_strided_slice %377 {offsets = [0, 384], sizes = [8, 128], strides = [1, 1]} : vector<8x512xf32> to vector<8x128xf32>
    %388 = math.tanh %387 : vector<8x128xf32>
    %389 = arith.mulf %385, %343 : vector<8x128xf32>
    %390 = arith.mulf %384, %388 : vector<8x128xf32>
    %391 = arith.addf %389, %390 : vector<8x128xf32>
    %392 = math.tanh %391 : vector<8x128xf32>
    %393 = arith.mulf %386, %392 : vector<8x128xf32>
    %394 = arith.truncf %393 : vector<8x128xf32> to vector<8x128xbf16>
    %c8_i32_130 = arith.constant 8 : i32
    %c0_131 = arith.constant 0 : index
    %c0_132 = arith.constant 0 : index
    %395 = vector.load %arg8[%c0_131, %c0_132] : memref<128x128xbf16, #tpu.memory_space<vmem>>, vector<128x128xbf16>
    %cst_133 = arith.constant dense<0.000000e+00> : vector<8x128xf32>
    %396 = tpu.matmul %394, %395, %cst_133 {dimension_numbers = #tpu.dot_dimension_numbers<[1], [0], [0], [1], [0, 0, 1, 1], [], []>} : vector<8x128xbf16>, vector<128x128xbf16>, vector<8x128xf32> -> vector<8x128xf32>
    %c0_134 = arith.constant 0 : index
    %c0_135 = arith.constant 0 : index
    %397 = vector.load %arg9[%c0_134, %c0_135] : memref<1x128xf32, #tpu.memory_space<vmem>>, vector<1x128xf32>
    %398 = vector.broadcast %397 : vector<1x128xf32> to vector<8x128xf32>
    %399 = arith.mulf %396, %398 : vector<8x128xf32>
    %c0_136 = arith.constant 0 : index
    %c0_137 = arith.constant 0 : index
    %400 = vector.load %arg10[%c0_136, %c0_137] : memref<1x128xf32, #tpu.memory_space<vmem>>, vector<1x128xf32>
    %401 = vector.broadcast %400 : vector<1x128xf32> to vector<8x128xf32>
    %402 = arith.addf %399, %401 : vector<8x128xf32>
    %cst_138 = arith.constant 0.000000e+00 : f32
    %403 = vector.broadcast %cst_138 : f32 to vector<8x128xf32>
    %404 = arith.maximumf %402, %403 : vector<8x128xf32>
    %405 = arith.truncf %404 : vector<8x128xf32> to vector<8x128xbf16>
    %c0_139 = arith.constant 0 : index
    %c0_140 = arith.constant 0 : index
    %406 = vector.load %arg11[%c0_139, %c0_140] : memref<128x128xbf16, #tpu.memory_space<vmem>>, vector<128x128xbf16>
    %cst_141 = arith.constant dense<0.000000e+00> : vector<8x128xf32>
    %407 = tpu.matmul %405, %406, %cst_141 {dimension_numbers = #tpu.dot_dimension_numbers<[1], [0], [0], [1], [0, 0, 1, 1], [], []>} : vector<8x128xbf16>, vector<128x128xbf16>, vector<8x128xf32> -> vector<8x128xf32>
    %c0_142 = arith.constant 0 : index
    %c0_143 = arith.constant 0 : index
    %408 = vector.load %arg12[%c0_142, %c0_143] : memref<1x128xf32, #tpu.memory_space<vmem>>, vector<1x128xf32>
    %409 = vector.broadcast %408 : vector<1x128xf32> to vector<8x128xf32>
    %410 = arith.mulf %407, %409 : vector<8x128xf32>
    %c0_144 = arith.constant 0 : index
    %c0_145 = arith.constant 0 : index
    %411 = vector.load %arg13[%c0_144, %c0_145] : memref<1x128xf32, #tpu.memory_space<vmem>>, vector<1x128xf32>
    %412 = vector.broadcast %411 : vector<1x128xf32> to vector<8x128xf32>
    %413 = arith.addf %410, %412 : vector<8x128xf32>
    %cst_146 = arith.constant 0.000000e+00 : f32
    %414 = vector.broadcast %cst_146 : f32 to vector<8x128xf32>
    %415 = arith.maximumf %413, %414 : vector<8x128xf32>
    %416 = arith.truncf %415 : vector<8x128xf32> to vector<8x128xbf16>
    %c0_147 = arith.constant 0 : index
    %c0_148 = arith.constant 0 : index
    %417 = vector.load %arg14[%c0_147, %c0_148] : memref<128x128xbf16, #tpu.memory_space<vmem>>, vector<128x128xbf16>
    %cst_149 = arith.constant dense<0.000000e+00> : vector<8x128xf32>
    %418 = tpu.matmul %416, %417, %cst_149 {dimension_numbers = #tpu.dot_dimension_numbers<[1], [0], [0], [1], [0, 0, 1, 1], [], []>} : vector<8x128xbf16>, vector<128x128xbf16>, vector<8x128xf32> -> vector<8x128xf32>
    %c0_150 = arith.constant 0 : index
    %c0_151 = arith.constant 0 : index
    %419 = vector.load %arg15[%c0_150, %c0_151] : memref<1x128xf32, #tpu.memory_space<vmem>>, vector<1x128xf32>
    %420 = vector.broadcast %419 : vector<1x128xf32> to vector<8x128xf32>
    %421 = arith.addf %418, %420 : vector<8x128xf32>
    %c0_152 = arith.constant 0 : index
    %c0_153 = arith.constant 0 : index
    %422 = vector.load %arg16[%c0_152, %c0_153] : memref<8x128xf32, #tpu.memory_space<vmem>>, vector<8x128xf32>
    tpu.vector_store %arg16[%c0_152, %c0_153], %421 {strides = array<i32>} : memref<8x128xf32, #tpu.memory_space<vmem>>, vector<8x128xf32>,
    return
  }
  func.func @transform_0(%arg0: i32) -> (i32, i32) {
    %c0_i32 = arith.constant 0 : i32
    %c0_i32_0 = arith.constant 0 : i32
    %c0_i32_1 = arith.constant 0 : i32
    return %c0_i32, %c0_i32_0 : i32, i32
  }
  func.func @transform_1(%arg0: i32) -> (i32, i32) {
    %c0_i32 = arith.constant 0 : i32
    %c0_i32_0 = arith.constant 0 : i32
    %c0_i32_1 = arith.constant 0 : i32
    return %c0_i32, %c0_i32_0 : i32, i32
  }
  func.func @transform_2(%arg0: i32) -> (i32, i32) {
    %c0_i32 = arith.constant 0 : i32
    %c0_i32_0 = arith.constant 0 : i32
    %c0_i32_1 = arith.constant 0 : i32
    return %c0_i32, %c0_i32_0 : i32, i32
  }
  func.func @transform_3(%arg0: i32) -> (i32, i32) {
    %c0_i32 = arith.constant 0 : i32
    %c0_i32_0 = arith.constant 0 : i32
    %c0_i32_1 = arith.constant 0 : i32
    return %c0_i32, %c0_i32_0 : i32, i32
  }
  func.func @transform_4(%arg0: i32) -> (i32, i32) {
    %c0_i32 = arith.constant 0 : i32
    %c0_i32_0 = arith.constant 0 : i32
    %c0_i32_1 = arith.constant 0 : i32
    return %c0_i32, %c0_i32_0 : i32, i32
  }
  func.func @transform_5(%arg0: i32) -> (i32, i32) {
    %c0_i32 = arith.constant 0 : i32
    %c0_i32_0 = arith.constant 0 : i32
    %c0_i32_1 = arith.constant 0 : i32
    return %c0_i32, %c0_i32_0 : i32, i32
  }
  func.func @transform_6(%arg0: i32) -> (i32, i32) {
    %c0_i32 = arith.constant 0 : i32
    %c0_i32_0 = arith.constant 0 : i32
    %c0_i32_1 = arith.constant 0 : i32
    return %c0_i32, %c0_i32_0 : i32, i32
  }
  func.func @transform_7(%arg0: i32) -> (i32, i32) {
    %c0_i32 = arith.constant 0 : i32
    %c0_i32_0 = arith.constant 0 : i32
    %c0_i32_1 = arith.constant 0 : i32
    return %c0_i32, %c0_i32_0 : i32, i32
  }
  func.func @transform_8(%arg0: i32) -> (i32, i32) {
    %c0_i32 = arith.constant 0 : i32
    %c0_i32_0 = arith.constant 0 : i32
    %c0_i32_1 = arith.constant 0 : i32
    return %c0_i32, %c0_i32_0 : i32, i32
  }
  func.func @transform_9(%arg0: i32) -> (i32, i32) {
    %c0_i32 = arith.constant 0 : i32
    %c0_i32_0 = arith.constant 0 : i32
    %c0_i32_1 = arith.constant 0 : i32
    return %c0_i32, %c0_i32_0 : i32, i32
  }
  func.func @transform_10(%arg0: i32) -> (i32, i32) {
    %c0_i32 = arith.constant 0 : i32
    %c0_i32_0 = arith.constant 0 : i32
    %c0_i32_1 = arith.constant 0 : i32
    return %c0_i32, %c0_i32_0 : i32, i32
  }
  func.func @transform_11(%arg0: i32) -> (i32, i32) {
    %c0_i32 = arith.constant 0 : i32
    %c0_i32_0 = arith.constant 0 : i32
    %c0_i32_1 = arith.constant 0 : i32
    return %c0_i32, %c0_i32_0 : i32, i32
  }
  func.func @transform_12(%arg0: i32) -> (i32, i32) {
    %c0_i32 = arith.constant 0 : i32
    %c0_i32_0 = arith.constant 0 : i32
    %c0_i32_1 = arith.constant 0 : i32
    return %c0_i32, %c0_i32_0 : i32, i32
  }
  func.func @transform_13(%arg0: i32) -> (i32, i32) {
    %c0_i32 = arith.constant 0 : i32
    %c0_i32_0 = arith.constant 0 : i32
    %c0_i32_1 = arith.constant 0 : i32
    return %c0_i32, %c0_i32_0 : i32, i32
  }
  func.func @transform_14(%arg0: i32) -> (i32, i32) {
    %c0_i32 = arith.constant 0 : i32
    %c0_i32_0 = arith.constant 0 : i32
    %c0_i32_1 = arith.constant 0 : i32
    return %c0_i32, %c0_i32_0 : i32, i32
  }
  func.func @transform_15(%arg0: i32) -> (i32, i32) {
    %c0_i32 = arith.constant 0 : i32
    %c0_i32_0 = arith.constant 0 : i32
    %c0_i32_1 = arith.constant 0 : i32
    return %c0_i32, %c0_i32_0 : i32, i32
  }
}

</mosaic_0001>

<llo_original>
// kernel: tpu_custom_call.1
$region0: #{tpu_custom_call.1}
  #allocation0 [shape = 'u32[]', space=smem, size = 0x4, offset = 0x4, fixed_abs, tag = 'smem constant byte address 0x4 - core index']
  #allocation1 [shape = 'u32[144,128]{1,0:T(1,128)}', space=vmem, size = 0x12000, scoped, tag = 'internal scratch']
  #allocation2 [shape = 'f32[64,512]{1,0:T(8,128)}', space=vmem, size = 0x20000, scoped, tag = 'scratch operand']
  %s0 = inlined_call_operand.vmem [shape: bf16[64,16], index: 0, kind: input, shape index: {}]
  %s1 = inlined_call_operand.hbm [shape: bf16[16,512], index: 1, kind: input, shape index: {}]
  %s2 = inlined_call_operand.hbm [shape: f32[1,512], index: 2, kind: input, shape index: {}]
  %s3 = inlined_call_operand.hbm [shape: bf16[128,512], index: 3, kind: input, shape index: {}]
  %s4 = inlined_call_operand.hbm [shape: bf16[128,512], index: 4, kind: input, shape index: {}]
  %s5 = inlined_call_operand.hbm [shape: bf16[128,512], index: 5, kind: input, shape index: {}]
  %s6 = inlined_call_operand.hbm [shape: f32[8,512], index: 6, kind: input, shape index: {}]
  %s7 = inlined_call_operand.vmem [shape: bf16[128,128], index: 7, kind: input, shape index: {}]
  %s8 = inlined_call_operand.vmem [shape: f32[1,128], index: 8, kind: input, shape index: {}]
  %s9 = inlined_call_operand.vmem [shape: f32[1,128], index: 9, kind: input, shape index: {}]
  %s10 = inlined_call_operand.hbm [shape: bf16[128,128], index: 10, kind: input, shape index: {}]
  %s11 = inlined_call_operand.vmem [shape: f32[1,128], index: 11, kind: input, shape index: {}]
  %s12 = inlined_call_operand.vmem [shape: f32[1,128], index: 12, kind: input, shape index: {}]
  %s13 = inlined_call_operand.hbm [shape: bf16[128,128], index: 13, kind: input, shape index: {}]
  %s14 = inlined_call_operand.vmem [shape: f32[1,128], index: 14, kind: input, shape index: {}]
  %s15 = inlined_call_operand.hbm [shape: f32[8,128], index: 15, kind: output, shape index: {}]
  %s16 = sld [smem:[#allocation0]]
  $region102: #{tpu_custom_call.1} parent=0
    _
  %s18 = ssub.s32 1, %s16
  %s19 = scalar_select 0, %s18, %s16
  $region1: #{tpu_custom_call.1} parent=0
    #allocation3 [shape = 'u8[16384]{0}', space=vmem, size = 0x4000, scoped, tag = 'input window, operand 1, single buffered']
    #allocation4 [shape = 's32[1]{0}', space=sflag, size = 0x4, scoped, tag = 'scoped memory for tpu_custom_call.1']
    #allocation5 [shape = 's32[1]{0}', space=sflag, size = 0x4, scoped, tag = 'scoped memory for tpu_custom_call.1']
    #allocation6 [shape = 'u8[2048]{0}', space=vmem, size = 0x800, scoped, tag = 'input window, operand 2, single buffered']
    #allocation7 [shape = 's32[1]{0}', space=sflag, size = 0x4, scoped, tag = 'scoped memory for tpu_custom_call.1']
    #allocation8 [shape = 'u8[131072]{0}', space=vmem, size = 0x20000, scoped, tag = 'input window, operand 3, single buffered']
    #allocation9 [shape = 'u8[131072]{0}', space=vmem, size = 0x20000, scoped, tag = 'input window, operand 4, single buffered']
    #allocation10 [shape = 's32[1]{0}', space=sflag, size = 0x4, scoped, tag = 'scoped memory for tpu_custom_call.1']
    #allocation11 [shape = 'u8[131072]{0}', space=vmem, size = 0x20000, scoped, tag = 'input window, operand 5, single buffered']
    #allocation12 [shape = 'u8[16384]{0}', space=vmem, size = 0x4000, scoped, tag = 'input window, operand 6, single buffered']
    #allocation13 [shape = 's32[1]{0}', space=sflag, size = 0x4, scoped, tag = 'scoped memory for tpu_custom_call.1']
    #allocation14 [shape = 'u8[32768]{0}', space=vmem, size = 0x8000, scoped, tag = 'input window, operand 10, single buffered']
    #allocation15 [shape = 'u8[32768]{0}', space=vmem, size = 0x8000, scoped, tag = 'input window, operand 13, single buffered']
    #allocation16 [shape = 's32[1]{0}', space=sflag, size = 0x4, scoped, tag = 'scoped memory for tpu_custom_call.1']
    #allocation17 [shape = 'u8[4096]{0}', space=vmem, size = 0x1000, scoped, tag = 'output window, operand 0, single buffered']
    %20 = vsyncpa [#allocation4], 0
    %21 = vsyncpa [#allocation7], 0
    %22 = vsyncpa [#allocation10], 0
    %23 = vsyncpa [#allocation13], 0
    %24 = vsyncpa [#allocation16], 0
    %25 = vsyncpa [#allocation5], 0
    // Predicated region
    $region2: #{tpu_custom_call.1} parent=1 // pred_check
      _
    $region3: #{tpu_custom_call.1} parent=1 // pred_check_branch
      %27 = sbr.rel (0) target = $region5
    $region4: #{tpu_custom_call.1} parent=1 // pred_region
      _
    $region5: #{tpu_custom_call.1} parent=1 // pred_fallthru
      _
    // Predicated region
    $region6: #{tpu_custom_call.1} parent=1 // pred_check
      _
    $region7: #{tpu_custom_call.1} parent=1 // pred_check_branch
      %29 = sbr.rel (0) target = $region9
    $region8: #{tpu_custom_call.1} parent=1 // pred_region
      %s31 = ssub.s32 512, 512
      %32 = vsyncadd [#allocation4], %s31
      %s33 = sshll.u32 [#allocation3], 4
      %s34 = int_to_ptr.vmem [resolvable:$true] %s33
      %39 = dma.hbm_to_vmem [thread:$0]  %s1, 512, %s34, [#allocation4], 256, 256, 16
    $region9: #{tpu_custom_call.1} parent=1 // pred_fallthru
      _
    // Predicated region
    $region10: #{tpu_custom_call.1} parent=1 // pred_check
      _
    $region11: #{tpu_custom_call.1} parent=1 // pred_check_branch
      %41 = sbr.rel (0) target = $region13
    $region12: #{tpu_custom_call.1} parent=1 // pred_region
      %s43 = ssub.s32 64, 64
      %44 = vsyncadd [#allocation7], %s43
      %s46 = sshll.u32 [#allocation6], 4
      %s47 = int_to_ptr.vmem [resolvable:$true] %s46
      %49 = dma.hbm_to_vmem [thread:$0]  %s2, 64, %s47, [#allocation7]
    $region13: #{tpu_custom_call.1} parent=1 // pred_fallthru
      _
    // Predicated region
    $region14: #{tpu_custom_call.1} parent=1 // pred_check
      _
    $region15: #{tpu_custom_call.1} parent=1 // pred_check_branch
      %51 = sbr.rel (0) target = $region17
    $region16: #{tpu_custom_call.1} parent=1 // pred_region
      %s53 = ssub.s32 4096, 4096
      %54 = vsyncadd [#allocation7], %s53
      %s55 = sshll.u32 [#allocation8], 4
      %s56 = int_to_ptr.vmem [resolvable:$true] %s55
      %61 = dma.hbm_to_vmem [thread:$0]  %s3, 4096, %s56, [#allocation7], 256, 256, 16
    $region17: #{tpu_custom_call.1} parent=1 // pred_fallthru
      _
    // Predicated region
    $region18: #{tpu_custom_call.1} parent=1 // pred_check
      _
    $region19: #{tpu_custom_call.1} parent=1 // pred_check_branch
      %63 = sbr.rel (0) target = $region21
    $region20: #{tpu_custom_call.1} parent=1 // pred_region
      %s65 = ssub.s32 4096, 4096
      %66 = vsyncadd [#allocation10], %s65
      %s67 = sshll.u32 [#allocation9], 4
      %s68 = int_to_ptr.vmem [resolvable:$true] %s67
      %73 = dma.hbm_to_vmem [thread:$0]  %s4, 4096, %s68, [#allocation10], 256, 256, 16
    $region21: #{tpu_custom_call.1} parent=1 // pred_fallthru
      _
    // Predicated region
    $region22: #{tpu_custom_call.1} parent=1 // pred_check
      _
    $region23: #{tpu_custom_call.1} parent=1 // pred_check_branch
      %75 = sbr.rel (0) target = $region25
    $region24: #{tpu_custom_call.1} parent=1 // pred_region
      %s77 = ssub.s32 4096, 4096
      %78 = vsyncadd [#allocation10], %s77
      %s79 = sshll.u32 [#allocation11], 4
      %s80 = int_to_ptr.vmem [resolvable:$true] %s79
      %85 = dma.hbm_to_vmem [thread:$0]  %s5, 4096, %s80, [#allocation10], 256, 256, 16
    $region25: #{tpu_custom_call.1} parent=1 // pred_fallthru
      _
    // Predicated region
    $region26: #{tpu_custom_call.1} parent=1 // pred_check
      _
    $region27: #{tpu_custom_call.1} parent=1 // pred_check_branch
      %87 = sbr.rel (0) target = $region29
    $region28: #{tpu_custom_call.1} parent=1 // pred_region
      %s89 = ssub.s32 512, 512
      %90 = vsyncadd [#allocation13], %s89
      %s92 = sshll.u32 [#allocation12], 4
      %s93 = int_to_ptr.vmem [resolvable:$true] %s92
      %95 = dma.hbm_to_vmem [thread:$0]  %s6, 512, %s93, [#allocation13]
    $region29: #{tpu_custom_call.1} parent=1 // pred_fallthru
      _
    // Predicated region
    $region30: #{tpu_custom_call.1} parent=1 // pred_check
      _
    $region31: #{tpu_custom_call.1} parent=1 // pred_check_branch
      %97 = sbr.rel (0) target = $region33
    $region32: #{tpu_custom_call.1} parent=1 // pred_region
      _
    $region33: #{tpu_custom_call.1} parent=1 // pred_fallthru
      _
    // Predicated region
    $region34: #{tpu_custom_call.1} parent=1 // pred_check
      _
    $region35: #{tpu_custom_call.1} parent=1 // pred_check_branch
      %99 = sbr.rel (0) target = $region37
    $region36: #{tpu_custom_call.1} parent=1 // pred_region
      _
    $region37: #{tpu_custom_call.1} parent=1 // pred_fallthru
      _
    // Predicated region
    $region38: #{tpu_custom_call.1} parent=1 // pred_check
      _
    $region39: #{tpu_custom_call.1} parent=1 // pred_check_branch
      %101 = sbr.rel (0) target = $region41
    $region40: #{tpu_custom_call.1} parent=1 // pred_region
      _
    $region41: #{tpu_custom_call.1} parent=1 // pred_fallthru
      _
    // Predicated region
    $region42: #{tpu_custom_call.1} parent=1 // pred_check
      _
    $region43: #{tpu_custom_call.1} parent=1 // pred_check_branch
      %103 = sbr.rel (0) target = $region45
    $region44: #{tpu_custom_call.1} parent=1 // pred_region
      %s105 = ssub.s32 1024, 1024
      %106 = vsyncadd [#allocation13], %s105
      %s107 = sshll.u32 [#allocation14], 4
      %s108 = int_to_ptr.vmem [resolvable:$true] %s107
      %113 = dma.hbm_to_vmem [thread:$0]  %s10, 1024, %s108, [#allocation13], 64, 64, 4
    $region45: #{tpu_custom_call.1} parent=1 // pred_fallthru
      _
    // Predicated region
    $region46: #{tpu_custom_call.1} parent=1 // pred_check
      _
    $region47: #{tpu_custom_call.1} parent=1 // pred_check_branch
      %115 = sbr.rel (0) target = $region49
    $region48: #{tpu_custom_call.1} parent=1 // pred_region
      _
    $region49: #{tpu_custom_call.1} parent=1 // pred_fallthru
      _
    // Predicated region
    $region50: #{tpu_custom_call.1} parent=1 // pred_check
      _
    $region51: #{tpu_custom_call.1} parent=1 // pred_check_branch
      %117 = sbr.rel (0) target = $region53
    $region52: #{tpu_custom_call.1} parent=1 // pred_region
      _
    $region53: #{tpu_custom_call.1} parent=1 // pred_fallthru
      _
    // Predicated region
    $region54: #{tpu_custom_call.1} parent=1 // pred_check
      _
    $region55: #{tpu_custom_call.1} parent=1 // pred_check_branch
      %119 = sbr.rel (0) target = $region57
    $region56: #{tpu_custom_call.1} parent=1 // pred_region
      %s121 = ssub.s32 1024, 1024
      %122 = vsyncadd [#allocation16], %s121
      %s123 = sshll.u32 [#allocation15], 4
      %s124 = int_to_ptr.vmem [resolvable:$true] %s123
      %129 = dma.hbm_to_vmem [thread:$0]  %s13, 1024, %s124, [#allocation16], 64, 64, 4
    $region57: #{tpu_custom_call.1} parent=1 // pred_fallthru
      _
    // Predicated region
    $region58: #{tpu_custom_call.1} parent=1 // pred_check
      _
    $region59: #{tpu_custom_call.1} parent=1 // pred_check_branch
      %131 = sbr.rel (0) target = $region61
    $region60: #{tpu_custom_call.1} parent=1 // pred_region
      _
    $region61: #{tpu_custom_call.1} parent=1 // pred_fallthru
      _
    // Predicated region
    $region62: #{tpu_custom_call.1} parent=1 // pred_check
      _
    $region63: #{tpu_custom_call.1} parent=1 // pred_check_branch
      %133 = sbr.rel (0) target = $region65
    $region64: #{tpu_custom_call.1} parent=1 // pred_region
      %134 = dma.done [#allocation4], 512
    $region65: #{tpu_custom_call.1} parent=1 // pred_fallthru
      _
    // Predicated region
    $region66: #{tpu_custom_call.1} parent=1 // pred_check
      _
    $region67: #{tpu_custom_call.1} parent=1 // pred_check_branch
      %136 = sbr.rel (0) target = $region69
    $region68: #{tpu_custom_call.1} parent=1 // pred_region
      %137 = dma.done [#allocation7], 64
    $region69: #{tpu_custom_call.1} parent=1 // pred_fallthru
      _
    // Predicated region
    $region70: #{tpu_custom_call.1} parent=1 // pred_check
      _
    $region71: #{tpu_custom_call.1} parent=1 // pred_check_branch
      %139 = sbr.rel (0) target = $region73
    $region72: #{tpu_custom_call.1} parent=1 // pred_region
      %140 = dma.done [#allocation7], 4096
    $region73: #{tpu_custom_call.1} parent=1 // pred_fallthru
      _
    // Predicated region
    $region74: #{tpu_custom_call.1} parent=1 // pred_check
      _
    $region75: #{tpu_custom_call.1} parent=1 // pred_check_branch
      %142 = sbr.rel (0) target = $region77
    $region76: #{tpu_custom_call.1} parent=1 // pred_region
      %143 = dma.done [#allocation10], 4096
    $region77: #{tpu_custom_call.1} parent=1 // pred_fallthru
      _
    // Predicated region
    $region78: #{tpu_custom_call.1} parent=1 // pred_check
      _
    $region79: #{tpu_custom_call.1} parent=1 // pred_check_branch
      %145 = sbr.rel (0) target = $region81
    $region80: #{tpu_custom_call.1} parent=1 // pred_region
      %146 = dma.done [#allocation10], 4096
    $region81: #{tpu_custom_call.1} parent=1 // pred_fallthru
      _
    // Predicated region
    $region82: #{tpu_custom_call.1} parent=1 // pred_check
      _
    $region83: #{tpu_custom_call.1} parent=1 // pred_check_branch
      %148 = sbr.rel (0) target = $region85
    $region84: #{tpu_custom_call.1} parent=1 // pred_region
      %149 = dma.done [#allocation13], 512
    $region85: #{tpu_custom_call.1} parent=1 // pred_fallthru
      _
    // Predicated region
    $region86: #{tpu_custom_call.1} parent=1 // pred_check
      _
    $region87: #{tpu_custom_call.1} parent=1 // pred_check_branch
      %151 = sbr.rel (0) target = $region89
    $region88: #{tpu_custom_call.1} parent=1 // pred_region
      %152 = dma.done [#allocation13], 1024
    $region89: #{tpu_custom_call.1} parent=1 // pred_fallthru
      _
    // Predicated region
    $region90: #{tpu_custom_call.1} parent=1 // pred_check
      _
    $region91: #{tpu_custom_call.1} parent=1 // pred_check_branch
      %154 = sbr.rel (0) target = $region93
    $region92: #{tpu_custom_call.1} parent=1 // pred_region
      %155 = dma.done [#allocation16], 1024
    $region93: #{tpu_custom_call.1} parent=1 // pred_fallthru
      _
    %v157 = vld [vmem:[%s0] sm:$0xf]
    %v158 = vld [vmem:[%s0 + $0x4] sm:$0xf]
    %v159 = vld [vmem:[%s0 + $0x8] sm:$0xf]
    %v160 = vld [vmem:[%s0 + $0xc] sm:$0xf]
    %v161 = vld [vmem:[%s0 + $0x10] sm:$0xf]
    %v162 = vld [vmem:[%s0 + $0x14] sm:$0xf]
    %v163 = vld [vmem:[%s0 + $0x18] sm:$0xf]
    %v164 = vld [vmem:[%s0 + $0x1c] sm:$0xf]
    %v165 = vld [vmem:[#allocation3] sm:$0xff]
    %v166 = vld [vmem:[#allocation3 + $0x8] sm:$0xff]
    %v167 = vld [vmem:[#allocation3 + $0x10] sm:$0xff]
    %v168 = vld [vmem:[#allocation3 + $0x18] sm:$0xff]
    %v169 = vld [vmem:[#allocation6] sm:$0xf]
    %v171 = vlaneseq
    %v172 = vshrl.u32 %v171, 7
    %v173 = vsub.s32 0, %v172
    %v174 = vrot.slane %v169, %v173
    %v175 = vlaneseq
    %v176 = vshrl.u32 %v175, 7
    %v177 = vsub.s32 1, %v176
    %v178 = vrot.slane %v169, %v177
    %v179 = vlaneseq
    %v180 = vshrl.u32 %v179, 7
    %v181 = vsub.s32 2, %v180
    %v182 = vrot.slane %v169, %v181
    %v183 = vlaneseq
    %v184 = vshrl.u32 %v183, 7
    %v185 = vsub.s32 3, %v184
    %v186 = vrot.slane %v169, %v185
    %v199 = vunpack.c.l.b16 %v157
    %v200 = vunpack.c.l.b16 %v158
    %v201 = vunpack.c.l.b16 %v159
    %v202 = vunpack.c.l.b16 %v160
    %v203 = vunpack.c.l.b16 %v161
    %v204 = vunpack.c.l.b16 %v162
    %v205 = vunpack.c.l.b16 %v163
    %v206 = vunpack.c.l.b16 %v164
    %v207 = vpack.c.b16 %v200, %v199
    %v208 = vpack.c.b16 %v202, %v201
    %v209 = vpack.c.b16 %v204, %v203
    %v210 = vpack.c.b16 %v206, %v205
    %v215 = vunpack.c.l.b16 %v165
    %v216 = vunpack.c.h.b16 %v165
    %v217 = vunpack.c.l.b16 %v166
    %v218 = vunpack.c.h.b16 %v166
    %v219 = vunpack.c.l.b16 %v167
    %v220 = vunpack.c.h.b16 %v167
    %v221 = vunpack.c.l.b16 %v168
    %v222 = vunpack.c.h.b16 %v168
    %v223 = vpack.c.b16 %v219, %v215
    %v224 = vpack.c.b16 %v220, %v216
    %v225 = vpack.c.b16 %v221, %v217
    %v226 = vpack.c.b16 %v222, %v218
    %vm231 = vcmask 130048
    %v233 = vsel %vm231, %v207, 0
    %v236 = vsel %vm231, %v208, 0
    %v239 = vsel %vm231, %v209, 0
    %v242 = vsel %vm231, %v210, 0
    %244 = vmatprep.subr.bf16.mxu0 %v224
    %245 = vmatpush1.bf16.msra.mxu0 %v223
    %246 = vmatprep.subr.bf16.mxu0 0
    %247 = vmatpush1.bf16.msra.mxu0 0
    %248 = vmatprep.subr.bf16.mxu0 0
    %249 = vmatpush1.bf16.msra.mxu0 0
    %250 = vmatprep.subr.bf16.mxu0 0
    %251 = vmatpush1.bf16.msra.mxu0 0
    %252 = vmatprep.subr.bf16.mxu0 0
    %253 = vmatpush1.bf16.msra.mxu0 0
    %254 = vmatprep.subr.bf16.mxu0 0
    %255 = vmatpush1.bf16.msra.mxu0 0
    %256 = vmatprep.subr.bf16.mxu0 0
    %257 = vmatpush1.bf16.msra.mxu0 0
    %258 = vmatprep.subr.bf16.mxu0 0
    %259 = vmatpush1.bf16.msra.mxu0 0
    %260 = vmatprep.subr.bf16.mxu0 0
    %261 = vmatpush1.bf16.msra.mxu0 0
    %262 = vmatprep.subr.bf16.mxu0 0
    %263 = vmatpush1.bf16.msra.mxu0 0
    %264 = vmatprep.subr.bf16.mxu0 0
    %265 = vmatpush1.bf16.msra.mxu0 0
    %266 = vmatprep.subr.bf16.mxu0 0
    %267 = vmatpush1.bf16.msra.mxu0 0
    %268 = vmatprep.subr.bf16.mxu0 0
    %269 = vmatpush1.bf16.msra.mxu0 0
    %270 = vmatprep.subr.bf16.mxu0 0
    %271 = vmatpush1.bf16.msra.mxu0 0
    %272 = vmatprep.subr.bf16.mxu0 0
    %273 = vmatpush1.bf16.msra.mxu0 0
    %274 = vmatprep.subr.bf16.mxu0 0
    %275 = vmatpush1.bf16.msra.mxu0 0
    %276 = vmatprep.mubr.bf16.mxu0 0
    %277 = vmatmul.mubr.bf16.gmra.mrb[0].mxu0 %v233
    %v278 = vpop.f32.mrb[0].mxu0
    %v279 = vadd.f32 %v174, %v278
    %v280 = vpop.f32.mrb[0].mxu0
    %v281 = vadd.f32 %v178, %v280
    %v282 = vpop.f32.mrb[0].mxu0
    %v283 = vadd.f32 %v174, %v282
    %v284 = vpop.f32.mrb[0].mxu0
    %v285 = vadd.f32 %v178, %v284
    %286 = vmatprep.mubr.bf16.mxu0 0
    %287 = vmatmul.mubr.bf16.gmra.mrb[0].mxu0 %v236
    %v288 = vpop.f32.mrb[0].mxu0
    %v289 = vadd.f32 %v174, %v288
    %v290 = vpop.f32.mrb[0].mxu0
    %v291 = vadd.f32 %v178, %v290
    %v292 = vpop.f32.mrb[0].mxu0
    %v293 = vadd.f32 %v174, %v292
    %v294 = vpop.f32.mrb[0].mxu0
    %v295 = vadd.f32 %v178, %v294
    %296 = vmatprep.mubr.bf16.mxu0 0
    %297 = vmatmul.mubr.bf16.gmra.mrb[0].mxu0 %v239
    %v298 = vpop.f32.mrb[0].mxu0
    %v299 = vadd.f32 %v174, %v298
    %v300 = vpop.f32.mrb[0].mxu0
    %v301 = vadd.f32 %v178, %v300
    %v302 = vpop.f32.mrb[0].mxu0
    %v303 = vadd.f32 %v174, %v302
    %v304 = vpop.f32.mrb[0].mxu0
    %v305 = vadd.f32 %v178, %v304
    %306 = vmatprep.mubr.bf16.mxu0 0
    %307 = vmatmul.mubr.bf16.gmra.mrb[0].mxu0 %v242
    %v308 = vpop.f32.mrb[0].mxu0
    %v309 = vadd.f32 %v174, %v308
    %v310 = vpop.f32.mrb[0].mxu0
    %v311 = vadd.f32 %v178, %v310
    %v312 = vpop.f32.mrb[0].mxu0
    %v313 = vadd.f32 %v174, %v312
    %v314 = vpop.f32.mrb[0].mxu0
    %v315 = vadd.f32 %v178, %v314
    %316 = vdwg.mxu0
    %317 = vmatprep.subr.bf16.mxu0 %v226
    %318 = vmatpush1.bf16.msra.mxu0 %v225
    %319 = vmatprep.subr.bf16.mxu0 0
    %320 = vmatpush1.bf16.msra.mxu0 0
    %321 = vmatprep.subr.bf16.mxu0 0
    %322 = vmatpush1.bf16.msra.mxu0 0
    %323 = vmatprep.subr.bf16.mxu0 0
    %324 = vmatpush1.bf16.msra.mxu0 0
    %325 = vmatprep.subr.bf16.mxu0 0
    %326 = vmatpush1.bf16.msra.mxu0 0
    %327 = vmatprep.subr.bf16.mxu0 0
    %328 = vmatpush1.bf16.msra.mxu0 0
    %329 = vmatprep.subr.bf16.mxu0 0
    %330 = vmatpush1.bf16.msra.mxu0 0
    %331 = vmatprep.subr.bf16.mxu0 0
    %332 = vmatpush1.bf16.msra.mxu0 0
    %333 = vmatprep.subr.bf16.mxu0 0
    %334 = vmatpush1.bf16.msra.mxu0 0
    %335 = vmatprep.subr.bf16.mxu0 0
    %336 = vmatpush1.bf16.msra.mxu0 0
    %337 = vmatprep.subr.bf16.mxu0 0
    %338 = vmatpush1.bf16.msra.mxu0 0
    %339 = vmatprep.subr.bf16.mxu0 0
    %340 = vmatpush1.bf16.msra.mxu0 0
    %341 = vmatprep.subr.bf16.mxu0 0
    %342 = vmatpush1.bf16.msra.mxu0 0
    %343 = vmatprep.subr.bf16.mxu0 0
    %344 = vmatpush1.bf16.msra.mxu0 0
    %345 = vmatprep.subr.bf16.mxu0 0
    %346 = vmatpush1.bf16.msra.mxu0 0
    %347 = vmatprep.subr.bf16.mxu0 0
    %348 = vmatpush1.bf16.msra.mxu0 0
    %349 = vmatprep.mubr.bf16.mxu0 0
    %350 = vmatmul.mubr.bf16.gmra.mrb[0].mxu0 %v233
    %v351 = vpop.f32.mrb[0].mxu0
    %v352 = vadd.f32 %v182, %v351
    %v353 = vpop.f32.mrb[0].mxu0
    %v354 = vadd.f32 %v186, %v353
    %v355 = vpop.f32.mrb[0].mxu0
    %v356 = vadd.f32 %v182, %v355
    %v357 = vpop.f32.mrb[0].mxu0
    %v358 = vadd.f32 %v186, %v357
    %359 = vmatprep.mubr.bf16.mxu0 0
    %360 = vmatmul.mubr.bf16.gmra.mrb[0].mxu0 %v236
    %v361 = vpop.f32.mrb[0].mxu0
    %v362 = vadd.f32 %v182, %v361
    %v363 = vpop.f32.mrb[0].mxu0
    %v364 = vadd.f32 %v186, %v363
    %v365 = vpop.f32.mrb[0].mxu0
    %v366 = vadd.f32 %v182, %v365
    %v367 = vpop.f32.mrb[0].mxu0
    %v368 = vadd.f32 %v186, %v367
    %369 = vmatprep.mubr.bf16.mxu0 0
    %370 = vmatmul.mubr.bf16.gmra.mrb[0].mxu0 %v239
    %v371 = vpop.f32.mrb[0].mxu0
    %v372 = vadd.f32 %v182, %v371
    %v373 = vpop.f32.mrb[0].mxu0
    %v374 = vadd.f32 %v186, %v373
    %v375 = vpop.f32.mrb[0].mxu0
    %v376 = vadd.f32 %v182, %v375
    %v377 = vpop.f32.mrb[0].mxu0
    %v378 = vadd.f32 %v186, %v377
    %379 = vmatprep.mubr.bf16.mxu0 0
    %380 = vmatmul.mubr.bf16.gmra.mrb[0].mxu0 %v242
    %v381 = vpop.f32.mrb[0].mxu0
    %v382 = vadd.f32 %v182, %v381
    %v383 = vpop.f32.mrb[0].mxu0
    %v384 = vadd.f32 %v186, %v383
    %v385 = vpop.f32.mrb[0].mxu0
    %v386 = vadd.f32 %v182, %v385
    %v387 = vpop.f32.mrb[0].mxu0
    %v388 = vadd.f32 %v186, %v387
    %389 = vdwg.mxu0
    %390 = vst [vmem:[#allocation2] sm:$0xff] %v279
    %391 = vst [vmem:[#allocation2 + $0x8] sm:$0xff] %v281
    %392 = vst [vmem:[#allocation2 + $0x10] sm:$0xff] %v352
    %393 = vst [vmem:[#allocation2 + $0x18] sm:$0xff] %v354
    %394 = vst [vmem:[#allocation2 + $0x20] sm:$0xff] %v283
    %395 = vst [vmem:[#allocation2 + $0x28] sm:$0xff] %v285
    %396 = vst [vmem:[#allocation2 + $0x30] sm:$0xff] %v356
    %397 = vst [vmem:[#allocation2 + $0x38] sm:$0xff] %v358
    %398 = vst [vmem:[#allocation2 + $0x40] sm:$0xff] %v289
    %399 = vst [vmem:[#allocation2 + $0x48] sm:$0xff] %v291
    %400 = vst [vmem:[#allocation2 + $0x50] sm:$0xff] %v362
    %401 = vst [vmem:[#allocation2 + $0x58] sm:$0xff] %v364
    %402 = vst [vmem:[#allocation2 + $0x60] sm:$0xff] %v293
    %403 = vst [vmem:[#allocation2 + $0x68] sm:$0xff] %v295
    %404 = vst [vmem:[#allocation2 + $0x70] sm:$0xff] %v366
    %405 = vst [vmem:[#allocation2 + $0x78] sm:$0xff] %v368
    %406 = vst [vmem:[#allocation2 + $0x80] sm:$0xff] %v299
    %407 = vst [vmem:[#allocation2 + $0x88] sm:$0xff] %v301
    %408 = vst [vmem:[#allocation2 + $0x90] sm:$0xff] %v372
    %409 = vst [vmem:[#allocation2 + $0x98] sm:$0xff] %v374
    %410 = vst [vmem:[#allocation2 + $0xa0] sm:$0xff] %v303
    %411 = vst [vmem:[#allocation2 + $0xa8] sm:$0xff] %v305
    %412 = vst [vmem:[#allocation2 + $0xb0] sm:$0xff] %v376
    %413 = vst [vmem:[#allocation2 + $0xb8] sm:$0xff] %v378
    %414 = vst [vmem:[#allocation2 + $0xc0] sm:$0xff] %v309
    %415 = vst [vmem:[#allocation2 + $0xc8] sm:$0xff] %v311
    %416 = vst [vmem:[#allocation2 + $0xd0] sm:$0xff] %v382
    %417 = vst [vmem:[#allocation2 + $0xd8] sm:$0xff] %v384
    %418 = vst [vmem:[#allocation2 + $0xe0] sm:$0xff] %v313
    %419 = vst [vmem:[#allocation2 + $0xe8] sm:$0xff] %v315
    %420 = vst [vmem:[#allocation2 + $0xf0] sm:$0xff] %v386
    %421 = vst [vmem:[#allocation2 + $0xf8] sm:$0xff] %v388
    %v422 = vld [vmem:[#allocation8] sm:$0xff]
    %v423 = vld [vmem:[#allocation8 + $0x8] sm:$0xff]
    %v424 = vld [vmem:[#allocation8 + $0x10] sm:$0xff]
    %v425 = vld [vmem:[#allocation8 + $0x18] sm:$0xff]
    %v426 = vld [vmem:[#allocation8 + $0x20] sm:$0xff]
    %v427 = vld [vmem:[#allocation8 + $0x28] sm:$0xff]
    %v428 = vld [vmem:[#allocation8 + $0x30] sm:$0xff]
    %v429 = vld [vmem:[#allocation8 + $0x38] sm:$0xff]
    %v430 = vld [vmem:[#allocation8 + $0x40] sm:$0xff]
    %v431 = vld [vmem:[#allocation8 + $0x48] sm:$0xff]
    %v432 = vld [vmem:[#allocation8 + $0x50] sm:$0xff]
    %v433 = vld [vmem:[#allocation8 + $0x58] sm:$0xff]
    %v434 = vld [vmem:[#allocation8 + $0x60] sm:$0xff]
    %v435 = vld [vmem:[#allocation8 + $0x68] sm:$0xff]
    %v436 = vld [vmem:[#allocation8 + $0x70] sm:$0xff]
    %v437 = vld [vmem:[#allocation8 + $0x78] sm:$0xff]
    %v438 = vld [vmem:[#allocation8 + $0x80] sm:$0xff]
    %v439 = vld [vmem:[#allocation8 + $0x88] sm:$0xff]
    %v440 = vld [vmem:[#allocation8 + $0x90] sm:$0xff]
    %v441 = vld [vmem:[#allocation8 + $0x98] sm:$0xff]
    %v442 = vld [vmem:[#allocation8 + $0xa0] sm:$0xff]
    %v443 = vld [vmem:[#allocation8 + $0xa8] sm:$0xff]
    %v444 = vld [vmem:[#allocation8 + $0xb0] sm:$0xff]
    %v445 = vld [vmem:[#allocation8 + $0xb8] sm:$0xff]
    %v446 = vld [vmem:[#allocation8 + $0xc0] sm:$0xff]
    %v447 = vld [vmem:[#allocation8 + $0xc8] sm:$0xff]
    %v448 = vld [vmem:[#allocation8 + $0xd0] sm:$0xff]
    %v449 = vld [vmem:[#allocation8 + $0xd8] sm:$0xff]
    %v450 = vld [vmem:[#allocation8 + $0xe0] sm:$0xff]
    %v451 = vld [vmem:[#allocation8 + $0xe8] sm:$0xff]
    %v452 = vld [vmem:[#allocation8 + $0xf0] sm:$0xff]
    %v453 = vld [vmem:[#allocation8 + $0xf8] sm:$0xff]
    %v486 = vunpack.c.l.b16 %v422
    %v487 = vunpack.c.h.b16 %v422
    %v488 = vunpack.c.l.b16 %v423
    %v489 = vunpack.c.h.b16 %v423
    %v490 = vunpack.c.l.b16 %v424
    %v491 = vunpack.c.h.b16 %v424
    %v492 = vunpack.c.l.b16 %v425
    %v493 = vunpack.c.h.b16 %v425
    %v494 = vunpack.c.l.b16 %v426
    %v495 = vunpack.c.h.b16 %v426
    %v496 = vunpack.c.l.b16 %v427
    %v497 = vunpack.c.h.b16 %v427
    %v498 = vunpack.c.l.b16 %v428
    %v499 = vunpack.c.h.b16 %v428
    %v500 = vunpack.c.l.b16 %v429
    %v501 = vunpack.c.h.b16 %v429
    %v502 = vunpack.c.l.b16 %v430
    %v503 = vunpack.c.h.b16 %v430
    %v504 = vunpack.c.l.b16 %v431
    %v505 = vunpack.c.h.b16 %v431
    %v506 = vunpack.c.l.b16 %v432
    %v507 = vunpack.c.h.b16 %v432
    %v508 = vunpack.c.l.b16 %v433
    %v509 = vunpack.c.h.b16 %v433
    %v510 = vunpack.c.l.b16 %v434
    %v511 = vunpack.c.h.b16 %v434
    %v512 = vunpack.c.l.b16 %v435
    %v513 = vunpack.c.h.b16 %v435
    %v514 = vunpack.c.l.b16 %v436
    %v515 = vunpack.c.h.b16 %v436
    %v516 = vunpack.c.l.b16 %v437
    %v517 = vunpack.c.h.b16 %v437
    %v518 = vunpack.c.l.b16 %v438
    %v519 = vunpack.c.h.b16 %v438
    %v520 = vunpack.c.l.b16 %v439
    %v521 = vunpack.c.h.b16 %v439
    %v522 = vunpack.c.l.b16 %v440
    %v523 = vunpack.c.h.b16 %v440
    %v524 = vunpack.c.l.b16 %v441
    %v525 = vunpack.c.h.b16 %v441
    %v526 = vunpack.c.l.b16 %v442
    %v527 = vunpack.c.h.b16 %v442
    %v528 = vunpack.c.l.b16 %v443
    %v529 = vunpack.c.h.b16 %v443
    %v530 = vunpack.c.l.b16 %v444
    %v531 = vunpack.c.h.b16 %v444
    %v532 = vunpack.c.l.b16 %v445
    %v533 = vunpack.c.h.b16 %v445
    %v534 = vunpack.c.l.b16 %v446
    %v535 = vunpack.c.h.b16 %v446
    %v536 = vunpack.c.l.b16 %v447
    %v537 = vunpack.c.h.b16 %v447
    %v538 = vunpack.c.l.b16 %v448
    %v539 = vunpack.c.h.b16 %v448
    %v540 = vunpack.c.l.b16 %v449
    %v541 = vunpack.c.h.b16 %v449
    %v542 = vunpack.c.l.b16 %v450
    %v543 = vunpack.c.h.b16 %v450
    %v544 = vunpack.c.l.b16 %v451
    %v545 = vunpack.c.h.b16 %v451
    %v546 = vunpack.c.l.b16 %v452
    %v547 = vunpack.c.h.b16 %v452
    %v548 = vunpack.c.l.b16 %v453
    %v549 = vunpack.c.h.b16 %v453
    %v550 = vpack.c.b16 %v490, %v486
    %v551 = vpack.c.b16 %v491, %v487
    %v552 = vpack.c.b16 %v492, %v488
    %v553 = vpack.c.b16 %v493, %v489
    %v554 = vpack.c.b16 %v498, %v494
    %v555 = vpack.c.b16 %v499, %v495
    %v556 = vpack.c.b16 %v500, %v496
    %v557 = vpack.c.b16 %v501, %v497
    %v558 = vpack.c.b16 %v506, %v502
    %v559 = vpack.c.b16 %v507, %v503
    %v560 = vpack.c.b16 %v508, %v504
    %v561 = vpack.c.b16 %v509, %v505
    %v562 = vpack.c.b16 %v514, %v510
    %v563 = vpack.c.b16 %v515, %v511
    %v564 = vpack.c.b16 %v516, %v512
    %v565 = vpack.c.b16 %v517, %v513
    %v566 = vpack.c.b16 %v522, %v518
    %v567 = vpack.c.b16 %v523, %v519
    %v568 = vpack.c.b16 %v524, %v520
    %v569 = vpack.c.b16 %v525, %v521
    %v570 = vpack.c.b16 %v530, %v526
    %v571 = vpack.c.b16 %v531, %v527
    %v572 = vpack.c.b16 %v532, %v528
    %v573 = vpack.c.b16 %v533, %v529
    %v574 = vpack.c.b16 %v538, %v534
    %v575 = vpack.c.b16 %v539, %v535
    %v576 = vpack.c.b16 %v540, %v536
    %v577 = vpack.c.b16 %v541, %v537
    %v578 = vpack.c.b16 %v546, %v542
    %v579 = vpack.c.b16 %v547, %v543
    %v580 = vpack.c.b16 %v548, %v544
    %v581 = vpack.c.b16 %v549, %v545
    %614 = vmatprep.subr.bf16.mxu0 %v551
    %615 = vmatpush1.bf16.msra.mxu0 %v550
    %616 = vmatprep.subr.bf16.mxu0 %v555
    %617 = vmatpush1.bf16.msra.mxu0 %v554
    %618 = vmatprep.subr.bf16.mxu0 %v559
    %619 = vmatpush1.bf16.msra.mxu0 %v558
    %620 = vmatprep.subr.bf16.mxu0 %v563
    %621 = vmatpush1.bf16.msra.mxu0 %v562
    %622 = vmatprep.subr.bf16.mxu0 %v567
    %623 = vmatpush1.bf16.msra.mxu0 %v566
    %624 = vmatprep.subr.bf16.mxu0 %v571
    %625 = vmatpush1.bf16.msra.mxu0 %v570
    %626 = vmatprep.subr.bf16.mxu0 %v575
    %627 = vmatpush1.bf16.msra.mxu0 %v574
    %628 = vmatprep.subr.bf16.mxu0 %v579
    %629 = vmatpush1.bf16.msra.mxu0 %v578
    %630 = vmatprep.subr.bf16.mxu0 0
    %631 = vmatpush1.bf16.msra.mxu0 0
    %632 = vmatprep.subr.bf16.mxu0 0
    %633 = vmatpush1.bf16.msra.mxu0 0
    %634 = vmatprep.subr.bf16.mxu0 0
    %635 = vmatpush1.bf16.msra.mxu0 0
    %636 = vmatprep.subr.bf16.mxu0 0
    %637 = vmatpush1.bf16.msra.mxu0 0
    %638 = vmatprep.subr.bf16.mxu0 0
    %639 = vmatpush1.bf16.msra.mxu0 0
    %640 = vmatprep.subr.bf16.mxu0 0
    %641 = vmatpush1.bf16.msra.mxu0 0
    %642 = vmatprep.subr.bf16.mxu0 0
    %643 = vmatpush1.bf16.msra.mxu0 0
    %644 = vmatprep.subr.bf16.mxu0 0
    %645 = vmatpush1.bf16.msra.mxu0 0
    %646 = vmatprep.mubr.bf16.mxu0 0
    %647 = vmatmul.mubr.bf16.gmra.mrb[0].mxu0 0
    %v648 = vpop.f32.mrb[0].mxu0
    %v649 = vadd.f32 0.0, %v648
    %v650 = vpop.f32.mrb[0].mxu0
    %v651 = vadd.f32 0.0, %v650
    %v652 = vpop.f32.mrb[0].mxu0
    %v653 = vpop.f32.mrb[0].mxu0
    %654 = vdwg.mxu0
    %655 = vmatprep.subr.bf16.mxu0 %v553
    %656 = vmatpush1.bf16.msra.mxu0 %v552
    %657 = vmatprep.subr.bf16.mxu0 %v557
    %658 = vmatpush1.bf16.msra.mxu0 %v556
    %659 = vmatprep.subr.bf16.mxu0 %v561
    %660 = vmatpush1.bf16.msra.mxu0 %v560
    %661 = vmatprep.subr.bf16.mxu0 %v565
    %662 = vmatpush1.bf16.msra.mxu0 %v564
    %663 = vmatprep.subr.bf16.mxu0 %v569
    %664 = vmatpush1.bf16.msra.mxu0 %v568
    %665 = vmatprep.subr.bf16.mxu0 %v573
    %666 = vmatpush1.bf16.msra.mxu0 %v572
    %667 = vmatprep.subr.bf16.mxu0 %v577
    %668 = vmatpush1.bf16.msra.mxu0 %v576
    %669 = vmatprep.subr.bf16.mxu0 %v581
    %670 = vmatpush1.bf16.msra.mxu0 %v580
    %671 = vmatprep.subr.bf16.mxu0 0
    %672 = vmatpush1.bf16.msra.mxu0 0
    %673 = vmatprep.subr.bf16.mxu0 0
    %674 = vmatpush1.bf16.msra.mxu0 0
    %675 = vmatprep.subr.bf16.mxu0 0
    %676 = vmatpush1.bf16.msra.mxu0 0
    %677 = vmatprep.subr.bf16.mxu0 0
    %678 = vmatpush1.bf16.msra.mxu0 0
    %679 = vmatprep.subr.bf16.mxu0 0
    %680 = vmatpush1.bf16.msra.mxu0 0
    %681 = vmatprep.subr.bf16.mxu0 0
    %682 = vmatpush1.bf16.msra.mxu0 0
    %683 = vmatprep.subr.bf16.mxu0 0
    %684 = vmatpush1.bf16.msra.mxu0 0
    %685 = vmatprep.subr.bf16.mxu0 0
    %686 = vmatpush1.bf16.msra.mxu0 0
    %687 = vmatprep.mubr.bf16.mxu0 0
    %688 = vmatmul.mubr.bf16.gmra.mrb[0].mxu0 0
    %v689 = vpop.f32.mrb[0].mxu0
    %v690 = vadd.f32 0.0, %v689
    %v691 = vpop.f32.mrb[0].mxu0
    %v692 = vadd.f32 0.0, %v691
    %v693 = vpop.f32.mrb[0].mxu0
    %v694 = vpop.f32.mrb[0].mxu0
    %695 = vdwg.mxu0
    %v696 = vld [vmem:[#allocation11] sm:$0xff]
    %v697 = vld [vmem:[#allocation11 + $0x8] sm:$0xff]
    %v698 = vld [vmem:[#allocation11 + $0x10] sm:$0xff]
    %v699 = vld [vmem:[#allocation11 + $0x18] sm:$0xff]
    %v700 = vld [vmem:[#allocation11 + $0x20] sm:$0xff]
    %v701 = vld [vmem:[#allocation11 + $0x28] sm:$0xff]
    %v702 = vld [vmem:[#allocation11 + $0x30] sm:$0xff]
    %v703 = vld [vmem:[#allocation11 + $0x38] sm:$0xff]
    %v704 = vld [vmem:[#allocation11 + $0x40] sm:$0xff]
    %v705 = vld [vmem:[#allocation11 + $0x48] sm:$0xff]
    %v706 = vld [vmem:[#allocation11 + $0x50] sm:$0xff]
    %v707 = vld [vmem:[#allocation11 + $0x58] sm:$0xff]
    %v708 = vld [vmem:[#allocation11 + $0x60] sm:$0xff]
    %v709 = vld [vmem:[#allocation11 + $0x68] sm:$0xff]
    %v710 = vld [vmem:[#allocation11 + $0x70] sm:$0xff]
    %v711 = vld [vmem:[#allocation11 + $0x78] sm:$0xff]
    %v712 = vld [vmem:[#allocation11 + $0x80] sm:$0xff]
    %v713 = vld [vmem:[#allocation11 + $0x88] sm:$0xff]
    %v714 = vld [vmem:[#allocation11 + $0x90] sm:$0xff]
    %v715 = vld [vmem:[#allocation11 + $0x98] sm:$0xff]
    %v716 = vld [vmem:[#allocation11 + $0xa0] sm:$0xff]
    %v717 = vld [vmem:[#allocation11 + $0xa8] sm:$0xff]
    %v718 = vld [vmem:[#allocation11 + $0xb0] sm:$0xff]
    %v719 = vld [vmem:[#allocation11 + $0xb8] sm:$0xff]
    %v720 = vld [vmem:[#allocation11 + $0xc0] sm:$0xff]
    %v721 = vld [vmem:[#allocation11 + $0xc8] sm:$0xff]
    %v722 = vld [vmem:[#allocation11 + $0xd0] sm:$0xff]
    %v723 = vld [vmem:[#allocation11 + $0xd8] sm:$0xff]
    %v724 = vld [vmem:[#allocation11 + $0xe0] sm:$0xff]
    %v725 = vld [vmem:[#allocation11 + $0xe8] sm:$0xff]
    %v726 = vld [vmem:[#allocation11 + $0xf0] sm:$0xff]
    %v727 = vld [vmem:[#allocation11 + $0xf8] sm:$0xff]
    %v728 = vld [vmem:[#allocation12] sm:$0xff]
    %v729 = vld [vmem:[#allocation12 + $0x8] sm:$0xff]
    %v730 = vld [vmem:[#allocation12 + $0x10] sm:$0xff]
    %v731 = vld [vmem:[#allocation12 + $0x18] sm:$0xff]
    %v764 = vunpack.c.l.b16 %v696
    %v765 = vunpack.c.h.b16 %v696
    %v766 = vunpack.c.l.b16 %v697
    %v767 = vunpack.c.h.b16 %v697
    %v768 = vunpack.c.l.b16 %v698
    %v769 = vunpack.c.h.b16 %v698
    %v770 = vunpack.c.l.b16 %v699
    %v771 = vunpack.c.h.b16 %v699
    %v772 = vunpack.c.l.b16 %v700
    %v773 = vunpack.c.h.b16 %v700
    %v774 = vunpack.c.l.b16 %v701
    %v775 = vunpack.c.h.b16 %v701
    %v776 = vunpack.c.l.b16 %v702
    %v777 = vunpack.c.h.b16 %v702
    %v778 = vunpack.c.l.b16 %v703
    %v779 = vunpack.c.h.b16 %v703
    %v780 = vunpack.c.l.b16 %v704
    %v781 = vunpack.c.h.b16 %v704
    %v782 = vunpack.c.l.b16 %v705
    %v783 = vunpack.c.h.b16 %v705
    %v784 = vunpack.c.l.b16 %v706
    %v785 = vunpack.c.h.b16 %v706
    %v786 = vunpack.c.l.b16 %v707
    %v787 = vunpack.c.h.b16 %v707
    %v788 = vunpack.c.l.b16 %v708
    %v789 = vunpack.c.h.b16 %v708
    %v790 = vunpack.c.l.b16 %v709
    %v791 = vunpack.c.h.b16 %v709
    %v792 = vunpack.c.l.b16 %v710
    %v793 = vunpack.c.h.b16 %v710
    %v794 = vunpack.c.l.b16 %v711
    %v795 = vunpack.c.h.b16 %v711
    %v796 = vunpack.c.l.b16 %v712
    %v797 = vunpack.c.h.b16 %v712
    %v798 = vunpack.c.l.b16 %v713
    %v799 = vunpack.c.h.b16 %v713
    %v800 = vunpack.c.l.b16 %v714
    %v801 = vunpack.c.h.b16 %v714
    %v802 = vunpack.c.l.b16 %v715
    %v803 = vunpack.c.h.b16 %v715
    %v804 = vunpack.c.l.b16 %v716
    %v805 = vunpack.c.h.b16 %v716
    %v806 = vunpack.c.l.b16 %v717
    %v807 = vunpack.c.h.b16 %v717
    %v808 = vunpack.c.l.b16 %v718
    %v809 = vunpack.c.h.b16 %v718
    %v810 = vunpack.c.l.b16 %v719
    %v811 = vunpack.c.h.b16 %v719
    %v812 = vunpack.c.l.b16 %v720
    %v813 = vunpack.c.h.b16 %v720
    %v814 = vunpack.c.l.b16 %v721
    %v815 = vunpack.c.h.b16 %v721
    %v816 = vunpack.c.l.b16 %v722
    %v817 = vunpack.c.h.b16 %v722
    %v818 = vunpack.c.l.b16 %v723
    %v819 = vunpack.c.h.b16 %v723
    %v820 = vunpack.c.l.b16 %v724
    %v821 = vunpack.c.h.b16 %v724
    %v822 = vunpack.c.l.b16 %v725
    %v823 = vunpack.c.h.b16 %v725
    %v824 = vunpack.c.l.b16 %v726
    %v825 = vunpack.c.h.b16 %v726
    %v826 = vunpack.c.l.b16 %v727
    %v827 = vunpack.c.h.b16 %v727
    %v828 = vpack.c.b16 %v768, %v764
    %v829 = vpack.c.b16 %v769, %v765
    %v830 = vpack.c.b16 %v770, %v766
    %v831 = vpack.c.b16 %v771, %v767
    %v832 = vpack.c.b16 %v776, %v772
    %v833 = vpack.c.b16 %v777, %v773
    %v834 = vpack.c.b16 %v778, %v774
    %v835 = vpack.c.b16 %v779, %v775
    %v836 = vpack.c.b16 %v784, %v780
    %v837 = vpack.c.b16 %v785, %v781
    %v838 = vpack.c.b16 %v786, %v782
    %v839 = vpack.c.b16 %v787, %v783
    %v840 = vpack.c.b16 %v792, %v788
    %v841 = vpack.c.b16 %v793, %v789
    %v842 = vpack.c.b16 %v794, %v790
    %v843 = vpack.c.b16 %v795, %v791
    %v844 = vpack.c.b16 %v800, %v796
    %v845 = vpack.c.b16 %v801, %v797
    %v846 = vpack.c.b16 %v802, %v798
    %v847 = vpack.c.b16 %v803, %v799
    %v848 = vpack.c.b16 %v808, %v804
    %v849 = vpack.c.b16 %v809, %v805
    %v850 = vpack.c.b16 %v810, %v806
    %v851 = vpack.c.b16 %v811, %v807
    %v852 = vpack.c.b16 %v816, %v812
    %v853 = vpack.c.b16 %v817, %v813
    %v854 = vpack.c.b16 %v818, %v814
    %v855 = vpack.c.b16 %v819, %v815
    %v856 = vpack.c.b16 %v824, %v820
    %v857 = vpack.c.b16 %v825, %v821
    %v858 = vpack.c.b16 %v826, %v822
    %v859 = vpack.c.b16 %v827, %v823
    %892 = vmatprep.subr.bf16.mxu0 %v829
    %893 = vmatpush1.bf16.msra.mxu0 %v828
    %894 = vmatprep.subr.bf16.mxu0 %v833
    %895 = vmatpush1.bf16.msra.mxu0 %v832
    %896 = vmatprep.subr.bf16.mxu0 %v837
    %897 = vmatpush1.bf16.msra.mxu0 %v836
    %898 = vmatprep.subr.bf16.mxu0 %v841
    %899 = vmatpush1.bf16.msra.mxu0 %v840
    %900 = vmatprep.subr.bf16.mxu0 %v845
    %901 = vmatpush1.bf16.msra.mxu0 %v844
    %902 = vmatprep.subr.bf16.mxu0 %v849
    %903 = vmatpush1.bf16.msra.mxu0 %v848
    %904 = vmatprep.subr.bf16.mxu0 %v853
    %905 = vmatpush1.bf16.msra.mxu0 %v852
    %906 = vmatprep.subr.bf16.mxu0 %v857
    %907 = vmatpush1.bf16.msra.mxu0 %v856
    %908 = vmatprep.subr.bf16.mxu0 0
    %909 = vmatpush1.bf16.msra.mxu0 0
    %910 = vmatprep.subr.bf16.mxu0 0
    %911 = vmatpush1.bf16.msra.mxu0 0
    %912 = vmatprep.subr.bf16.mxu0 0
    %913 = vmatpush1.bf16.msra.mxu0 0
    %914 = vmatprep.subr.bf16.mxu0 0
    %915 = vmatpush1.bf16.msra.mxu0 0
    %916 = vmatprep.subr.bf16.mxu0 0
    %917 = vmatpush1.bf16.msra.mxu0 0
    %918 = vmatprep.subr.bf16.mxu0 0
    %919 = vmatpush1.bf16.msra.mxu0 0
    %920 = vmatprep.subr.bf16.mxu0 0
    %921 = vmatpush1.bf16.msra.mxu0 0
    %922 = vmatprep.subr.bf16.mxu0 0
    %923 = vmatpush1.bf16.msra.mxu0 0
    %924 = vmatprep.mubr.bf16.mxu0 0
    %925 = vmatmul.mubr.bf16.gmra.mrb[0].mxu0 0
    %v926 = vpop.f32.mrb[0].mxu0
    %v927 = vadd.f32 %v728, %v926
    %v928 = vpop.f32.mrb[0].mxu0
    %v929 = vadd.f32 %v729, %v928
    %v930 = vpop.f32.mrb[0].mxu0
    %v931 = vpop.f32.mrb[0].mxu0
    %932 = vdwg.mxu0
    %933 = vmatprep.subr.bf16.mxu0 %v831
    %934 = vmatpush1.bf16.msra.mxu0 %v830
    %935 = vmatprep.subr.bf16.mxu0 %v835
    %936 = vmatpush1.bf16.msra.mxu0 %v834
    %937 = vmatprep.subr.bf16.mxu0 %v839
    %938 = vmatpush1.bf16.msra.mxu0 %v838
    %939 = vmatprep.subr.bf16.mxu0 %v843
    %940 = vmatpush1.bf16.msra.mxu0 %v842
    %941 = vmatprep.subr.bf16.mxu0 %v847
    %942 = vmatpush1.bf16.msra.mxu0 %v846
    %943 = vmatprep.subr.bf16.mxu0 %v851
    %944 = vmatpush1.bf16.msra.mxu0 %v850
    %945 = vmatprep.subr.bf16.mxu0 %v855
    %946 = vmatpush1.bf16.msra.mxu0 %v854
    %947 = vmatprep.subr.bf16.mxu0 %v859
    %948 = vmatpush1.bf16.msra.mxu0 %v858
    %949 = vmatprep.subr.bf16.mxu0 0
    %950 = vmatpush1.bf16.msra.mxu0 0
    %951 = vmatprep.subr.bf16.mxu0 0
    %952 = vmatpush1.bf16.msra.mxu0 0
    %953 = vmatprep.subr.bf16.mxu0 0
    %954 = vmatpush1.bf16.msra.mxu0 0
    %955 = vmatprep.subr.bf16.mxu0 0
    %956 = vmatpush1.bf16.msra.mxu0 0
    %957 = vmatprep.subr.bf16.mxu0 0
    %958 = vmatpush1.bf16.msra.mxu0 0
    %959 = vmatprep.subr.bf16.mxu0 0
    %960 = vmatpush1.bf16.msra.mxu0 0
    %961 = vmatprep.subr.bf16.mxu0 0
    %962 = vmatpush1.bf16.msra.mxu0 0
    %963 = vmatprep.subr.bf16.mxu0 0
    %964 = vmatpush1.bf16.msra.mxu0 0
    %965 = vmatprep.mubr.bf16.mxu0 0
    %966 = vmatmul.mubr.bf16.gmra.mrb[0].mxu0 0
    %v967 = vpop.f32.mrb[0].mxu0
    %v968 = vadd.f32 %v730, %v967
    %v969 = vpop.f32.mrb[0].mxu0
    %v970 = vadd.f32 %v731, %v969
    %v971 = vpop.f32.mrb[0].mxu0
    %v972 = vpop.f32.mrb[0].mxu0
    %973 = vdwg.mxu0
    %s974 = smul.u32 0, 4
    %s975 = smul.addr %s974, 8
    %s976 = scalar_lea.vmem [#allocation2], %s975
    %v977 = vld [vmem:[%s976] sm:$0xff]
    %v978 = vld [vmem:[%s976 + $0x8] sm:$0xff]
    %v979 = vld [vmem:[%s976 + $0x10] sm:$0xff]
    %v980 = vld [vmem:[%s976 + $0x18] sm:$0xff]
    %v981 = vadd.f32 %v977, %v649
    %v982 = vadd.f32 %v978, %v651
    %v983 = vadd.f32 %v979, %v690
    %v984 = vadd.f32 %v980, %v692
    %v985 = vxor.u32 %v981, 2147483648
    %v986 = vxor.u32 %v982, 2147483648
    %v987 = vxor.u32 %v983, 2147483648
    %v988 = vmul.f32 %v985, 1.442695
    %v989 = vpow.pop %v988
    %v990 = vmul.f32 %v986, 1.442695
    %v991 = vpow.pop %v990
    %v992 = vmul.f32 %v987, 1.442695
    %v993 = vpow.pop %v992
    %v994 = vadd.f32 %v989, 1.0
    %v995 = vadd.f32 %v991, 1.0
    %v996 = vadd.f32 %v993, 1.0
    %v997 = vrcp.pop %v994
    %v998 = vmul.f32 1.0, %v997
    %v999 = vrcp.pop %v995
    %v1000 = vmul.f32 1.0, %v999
    %v1001 = vrcp.pop %v996
    %v1002 = vmul.f32 1.0, %v1001
    %v1003 = vtanh.pop %v984
    %v1004 = vmul.f32 %v1000, 0.0
    %v1005 = vmul.f32 %v998, %v1003
    %v1006 = vadd.f32 %v1004, %v1005
    %v1007 = vtanh.pop %v1006
    %v1008 = vmul.f32 %v1002, %v1007
    %v1009 = vpack.c.bf16 %v1008, %v1008
    %v1010 = vld [vmem:[#allocation9] sm:$0xff]
    %v1011 = vld [vmem:[#allocation9 + $0x8] sm:$0xff]
    %v1012 = vld [vmem:[#allocation9 + $0x10] sm:$0xff]
    %v1013 = vld [vmem:[#allocation9 + $0x18] sm:$0xff]
    %v1014 = vld [vmem:[#allocation9 + $0x20] sm:$0xff]
    %v1015 = vld [vmem:[#allocation9 + $0x28] sm:$0xff]
    %v1016 = vld [vmem:[#allocation9 + $0x30] sm:$0xff]
    %v1017 = vld [vmem:[#allocation9 + $0x38] sm:$0xff]
    %v1018 = vld [vmem:[#allocation9 + $0x40] sm:$0xff]
    %v1019 = vld [vmem:[#allocation9 + $0x48] sm:$0xff]
    %v1020 = vld [vmem:[#allocation9 + $0x50] sm:$0xff]
    %v1021 = vld [vmem:[#allocation9 + $0x58] sm:$0xff]
    %v1022 = vld [vmem:[#allocation9 + $0x60] sm:$0xff]
    %v1023 = vld [vmem:[#allocation9 + $0x68] sm:$0xff]
    %v1024 = vld [vmem:[#allocation9 + $0x70] sm:$0xff]
    %v1025 = vld [vmem:[#allocation9 + $0x78] sm:$0xff]
    %v1026 = vld [vmem:[#allocation9 + $0x80] sm:$0xff]
    %v1027 = vld [vmem:[#allocation9 + $0x88] sm:$0xff]
    %v1028 = vld [vmem:[#allocation9 + $0x90] sm:$0xff]
    %v1029 = vld [vmem:[#allocation9 + $0x98] sm:$0xff]
    %v1030 = vld [vmem:[#allocation9 + $0xa0] sm:$0xff]
    %v1031 = vld [vmem:[#allocation9 + $0xa8] sm:$0xff]
    %v1032 = vld [vmem:[#allocation9 + $0xb0] sm:$0xff]
    %v1033 = vld [vmem:[#allocation9 + $0xb8] sm:$0xff]
    %v1034 = vld [vmem:[#allocation9 + $0xc0] sm:$0xff]
    %v1035 = vld [vmem:[#allocation9 + $0xc8] sm:$0xff]
    %v1036 = vld [vmem:[#allocation9 + $0xd0] sm:$0xff]
    %v1037 = vld [vmem:[#allocation9 + $0xd8] sm:$0xff]
    %v1038 = vld [vmem:[#allocation9 + $0xe0] sm:$0xff]
    %v1039 = vld [vmem:[#allocation9 + $0xe8] sm:$0xff]
    %v1040 = vld [vmem:[#allocation9 + $0xf0] sm:$0xff]
    %v1041 = vld [vmem:[#allocation9 + $0xf8] sm:$0xff]
    %v1074 = vunpack.c.l.b16 %v1010
    %v1075 = vunpack.c.h.b16 %v1010
    %v1076 = vunpack.c.l.b16 %v1011
    %v1077 = vunpack.c.h.b16 %v1011
    %v1078 = vunpack.c.l.b16 %v1012
    %v1079 = vunpack.c.h.b16 %v1012
    %v1080 = vunpack.c.l.b16 %v1013
    %v1081 = vunpack.c.h.b16 %v1013
    %v1082 = vunpack.c.l.b16 %v1014
    %v1083 = vunpack.c.h.b16 %v1014
    %v1084 = vunpack.c.l.b16 %v1015
    %v1085 = vunpack.c.h.b16 %v1015
    %v1086 = vunpack.c.l.b16 %v1016
    %v1087 = vunpack.c.h.b16 %v1016
    %v1088 = vunpack.c.l.b16 %v1017
    %v1089 = vunpack.c.h.b16 %v1017
    %v1090 = vunpack.c.l.b16 %v1018
    %v1091 = vunpack.c.h.b16 %v1018
    %v1092 = vunpack.c.l.b16 %v1019
    %v1093 = vunpack.c.h.b16 %v1019
    %v1094 = vunpack.c.l.b16 %v1020
    %v1095 = vunpack.c.h.b16 %v1020
    %v1096 = vunpack.c.l.b16 %v1021
    %v1097 = vunpack.c.h.b16 %v1021
    %v1098 = vunpack.c.l.b16 %v1022
    %v1099 = vunpack.c.h.b16 %v1022
    %v1100 = vunpack.c.l.b16 %v1023
    %v1101 = vunpack.c.h.b16 %v1023
    %v1102 = vunpack.c.l.b16 %v1024
    %v1103 = vunpack.c.h.b16 %v1024
    %v1104 = vunpack.c.l.b16 %v1025
    %v1105 = vunpack.c.h.b16 %v1025
    %v1106 = vunpack.c.l.b16 %v1026
    %v1107 = vunpack.c.h.b16 %v1026
    %v1108 = vunpack.c.l.b16 %v1027
    %v1109 = vunpack.c.h.b16 %v1027
    %v1110 = vunpack.c.l.b16 %v1028
    %v1111 = vunpack.c.h.b16 %v1028
    %v1112 = vunpack.c.l.b16 %v1029
    %v1113 = vunpack.c.h.b16 %v1029
    %v1114 = vunpack.c.l.b16 %v1030
    %v1115 = vunpack.c.h.b16 %v1030
    %v1116 = vunpack.c.l.b16 %v1031
    %v1117 = vunpack.c.h.b16 %v1031
    %v1118 = vunpack.c.l.b16 %v1032
    %v1119 = vunpack.c.h.b16 %v1032
    %v1120 = vunpack.c.l.b16 %v1033
    %v1121 = vunpack.c.h.b16 %v1033
    %v1122 = vunpack.c.l.b16 %v1034
    %v1123 = vunpack.c.h.b16 %v1034
    %v1124 = vunpack.c.l.b16 %v1035
    %v1125 = vunpack.c.h.b16 %v1035
    %v1126 = vunpack.c.l.b16 %v1036
    %v1127 = vunpack.c.h.b16 %v1036
    %v1128 = vunpack.c.l.b16 %v1037
    %v1129 = vunpack.c.h.b16 %v1037
    %v1130 = vunpack.c.l.b16 %v1038
    %v1131 = vunpack.c.h.b16 %v1038
    %v1132 = vunpack.c.l.b16 %v1039
    %v1133 = vunpack.c.h.b16 %v1039
    %v1134 = vunpack.c.l.b16 %v1040
    %v1135 = vunpack.c.h.b16 %v1040
    %v1136 = vunpack.c.l.b16 %v1041
    %v1137 = vunpack.c.h.b16 %v1041
    %v1138 = vpack.c.b16 %v1078, %v1074
    %v1139 = vpack.c.b16 %v1079, %v1075
    %v1140 = vpack.c.b16 %v1080, %v1076
    %v1141 = vpack.c.b16 %v1081, %v1077
    %v1142 = vpack.c.b16 %v1086, %v1082
    %v1143 = vpack.c.b16 %v1087, %v1083
    %v1144 = vpack.c.b16 %v1088, %v1084
    %v1145 = vpack.c.b16 %v1089, %v1085
    %v1146 = vpack.c.b16 %v1094, %v1090
    %v1147 = vpack.c.b16 %v1095, %v1091
    %v1148 = vpack.c.b16 %v1096, %v1092
    %v1149 = vpack.c.b16 %v1097, %v1093
    %v1150 = vpack.c.b16 %v1102, %v1098
    %v1151 = vpack.c.b16 %v1103, %v1099
    %v1152 = vpack.c.b16 %v1104, %v1100
    %v1153 = vpack.c.b16 %v1105, %v1101
    %v1154 = vpack.c.b16 %v1110, %v1106
    %v1155 = vpack.c.b16 %v1111, %v1107
    %v1156 = vpack.c.b16 %v1112, %v1108
    %v1157 = vpack.c.b16 %v1113, %v1109
    %v1158 = vpack.c.b16 %v1118, %v1114
    %v1159 = vpack.c.b16 %v1119, %v1115
    %v1160 = vpack.c.b16 %v1120, %v1116
    %v1161 = vpack.c.b16 %v1121, %v1117
    %v1162 = vpack.c.b16 %v1126, %v1122
    %v1163 = vpack.c.b16 %v1127, %v1123
    %v1164 = vpack.c.b16 %v1128, %v1124
    %v1165 = vpack.c.b16 %v1129, %v1125
    %v1166 = vpack.c.b16 %v1134, %v1130
    %v1167 = vpack.c.b16 %v1135, %v1131
    %v1168 = vpack.c.b16 %v1136, %v1132
    %v1169 = vpack.c.b16 %v1137, %v1133
    %1202 = vmatprep.subr.bf16.mxu0 %v1139
    %1203 = vmatpush1.bf16.msra.mxu0 %v1138
    %1204 = vmatprep.subr.bf16.mxu0 %v1143
    %1205 = vmatpush1.bf16.msra.mxu0 %v1142
    %1206 = vmatprep.subr.bf16.mxu0 %v1147
    %1207 = vmatpush1.bf16.msra.mxu0 %v1146
    %1208 = vmatprep.subr.bf16.mxu0 %v1151
    %1209 = vmatpush1.bf16.msra.mxu0 %v1150
    %1210 = vmatprep.subr.bf16.mxu0 %v1155
    %1211 = vmatpush1.bf16.msra.mxu0 %v1154
    %1212 = vmatprep.subr.bf16.mxu0 %v1159
    %1213 = vmatpush1.bf16.msra.mxu0 %v1158
    %1214 = vmatprep.subr.bf16.mxu0 %v1163
    %1215 = vmatpush1.bf16.msra.mxu0 %v1162
    %1216 = vmatprep.subr.bf16.mxu0 %v1167
    %1217 = vmatpush1.bf16.msra.mxu0 %v1166
    %1218 = vmatprep.subr.bf16.mxu0 0
    %1219 = vmatpush1.bf16.msra.mxu0 0
    %1220 = vmatprep.subr.bf16.mxu0 0
    %1221 = vmatpush1.bf16.msra.mxu0 0
    %1222 = vmatprep.subr.bf16.mxu0 0
    %1223 = vmatpush1.bf16.msra.mxu0 0
    %1224 = vmatprep.subr.bf16.mxu0 0
    %1225 = vmatpush1.bf16.msra.mxu0 0
    %1226 = vmatprep.subr.bf16.mxu0 0
    %1227 = vmatpush1.bf16.msra.mxu0 0
    %1228 = vmatprep.subr.bf16.mxu0 0
    %1229 = vmatpush1.bf16.msra.mxu0 0
    %1230 = vmatprep.subr.bf16.mxu0 0
    %1231 = vmatpush1.bf16.msra.mxu0 0
    %1232 = vmatprep.subr.bf16.mxu0 0
    %1233 = vmatpush1.bf16.msra.mxu0 0
    %1234 = vmatprep.mubr.bf16.mxu0 0
    %1235 = vmatmul.mubr.bf16.gmra.mrb[0].mxu0 %v1009
    %v1236 = vpop.f32.mrb[0].mxu0
    %v1237 = vadd.f32 %v927, %v1236
    %v1238 = vpop.f32.mrb[0].mxu0
    %v1239 = vadd.f32 %v929, %v1238
    %v1240 = vpop.f32.mrb[0].mxu0
    %v1241 = vpop.f32.mrb[0].mxu0
    %1242 = vdwg.mxu0
    %1243 = vmatprep.subr.bf16.mxu0 %v1141
    %1244 = vmatpush1.bf16.msra.mxu0 %v1140
    %1245 = vmatprep.subr.bf16.mxu0 %v1145
    %1246 = vmatpush1.bf16.msra.mxu0 %v1144
    %1247 = vmatprep.subr.bf16.mxu0 %v1149
    %1248 = vmatpush1.bf16.msra.mxu0 %v1148
    %1249 = vmatprep.subr.bf16.mxu0 %v1153
    %1250 = vmatpush1.bf16.msra.mxu0 %v1152
    %1251 = vmatprep.subr.bf16.mxu0 %v1157
    %1252 = vmatpush1.bf16.msra.mxu0 %v1156
    %1253 = vmatprep.subr.bf16.mxu0 %v1161
    %1254 = vmatpush1.bf16.msra.mxu0 %v1160
    %1255 = vmatprep.subr.bf16.mxu0 %v1165
    %1256 = vmatpush1.bf16.msra.mxu0 %v1164
    %1257 = vmatprep.subr.bf16.mxu0 %v1169
    %1258 = vmatpush1.bf16.msra.mxu0 %v1168
    %1259 = vmatprep.subr.bf16.mxu0 0
    %1260 = vmatpush1.bf16.msra.mxu0 0
    %1261 = vmatprep.subr.bf16.mxu0 0
    %1262 = vmatpush1.bf16.msra.mxu0 0
    %1263 = vmatprep.subr.bf16.mxu0 0
    %1264 = vmatpush1.bf16.msra.mxu0 0
    %1265 = vmatprep.subr.bf16.mxu0 0
    %1266 = vmatpush1.bf16.msra.mxu0 0
    %1267 = vmatprep.subr.bf16.mxu0 0
    %1268 = vmatpush1.bf16.msra.mxu0 0
    %1269 = vmatprep.subr.bf16.mxu0 0
    %1270 = vmatpush1.bf16.msra.mxu0 0
    %1271 = vmatprep.subr.bf16.mxu0 0
    %1272 = vmatpush1.bf16.msra.mxu0 0
    %1273 = vmatprep.subr.bf16.mxu0 0
    %1274 = vmatpush1.bf16.msra.mxu0 0
    %1275 = vmatprep.mubr.bf16.mxu0 0
    %1276 = vmatmul.mubr.bf16.gmra.mrb[0].mxu0 %v1009
    %v1277 = vpop.f32.mrb[0].mxu0
    %v1278 = vadd.f32 %v968, %v1277
    %v1279 = vpop.f32.mrb[0].mxu0
    %v1280 = vadd.f32 %v970, %v1279
    %v1281 = vpop.f32.mrb[0].mxu0
    %v1282 = vpop.f32.mrb[0].mxu0
    %1283 = vdwg.mxu0
    %v1284 = vxor.u32 %v1237, 2147483648
    %v1285 = vxor.u32 %v1239, 2147483648
    %v1286 = vxor.u32 %v1278, 2147483648
    %v1287 = vmul.f32 %v1284, 1.442695
    %v1288 = vpow.pop %v1287
    %v1289 = vmul.f32 %v1285, 1.442695
    %v1290 = vpow.pop %v1289
    %v1291 = vmul.f32 %v1286, 1.442695
    %v1292 = vpow.pop %v1291
    %v1293 = vadd.f32 %v1288, 1.0
    %v1294 = vadd.f32 %v1290, 1.0
    %v1295 = vadd.f32 %v1292, 1.0
    %v1296 = vrcp.pop %v1293
    %v1297 = vmul.f32 1.0, %v1296
    %v1298 = vrcp.pop %v1294
    %v1299 = vmul.f32 1.0, %v1298
    %v1300 = vrcp.pop %v1295
    %v1301 = vmul.f32 1.0, %v1300
    %v1302 = vtanh.pop %v1280
    %v1303 = vmul.f32 %v1299, 0.0
    %v1304 = vmul.f32 %v1297, %v1302
    %v1305 = vadd.f32 %v1303, %v1304
    %v1306 = vtanh.pop %v1305
    %v1307 = vmul.f32 %v1301, %v1306
    %v1308 = vpack.c.bf16 %v1307, %v1307
    %1309 = vmatprep.subr.bf16.mxu0 %v551
    %1310 = vmatpush1.bf16.msra.mxu0 %v550
    %1311 = vmatprep.subr.bf16.mxu0 %v555
    %1312 = vmatpush1.bf16.msra.mxu0 %v554
    %1313 = vmatprep.subr.bf16.mxu0 %v559
    %1314 = vmatpush1.bf16.msra.mxu0 %v558
    %1315 = vmatprep.subr.bf16.mxu0 %v563
    %1316 = vmatpush1.bf16.msra.mxu0 %v562
    %1317 = vmatprep.subr.bf16.mxu0 %v567
    %1318 = vmatpush1.bf16.msra.mxu0 %v566
    %1319 = vmatprep.subr.bf16.mxu0 %v571
    %1320 = vmatpush1.bf16.msra.mxu0 %v570
    %1321 = vmatprep.subr.bf16.mxu0 %v575
    %1322 = vmatpush1.bf16.msra.mxu0 %v574
    %1323 = vmatprep.subr.bf16.mxu0 %v579
    %1324 = vmatpush1.bf16.msra.mxu0 %v578
    %1325 = vmatprep.subr.bf16.mxu0 0
    %1326 = vmatpush1.bf16.msra.mxu0 0
    %1327 = vmatprep.subr.bf16.mxu0 0
    %1328 = vmatpush1.bf16.msra.mxu0 0
    %1329 = vmatprep.subr.bf16.mxu0 0
    %1330 = vmatpush1.bf16.msra.mxu0 0
    %1331 = vmatprep.subr.bf16.mxu0 0
    %1332 = vmatpush1.bf16.msra.mxu0 0
    %1333 = vmatprep.subr.bf16.mxu0 0
    %1334 = vmatpush1.bf16.msra.mxu0 0
    %1335 = vmatprep.subr.bf16.mxu0 0
    %1336 = vmatpush1.bf16.msra.mxu0 0
    %1337 = vmatprep.subr.bf16.mxu0 0
    %1338 = vmatpush1.bf16.msra.mxu0 0
    %1339 = vmatprep.subr.bf16.mxu0 0
    %1340 = vmatpush1.bf16.msra.mxu0 0
    %1341 = vmatprep.mubr.bf16.mxu0 0
    %1342 = vmatmul.mubr.bf16.gmra.mrb[0].mxu0 %v1009
    %v1343 = vpop.f32.mrb[0].mxu0
    %v1344 = vadd.f32 0.0, %v1343
    %v1345 = vpop.f32.mrb[0].mxu0
    %v1346 = vadd.f32 0.0, %v1345
    %v1347 = vpop.f32.mrb[0].mxu0
    %v1348 = vpop.f32.mrb[0].mxu0
    %1349 = vdwg.mxu0
    %1350 = vmatprep.subr.bf16.mxu0 %v553
    %1351 = vmatpush1.bf16.msra.mxu0 %v552
    %1352 = vmatprep.subr.bf16.mxu0 %v557
    %1353 = vmatpush1.bf16.msra.mxu0 %v556
    %1354 = vmatprep.subr.bf16.mxu0 %v561
    %1355 = vmatpush1.bf16.msra.mxu0 %v560
    %1356 = vmatprep.subr.bf16.mxu0 %v565
    %1357 = vmatpush1.bf16.msra.mxu0 %v564
    %1358 = vmatprep.subr.bf16.mxu0 %v569
    %1359 = vmatpush1.bf16.msra.mxu0 %v568
    %1360 = vmatprep.subr.bf16.mxu0 %v573
    %1361 = vmatpush1.bf16.msra.mxu0 %v572
    %1362 = vmatprep.subr.bf16.mxu0 %v577
    %1363 = vmatpush1.bf16.msra.mxu0 %v576
    %1364 = vmatprep.subr.bf16.mxu0 %v581
    %1365 = vmatpush1.bf16.msra.mxu0 %v580
    %1366 = vmatprep.subr.bf16.mxu0 0
    %1367 = vmatpush1.bf16.msra.mxu0 0
    %1368 = vmatprep.subr.bf16.mxu0 0
    %1369 = vmatpush1.bf16.msra.mxu0 0
    %1370 = vmatprep.subr.bf16.mxu0 0
    %1371 = vmatpush1.bf16.msra.mxu0 0
    %1372 = vmatprep.subr.bf16.mxu0 0
    %1373 = vmatpush1.bf16.msra.mxu0 0
    %1374 = vmatprep.subr.bf16.mxu0 0
    %1375 = vmatpush1.bf16.msra.mxu0 0
    %1376 = vmatprep.subr.bf16.mxu0 0
    %1377 = vmatpush1.bf16.msra.mxu0 0
    %1378 = vmatprep.subr.bf16.mxu0 0
    %1379 = vmatpush1.bf16.msra.mxu0 0
    %1380 = vmatprep.subr.bf16.mxu0 0
    %1381 = vmatpush1.bf16.msra.mxu0 0
    %1382 = vmatprep.mubr.bf16.mxu0 0
    %1383 = vmatmul.mubr.bf16.gmra.mrb[0].mxu0 %v1009
    %v1384 = vpop.f32.mrb[0].mxu0
    %v1385 = vadd.f32 0.0, %v1384
    %v1386 = vpop.f32.mrb[0].mxu0
    %v1387 = vadd.f32 0.0, %v1386
    %v1388 = vpop.f32.mrb[0].mxu0
    %v1389 = vpop.f32.mrb[0].mxu0
    %1390 = vdwg.mxu0
    %1391 = vmatprep.subr.bf16.mxu0 %v829
    %1392 = vmatpush1.bf16.msra.mxu0 %v828
    %1393 = vmatprep.subr.bf16.mxu0 %v833
    %1394 = vmatpush1.bf16.msra.mxu0 %v832
    %1395 = vmatprep.subr.bf16.mxu0 %v837
    %1396 = vmatpush1.bf16.msra.mxu0 %v836
    %1397 = vmatprep.subr.bf16.mxu0 %v841
    %1398 = vmatpush1.bf16.msra.mxu0 %v840
    %1399 = vmatprep.subr.bf16.mxu0 %v845
    %1400 = vmatpush1.bf16.msra.mxu0 %v844
    %1401 = vmatprep.subr.bf16.mxu0 %v849
    %1402 = vmatpush1.bf16.msra.mxu0 %v848
    %1403 = vmatprep.subr.bf16.mxu0 %v853
    %1404 = vmatpush1.bf16.msra.mxu0 %v852
    %1405 = vmatprep.subr.bf16.mxu0 %v857
    %1406 = vmatpush1.bf16.msra.mxu0 %v856
    %1407 = vmatprep.subr.bf16.mxu0 0
    %1408 = vmatpush1.bf16.msra.mxu0 0
    %1409 = vmatprep.subr.bf16.mxu0 0
    %1410 = vmatpush1.bf16.msra.mxu0 0
    %1411 = vmatprep.subr.bf16.mxu0 0
    %1412 = vmatpush1.bf16.msra.mxu0 0
    %1413 = vmatprep.subr.bf16.mxu0 0
    %1414 = vmatpush1.bf16.msra.mxu0 0
    %1415 = vmatprep.subr.bf16.mxu0 0
    %1416 = vmatpush1.bf16.msra.mxu0 0
    %1417 = vmatprep.subr.bf16.mxu0 0
    %1418 = vmatpush1.bf16.msra.mxu0 0
    %1419 = vmatprep.subr.bf16.mxu0 0
    %1420 = vmatpush1.bf16.msra.mxu0 0
    %1421 = vmatprep.subr.bf16.mxu0 0
    %1422 = vmatpush1.bf16.msra.mxu0 0
    %1423 = vmatprep.mubr.bf16.mxu0 0
    %1424 = vmatmul.mubr.bf16.gmra.mrb[0].mxu0 %v1308
    %v1425 = vpop.f32.mrb[0].mxu0
    %v1426 = vadd.f32 %v728, %v1425
    %v1427 = vpop.f32.mrb[0].mxu0
    %v1428 = vadd.f32 %v729, %v1427
    %v1429 = vpop.f32.mrb[0].mxu0
    %v1430 = vpop.f32.mrb[0].mxu0
    %1431 = vdwg.mxu0
    %1432 = vmatprep.subr.bf16.mxu0 %v831
    %1433 = vmatpush1.bf16.msra.mxu0 %v830
    %1434 = vmatprep.subr.bf16.mxu0 %v835
    %1435 = vmatpush1.bf16.msra.mxu0 %v834
    %1436 = vmatprep.subr.bf16.mxu0 %v839
    %1437 = vmatpush1.bf16.msra.mxu0 %v838
    %1438 = vmatprep.subr.bf16.mxu0 %v843
    %1439 = vmatpush1.bf16.msra.mxu0 %v842
    %1440 = vmatprep.subr.bf16.mxu0 %v847
    %1441 = vmatpush1.bf16.msra.mxu0 %v846
    %1442 = vmatprep.subr.bf16.mxu0 %v851
    %1443 = vmatpush1.bf16.msra.mxu0 %v850
    %1444 = vmatprep.subr.bf16.mxu0 %v855
    %1445 = vmatpush1.bf16.msra.mxu0 %v854
    %1446 = vmatprep.subr.bf16.mxu0 %v859
    %1447 = vmatpush1.bf16.msra.mxu0 %v858
    %1448 = vmatprep.subr.bf16.mxu0 0
    %1449 = vmatpush1.bf16.msra.mxu0 0
    %1450 = vmatprep.subr.bf16.mxu0 0
    %1451 = vmatpush1.bf16.msra.mxu0 0
    %1452 = vmatprep.subr.bf16.mxu0 0
    %1453 = vmatpush1.bf16.msra.mxu0 0
    %1454 = vmatprep.subr.bf16.mxu0 0
    %1455 = vmatpush1.bf16.msra.mxu0 0
    %1456 = vmatprep.subr.bf16.mxu0 0
    %1457 = vmatpush1.bf16.msra.mxu0 0
    %1458 = vmatprep.subr.bf16.mxu0 0
    %1459 = vmatpush1.bf16.msra.mxu0 0
    %1460 = vmatprep.subr.bf16.mxu0 0
    %1461 = vmatpush1.bf16.msra.mxu0 0
    %1462 = vmatprep.subr.bf16.mxu0 0
    %1463 = vmatpush1.bf16.msra.mxu0 0
    %1464 = vmatprep.mubr.bf16.mxu0 0
    %1465 = vmatmul.mubr.bf16.gmra.mrb[0].mxu0 %v1308
    %v1466 = vpop.f32.mrb[0].mxu0
    %v1467 = vadd.f32 %v730, %v1466
    %v1468 = vpop.f32.mrb[0].mxu0
    %v1469 = vadd.f32 %v731, %v1468
    %v1470 = vpop.f32.mrb[0].mxu0
    %v1471 = vpop.f32.mrb[0].mxu0
    %1472 = vdwg.mxu0
    %s1473 = smul.u32 1, 4
    %s1474 = smul.addr %s1473, 8
    %s1475 = scalar_lea.vmem [#allocation2], %s1474
    %v1476 = vld [vmem:[%s1475] sm:$0xff]
    %v1477 = vld [vmem:[%s1475 + $0x8] sm:$0xff]
    %v1478 = vld [vmem:[%s1475 + $0x10] sm:$0xff]
    %v1479 = vld [vmem:[%s1475 + $0x18] sm:$0xff]
    %v1480 = vadd.f32 %v1476, %v1344
    %v1481 = vadd.f32 %v1477, %v1346
    %v1482 = vadd.f32 %v1478, %v1385
    %v1483 = vadd.f32 %v1479, %v1387
    %v1484 = vxor.u32 %v1480, 2147483648
    %v1485 = vxor.u32 %v1481, 2147483648
    %v1486 = vxor.u32 %v1482, 2147483648
    %v1487 = vmul.f32 %v1484, 1.442695
    %v1488 = vpow.pop %v1487
    %v1489 = vmul.f32 %v1485, 1.442695
    %v1490 = vpow.pop %v1489
    %v1491 = vmul.f32 %v1486, 1.442695
    %v1492 = vpow.pop %v1491
    %v1493 = vadd.f32 %v1488, 1.0
    %v1494 = vadd.f32 %v1490, 1.0
    %v1495 = vadd.f32 %v1492, 1.0
    %v1496 = vrcp.pop %v1493
    %v1497 = vmul.f32 1.0, %v1496
    %v1498 = vrcp.pop %v1494
    %v1499 = vmul.f32 1.0, %v1498
    %v1500 = vrcp.pop %v1495
    %v1501 = vmul.f32 1.0, %v1500
    %v1502 = vtanh.pop %v1483
    %v1503 = vmul.f32 %v1499, %v1006
    %v1504 = vmul.f32 %v1497, %v1502
    %v1505 = vadd.f32 %v1503, %v1504
    %v1506 = vtanh.pop %v1505
    %v1507 = vmul.f32 %v1501, %v1506
    %v1508 = vpack.c.bf16 %v1507, %v1507
    %1509 = vmatprep.subr.bf16.mxu0 %v1139
    %1510 = vmatpush1.bf16.msra.mxu0 %v1138
    %1511 = vmatprep.subr.bf16.mxu0 %v1143
    %1512 = vmatpush1.bf16.msra.mxu0 %v1142
    %1513 = vmatprep.subr.bf16.mxu0 %v1147
    %1514 = vmatpush1.bf16.msra.mxu0 %v1146
    %1515 = vmatprep.subr.bf16.mxu0 %v1151
    %1516 = vmatpush1.bf16.msra.mxu0 %v1150
    %1517 = vmatprep.subr.bf16.mxu0 %v1155
    %1518 = vmatpush1.bf16.msra.mxu0 %v1154
    %1519 = vmatprep.subr.bf16.mxu0 %v1159
    %1520 = vmatpush1.bf16.msra.mxu0 %v1158
    %1521 = vmatprep.subr.bf16.mxu0 %v1163
    %1522 = vmatpush1.bf16.msra.mxu0 %v1162
    %1523 = vmatprep.subr.bf16.mxu0 %v1167
    %1524 = vmatpush1.bf16.msra.mxu0 %v1166
    %1525 = vmatprep.subr.bf16.mxu0 0
    %1526 = vmatpush1.bf16.msra.mxu0 0
    %1527 = vmatprep.subr.bf16.mxu0 0
    %1528 = vmatpush1.bf16.msra.mxu0 0
    %1529 = vmatprep.subr.bf16.mxu0 0
    %1530 = vmatpush1.bf16.msra.mxu0 0
    %1531 = vmatprep.subr.bf16.mxu0 0
    %1532 = vmatpush1.bf16.msra.mxu0 0
    %1533 = vmatprep.subr.bf16.mxu0 0
    %1534 = vmatpush1.bf16.msra.mxu0 0
    %1535 = vmatprep.subr.bf16.mxu0 0
    %1536 = vmatpush1.bf16.msra.mxu0 0
    %1537 = vmatprep.subr.bf16.mxu0 0
    %1538 = vmatpush1.bf16.msra.mxu0 0
    %1539 = vmatprep.subr.bf16.mxu0 0
    %1540 = vmatpush1.bf16.msra.mxu0 0
    %1541 = vmatprep.mubr.bf16.mxu0 0
    %1542 = vmatmul.mubr.bf16.gmra.mrb[0].mxu0 %v1508
    %v1543 = vpop.f32.mrb[0].mxu0
    %v1544 = vadd.f32 %v1426, %v1543
    %v1545 = vpop.f32.mrb[0].mxu0
    %v1546 = vadd.f32 %v1428, %v1545
    %v1547 = vpop.f32.mrb[0].mxu0
    %v1548 = vpop.f32.mrb[0].mxu0
    %1549 = vdwg.mxu0
    %1550 = vmatprep.subr.bf16.mxu0 %v1141
    %1551 = vmatpush1.bf16.msra.mxu0 %v1140
    %1552 = vmatprep.subr.bf16.mxu0 %v1145
    %1553 = vmatpush1.bf16.msra.mxu0 %v1144
    %1554 = vmatprep.subr.bf16.mxu0 %v1149
    %1555 = vmatpush1.bf16.msra.mxu0 %v1148
    %1556 = vmatprep.subr.bf16.mxu0 %v1153
    %1557 = vmatpush1.bf16.msra.mxu0 %v1152
    %1558 = vmatprep.subr.bf16.mxu0 %v1157
    %1559 = vmatpush1.bf16.msra.mxu0 %v1156
    %1560 = vmatprep.subr.bf16.mxu0 %v1161
    %1561 = vmatpush1.bf16.msra.mxu0 %v1160
    %1562 = vmatprep.subr.bf16.mxu0 %v1165
    %1563 = vmatpush1.bf16.msra.mxu0 %v1164
    %1564 = vmatprep.subr.bf16.mxu0 %v1169
    %1565 = vmatpush1.bf16.msra.mxu0 %v1168
    %1566 = vmatprep.subr.bf16.mxu0 0
    %1567 = vmatpush1.bf16.msra.mxu0 0
    %1568 = vmatprep.subr.bf16.mxu0 0
    %1569 = vmatpush1.bf16.msra.mxu0 0
    %1570 = vmatprep.subr.bf16.mxu0 0
    %1571 = vmatpush1.bf16.msra.mxu0 0
    %1572 = vmatprep.subr.bf16.mxu0 0
    %1573 = vmatpush1.bf16.msra.mxu0 0
    %1574 = vmatprep.subr.bf16.mxu0 0
    %1575 = vmatpush1.bf16.msra.mxu0 0
    %1576 = vmatprep.subr.bf16.mxu0 0
    %1577 = vmatpush1.bf16.msra.mxu0 0
    %1578 = vmatprep.subr.bf16.mxu0 0
    %1579 = vmatpush1.bf16.msra.mxu0 0
    %1580 = vmatprep.subr.bf16.mxu0 0
    %1581 = vmatpush1.bf16.msra.mxu0 0
    %1582 = vmatprep.mubr.bf16.mxu0 0
    %1583 = vmatmul.mubr.bf16.gmra.mrb[0].mxu0 %v1508
    %v1584 = vpop.f32.mrb[0].mxu0
    %v1585 = vadd.f32 %v1467, %v1584
    %v1586 = vpop.f32.mrb[0].mxu0
    %v1587 = vadd.f32 %v1469, %v1586
    %v1588 = vpop.f32.mrb[0].mxu0
    %v1589 = vpop.f32.mrb[0].mxu0
    %1590 = vdwg.mxu0
    %v1591 = vxor.u32 %v1544, 2147483648
    %v1592 = vxor.u32 %v1546, 2147483648
    %v1593 = vxor.u32 %v1585, 2147483648
    %v1594 = vmul.f32 %v1591, 1.442695
    %v1595 = vpow.pop %v1594
    %v1596 = vmul.f32 %v1592, 1.442695
    %v1597 = vpow.pop %v1596
    %v1598 = vmul.f32 %v1593, 1.442695
    %v1599 = vpow.pop %v1598
    %v1600 = vadd.f32 %v1595, 1.0
    %v1601 = vadd.f32 %v1597, 1.0
    %v1602 = vadd.f32 %v1599, 1.0
    %v1603 = vrcp.pop %v1600
    %v1604 = vmul.f32 1.0, %v1603
    %v1605 = vrcp.pop %v1601
    %v1606 = vmul.f32 1.0, %v1605
    %v1607 = vrcp.pop %v1602
    %v1608 = vmul.f32 1.0, %v1607
    %v1609 = vtanh.pop %v1587
    %v1610 = vmul.f32 %v1606, %v1305
    %v1611 = vmul.f32 %v1604, %v1609
    %v1612 = vadd.f32 %v1610, %v1611
    %v1613 = vtanh.pop %v1612
    %v1614 = vmul.f32 %v1608, %v1613
    %v1615 = vpack.c.bf16 %v1614, %v1614
    %1616 = vmatprep.subr.bf16.mxu0 %v551
    %1617 = vmatpush1.bf16.msra.mxu0 %v550
    %1618 = vmatprep.subr.bf16.mxu0 %v555
    %1619 = vmatpush1.bf16.msra.mxu0 %v554
    %1620 = vmatprep.subr.bf16.mxu0 %v559
    %1621 = vmatpush1.bf16.msra.mxu0 %v558
    %1622 = vmatprep.subr.bf16.mxu0 %v563
    %1623 = vmatpush1.bf16.msra.mxu0 %v562
    %1624 = vmatprep.subr.bf16.mxu0 %v567
    %1625 = vmatpush1.bf16.msra.mxu0 %v566
    %1626 = vmatprep.subr.bf16.mxu0 %v571
    %1627 = vmatpush1.bf16.msra.mxu0 %v570
    %1628 = vmatprep.subr.bf16.mxu0 %v575
    %1629 = vmatpush1.bf16.msra.mxu0 %v574
    %1630 = vmatprep.subr.bf16.mxu0 %v579
    %1631 = vmatpush1.bf16.msra.mxu0 %v578
    %1632 = vmatprep.subr.bf16.mxu0 0
    %1633 = vmatpush1.bf16.msra.mxu0 0
    %1634 = vmatprep.subr.bf16.mxu0 0
    %1635 = vmatpush1.bf16.msra.mxu0 0
    %1636 = vmatprep.subr.bf16.mxu0 0
    %1637 = vmatpush1.bf16.msra.mxu0 0
    %1638 = vmatprep.subr.bf16.mxu0 0
    %1639 = vmatpush1.bf16.msra.mxu0 0
    %1640 = vmatprep.subr.bf16.mxu0 0
    %1641 = vmatpush1.bf16.msra.mxu0 0
    %1642 = vmatprep.subr.bf16.mxu0 0
    %1643 = vmatpush1.bf16.msra.mxu0 0
    %1644 = vmatprep.subr.bf16.mxu0 0
    %1645 = vmatpush1.bf16.msra.mxu0 0
    %1646 = vmatprep.subr.bf16.mxu0 0
    %1647 = vmatpush1.bf16.msra.mxu0 0
    %1648 = vmatprep.mubr.bf16.mxu0 0
    %1649 = vmatmul.mubr.bf16.gmra.mrb[0].mxu0 %v1508
    %v1650 = vpop.f32.mrb[0].mxu0
    %v1651 = vadd.f32 0.0, %v1650
    %v1652 = vpop.f32.mrb[0].mxu0
    %v1653 = vadd.f32 0.0, %v1652
    %v1654 = vpop.f32.mrb[0].mxu0
    %v1655 = vpop.f32.mrb[0].mxu0
    %1656 = vdwg.mxu0
    %1657 = vmatprep.subr.bf16.mxu0 %v553
    %1658 = vmatpush1.bf16.msra.mxu0 %v552
    %1659 = vmatprep.subr.bf16.mxu0 %v557
    %1660 = vmatpush1.bf16.msra.mxu0 %v556
    %1661 = vmatprep.subr.bf16.mxu0 %v561
    %1662 = vmatpush1.bf16.msra.mxu0 %v560
    %1663 = vmatprep.subr.bf16.mxu0 %v565
    %1664 = vmatpush1.bf16.msra.mxu0 %v564
    %1665 = vmatprep.subr.bf16.mxu0 %v569
    %1666 = vmatpush1.bf16.msra.mxu0 %v568
    %1667 = vmatprep.subr.bf16.mxu0 %v573
    %1668 = vmatpush1.bf16.msra.mxu0 %v572
    %1669 = vmatprep.subr.bf16.mxu0 %v577
    %1670 = vmatpush1.bf16.msra.mxu0 %v576
    %1671 = vmatprep.subr.bf16.mxu0 %v581
    %1672 = vmatpush1.bf16.msra.mxu0 %v580
    %1673 = vmatprep.subr.bf16.mxu0 0
    %1674 = vmatpush1.bf16.msra.mxu0 0
    %1675 = vmatprep.subr.bf16.mxu0 0
    %1676 = vmatpush1.bf16.msra.mxu0 0
    %1677 = vmatprep.subr.bf16.mxu0 0
    %1678 = vmatpush1.bf16.msra.mxu0 0
    %1679 = vmatprep.subr.bf16.mxu0 0
    %1680 = vmatpush1.bf16.msra.mxu0 0
    %1681 = vmatprep.subr.bf16.mxu0 0
    %1682 = vmatpush1.bf16.msra.mxu0 0
    %1683 = vmatprep.subr.bf16.mxu0 0
    %1684 = vmatpush1.bf16.msra.mxu0 0
    %1685 = vmatprep.subr.bf16.mxu0 0
    %1686 = vmatpush1.bf16.msra.mxu0 0
    %1687 = vmatprep.subr.bf16.mxu0 0
    %1688 = vmatpush1.bf16.msra.mxu0 0
    %1689 = vmatprep.mubr.bf16.mxu0 0
    %1690 = vmatmul.mubr.bf16.gmra.mrb[0].mxu0 %v1508
    %v1691 = vpop.f32.mrb[0].mxu0
    %v1692 = vadd.f32 0.0, %v1691
    %v1693 = vpop.f32.mrb[0].mxu0
    %v1694 = vadd.f32 0.0, %v1693
    %v1695 = vpop.f32.mrb[0].mxu0
    %v1696 = vpop.f32.mrb[0].mxu0
    %1697 = vdwg.mxu0
    %1698 = vmatprep.subr.bf16.mxu0 %v829
    %1699 = vmatpush1.bf16.msra.mxu0 %v828
    %1700 = vmatprep.subr.bf16.mxu0 %v833
    %1701 = vmatpush1.bf16.msra.mxu0 %v832
    %1702 = vmatprep.subr.bf16.mxu0 %v837
    %1703 = vmatpush1.bf16.msra.mxu0 %v836
    %1704 = vmatprep.subr.bf16.mxu0 %v841
    %1705 = vmatpush1.bf16.msra.mxu0 %v840
    %1706 = vmatprep.subr.bf16.mxu0 %v845
    %1707 = vmatpush1.bf16.msra.mxu0 %v844
    %1708 = vmatprep.subr.bf16.mxu0 %v849
    %1709 = vmatpush1.bf16.msra.mxu0 %v848
    %1710 = vmatprep.subr.bf16.mxu0 %v853
    %1711 = vmatpush1.bf16.msra.mxu0 %v852
    %1712 = vmatprep.subr.bf16.mxu0 %v857
    %1713 = vmatpush1.bf16.msra.mxu0 %v856
    %1714 = vmatprep.subr.bf16.mxu0 0
    %1715 = vmatpush1.bf16.msra.mxu0 0
    %1716 = vmatprep.subr.bf16.mxu0 0
    %1717 = vmatpush1.bf16.msra.mxu0 0
    %1718 = vmatprep.subr.bf16.mxu0 0
    %1719 = vmatpush1.bf16.msra.mxu0 0
    %1720 = vmatprep.subr.bf16.mxu0 0
    %1721 = vmatpush1.bf16.msra.mxu0 0
    %1722 = vmatprep.subr.bf16.mxu0 0
    %1723 = vmatpush1.bf16.msra.mxu0 0
    %1724 = vmatprep.subr.bf16.mxu0 0
    %1725 = vmatpush1.bf16.msra.mxu0 0
    %1726 = vmatprep.subr.bf16.mxu0 0
    %1727 = vmatpush1.bf16.msra.mxu0 0
    %1728 = vmatprep.subr.bf16.mxu0 0
    %1729 = vmatpush1.bf16.msra.mxu0 0
    %1730 = vmatprep.mubr.bf16.mxu0 0
    %1731 = vmatmul.mubr.bf16.gmra.mrb[0].mxu0 %v1615
    %v1732 = vpop.f32.mrb[0].mxu0
    %v1733 = vadd.f32 %v728, %v1732
    %v1734 = vpop.f32.mrb[0].mxu0
    %v1735 = vadd.f32 %v729, %v1734
    %v1736 = vpop.f32.mrb[0].mxu0
    %v1737 = vpop.f32.mrb[0].mxu0
    %1738 = vdwg.mxu0
    %1739 = vmatprep.subr.bf16.mxu0 %v831
    %1740 = vmatpush1.bf16.msra.mxu0 %v830
    %1741 = vmatprep.subr.bf16.mxu0 %v835
    %1742 = vmatpush1.bf16.msra.mxu0 %v834
    %1743 = vmatprep.subr.bf16.mxu0 %v839
    %1744 = vmatpush1.bf16.msra.mxu0 %v838
    %1745 = vmatprep.subr.bf16.mxu0 %v843
    %1746 = vmatpush1.bf16.msra.mxu0 %v842
    %1747 = vmatprep.subr.bf16.mxu0 %v847
    %1748 = vmatpush1.bf16.msra.mxu0 %v846
    %1749 = vmatprep.subr.bf16.mxu0 %v851
    %1750 = vmatpush1.bf16.msra.mxu0 %v850
    %1751 = vmatprep.subr.bf16.mxu0 %v855
    %1752 = vmatpush1.bf16.msra.mxu0 %v854
    %1753 = vmatprep.subr.bf16.mxu0 %v859
    %1754 = vmatpush1.bf16.msra.mxu0 %v858
    %1755 = vmatprep.subr.bf16.mxu0 0
    %1756 = vmatpush1.bf16.msra.mxu0 0
    %1757 = vmatprep.subr.bf16.mxu0 0
    %1758 = vmatpush1.bf16.msra.mxu0 0
    %1759 = vmatprep.subr.bf16.mxu0 0
    %1760 = vmatpush1.bf16.msra.mxu0 0
    %1761 = vmatprep.subr.bf16.mxu0 0
    %1762 = vmatpush1.bf16.msra.mxu0 0
    %1763 = vmatprep.subr.bf16.mxu0 0
    %1764 = vmatpush1.bf16.msra.mxu0 0
    %1765 = vmatprep.subr.bf16.mxu0 0
    %1766 = vmatpush1.bf16.msra.mxu0 0
    %1767 = vmatprep.subr.bf16.mxu0 0
    %1768 = vmatpush1.bf16.msra.mxu0 0
    %1769 = vmatprep.subr.bf16.mxu0 0
    %1770 = vmatpush1.bf16.msra.mxu0 0
    %1771 = vmatprep.mubr.bf16.mxu0 0
    %1772 = vmatmul.mubr.bf16.gmra.mrb[0].mxu0 %v1615
    %v1773 = vpop.f32.mrb[0].mxu0
    %v1774 = vadd.f32 %v730, %v1773
    %v1775 = vpop.f32.mrb[0].mxu0
    %v1776 = vadd.f32 %v731, %v1775
    %v1777 = vpop.f32.mrb[0].mxu0
    %v1778 = vpop.f32.mrb[0].mxu0
    %1779 = vdwg.mxu0
    %s1780 = smul.u32 2, 4
    %s1781 = smul.addr %s1780, 8
    %s1782 = scalar_lea.vmem [#allocation2], %s1781
    %v1783 = vld [vmem:[%s1782] sm:$0xff]
    %v1784 = vld [vmem:[%s1782 + $0x8] sm:$0xff]
    %v1785 = vld [vmem:[%s1782 + $0x10] sm:$0xff]
    %v1786 = vld [vmem:[%s1782 + $0x18] sm:$0xff]
    %v1787 = vadd.f32 %v1783, %v1651
    %v1788 = vadd.f32 %v1784, %v1653
    %v1789 = vadd.f32 %v1785, %v1692
    %v1790 = vadd.f32 %v1786, %v1694
    %v1791 = vxor.u32 %v1787, 2147483648
    %v1792 = vxor.u32 %v1788, 2147483648
    %v1793 = vxor.u32 %v1789, 2147483648
    %v1794 = vmul.f32 %v1791, 1.442695
    %v1795 = vpow.pop %v1794
    %v1796 = vmul.f32 %v1792, 1.442695
    %v1797 = vpow.pop %v1796
    %v1798 = vmul.f32 %v1793, 1.442695
    %v1799 = vpow.pop %v1798
    %v1800 = vadd.f32 %v1795, 1.0
    %v1801 = vadd.f32 %v1797, 1.0
    %v1802 = vadd.f32 %v1799, 1.0
    %v1803 = vrcp.pop %v1800
    %v1804 = vmul.f32 1.0, %v1803
    %v1805 = vrcp.pop %v1801
    %v1806 = vmul.f32 1.0, %v1805
    %v1807 = vrcp.pop %v1802
    %v1808 = vmul.f32 1.0, %v1807
    %v1809 = vtanh.pop %v1790
    %v1810 = vmul.f32 %v1806, %v1505
    %v1811 = vmul.f32 %v1804, %v1809
    %v1812 = vadd.f32 %v1810, %v1811
    %v1813 = vtanh.pop %v1812
    %v1814 = vmul.f32 %v1808, %v1813
    %v1815 = vpack.c.bf16 %v1814, %v1814
    %1816 = vmatprep.subr.bf16.mxu0 %v1139
    %1817 = vmatpush1.bf16.msra.mxu0 %v1138
    %1818 = vmatprep.subr.bf16.mxu0 %v1143
    %1819 = vmatpush1.bf16.msra.mxu0 %v1142
    %1820 = vmatprep.subr.bf16.mxu0 %v1147
    %1821 = vmatpush1.bf16.msra.mxu0 %v1146
    %1822 = vmatprep.subr.bf16.mxu0 %v1151
    %1823 = vmatpush1.bf16.msra.mxu0 %v1150
    %1824 = vmatprep.subr.bf16.mxu0 %v1155
    %1825 = vmatpush1.bf16.msra.mxu0 %v1154
    %1826 = vmatprep.subr.bf16.mxu0 %v1159
    %1827 = vmatpush1.bf16.msra.mxu0 %v1158
    %1828 = vmatprep.subr.bf16.mxu0 %v1163
    %1829 = vmatpush1.bf16.msra.mxu0 %v1162
    %1830 = vmatprep.subr.bf16.mxu0 %v1167
    %1831 = vmatpush1.bf16.msra.mxu0 %v1166
    %1832 = vmatprep.subr.bf16.mxu0 0
    %1833 = vmatpush1.bf16.msra.mxu0 0
    %1834 = vmatprep.subr.bf16.mxu0 0
    %1835 = vmatpush1.bf16.msra.mxu0 0
    %1836 = vmatprep.subr.bf16.mxu0 0
    %1837 = vmatpush1.bf16.msra.mxu0 0
    %1838 = vmatprep.subr.bf16.mxu0 0
    %1839 = vmatpush1.bf16.msra.mxu0 0
    %1840 = vmatprep.subr.bf16.mxu0 0
    %1841 = vmatpush1.bf16.msra.mxu0 0
    %1842 = vmatprep.subr.bf16.mxu0 0
    %1843 = vmatpush1.bf16.msra.mxu0 0
    %1844 = vmatprep.subr.bf16.mxu0 0
    %1845 = vmatpush1.bf16.msra.mxu0 0
    %1846 = vmatprep.subr.bf16.mxu0 0
    %1847 = vmatpush1.bf16.msra.mxu0 0
    %1848 = vmatprep.mubr.bf16.mxu0 0
    %1849 = vmatmul.mubr.bf16.gmra.mrb[0].mxu0 %v1815
    %v1850 = vpop.f32.mrb[0].mxu0
    %v1851 = vadd.f32 %v1733, %v1850
    %v1852 = vpop.f32.mrb[0].mxu0
    %v1853 = vadd.f32 %v1735, %v1852
    %v1854 = vpop.f32.mrb[0].mxu0
    %v1855 = vpop.f32.mrb[0].mxu0
    %1856 = vdwg.mxu0
    %1857 = vmatprep.subr.bf16.mxu0 %v1141
    %1858 = vmatpush1.bf16.msra.mxu0 %v1140
    %1859 = vmatprep.subr.bf16.mxu0 %v1145
    %1860 = vmatpush1.bf16.msra.mxu0 %v1144
    %1861 = vmatprep.subr.bf16.mxu0 %v1149
    %1862 = vmatpush1.bf16.msra.mxu0 %v1148
    %1863 = vmatprep.subr.bf16.mxu0 %v1153
    %1864 = vmatpush1.bf16.msra.mxu0 %v1152
    %1865 = vmatprep.subr.bf16.mxu0 %v1157
    %1866 = vmatpush1.bf16.msra.mxu0 %v1156
    %1867 = vmatprep.subr.bf16.mxu0 %v1161
    %1868 = vmatpush1.bf16.msra.mxu0 %v1160
    %1869 = vmatprep.subr.bf16.mxu0 %v1165
    %1870 = vmatpush1.bf16.msra.mxu0 %v1164
    %1871 = vmatprep.subr.bf16.mxu0 %v1169
    %1872 = vmatpush1.bf16.msra.mxu0 %v1168
    %1873 = vmatprep.subr.bf16.mxu0 0
    %1874 = vmatpush1.bf16.msra.mxu0 0
    %1875 = vmatprep.subr.bf16.mxu0 0
    %1876 = vmatpush1.bf16.msra.mxu0 0
    %1877 = vmatprep.subr.bf16.mxu0 0
    %1878 = vmatpush1.bf16.msra.mxu0 0
    %1879 = vmatprep.subr.bf16.mxu0 0
    %1880 = vmatpush1.bf16.msra.mxu0 0
    %1881 = vmatprep.subr.bf16.mxu0 0
    %1882 = vmatpush1.bf16.msra.mxu0 0
    %1883 = vmatprep.subr.bf16.mxu0 0
    %1884 = vmatpush1.bf16.msra.mxu0 0
    %1885 = vmatprep.subr.bf16.mxu0 0
    %1886 = vmatpush1.bf16.msra.mxu0 0
    %1887 = vmatprep.subr.bf16.mxu0 0
    %1888 = vmatpush1.bf16.msra.mxu0 0
    %1889 = vmatprep.mubr.bf16.mxu0 0
    %1890 = vmatmul.mubr.bf16.gmra.mrb[0].mxu0 %v1815
    %v1891 = vpop.f32.mrb[0].mxu0
    %v1892 = vadd.f32 %v1774, %v1891
    %v1893 = vpop.f32.mrb[0].mxu0
    %v1894 = vadd.f32 %v1776, %v1893
    %v1895 = vpop.f32.mrb[0].mxu0
    %v1896 = vpop.f32.mrb[0].mxu0
    %1897 = vdwg.mxu0
    %v1898 = vxor.u32 %v1851, 2147483648
    %v1899 = vxor.u32 %v1853, 2147483648
    %v1900 = vxor.u32 %v1892, 2147483648
    %v1901 = vmul.f32 %v1898, 1.442695
    %v1902 = vpow.pop %v1901
    %v1903 = vmul.f32 %v1899, 1.442695
    %v1904 = vpow.pop %v1903
    %v1905 = vmul.f32 %v1900, 1.442695
    %v1906 = vpow.pop %v1905
    %v1907 = vadd.f32 %v1902, 1.0
    %v1908 = vadd.f32 %v1904, 1.0
    %v1909 = vadd.f32 %v1906, 1.0
    %v1910 = vrcp.pop %v1907
    %v1911 = vmul.f32 1.0, %v1910
    %v1912 = vrcp.pop %v1908
    %v1913 = vmul.f32 1.0, %v1912
    %v1914 = vrcp.pop %v1909
    %v1915 = vmul.f32 1.0, %v1914
    %v1916 = vtanh.pop %v1894
    %v1917 = vmul.f32 %v1913, %v1612
    %v1918 = vmul.f32 %v1911, %v1916
    %v1919 = vadd.f32 %v1917, %v1918
    %v1920 = vtanh.pop %v1919
    %v1921 = vmul.f32 %v1915, %v1920
    %v1922 = vpack.c.bf16 %v1921, %v1921
    %1923 = vmatprep.subr.bf16.mxu0 %v551
    %1924 = vmatpush1.bf16.msra.mxu0 %v550
    %1925 = vmatprep.subr.bf16.mxu0 %v555
    %1926 = vmatpush1.bf16.msra.mxu0 %v554
    %1927 = vmatprep.subr.bf16.mxu0 %v559
    %1928 = vmatpush1.bf16.msra.mxu0 %v558
    %1929 = vmatprep.subr.bf16.mxu0 %v563
    %1930 = vmatpush1.bf16.msra.mxu0 %v562
    %1931 = vmatprep.subr.bf16.mxu0 %v567
    %1932 = vmatpush1.bf16.msra.mxu0 %v566
    %1933 = vmatprep.subr.bf16.mxu0 %v571
    %1934 = vmatpush1.bf16.msra.mxu0 %v570
    %1935 = vmatprep.subr.bf16.mxu0 %v575
    %1936 = vmatpush1.bf16.msra.mxu0 %v574
    %1937 = vmatprep.subr.bf16.mxu0 %v579
    %1938 = vmatpush1.bf16.msra.mxu0 %v578
    %1939 = vmatprep.subr.bf16.mxu0 0
    %1940 = vmatpush1.bf16.msra.mxu0 0
    %1941 = vmatprep.subr.bf16.mxu0 0
    %1942 = vmatpush1.bf16.msra.mxu0 0
    %1943 = vmatprep.subr.bf16.mxu0 0
    %1944 = vmatpush1.bf16.msra.mxu0 0
    %1945 = vmatprep.subr.bf16.mxu0 0
    %1946 = vmatpush1.bf16.msra.mxu0 0
    %1947 = vmatprep.subr.bf16.mxu0 0
    %1948 = vmatpush1.bf16.msra.mxu0 0
    %1949 = vmatprep.subr.bf16.mxu0 0
    %1950 = vmatpush1.bf16.msra.mxu0 0
    %1951 = vmatprep.subr.bf16.mxu0 0
    %1952 = vmatpush1.bf16.msra.mxu0 0
    %1953 = vmatprep.subr.bf16.mxu0 0
    %1954 = vmatpush1.bf16.msra.mxu0 0
    %1955 = vmatprep.mubr.bf16.mxu0 0
    %1956 = vmatmul.mubr.bf16.gmra.mrb[0].mxu0 %v1815
    %v1957 = vpop.f32.mrb[0].mxu0
    %v1958 = vadd.f32 0.0, %v1957
    %v1959 = vpop.f32.mrb[0].mxu0
    %v1960 = vadd.f32 0.0, %v1959
    %v1961 = vpop.f32.mrb[0].mxu0
    %v1962 = vpop.f32.mrb[0].mxu0
    %1963 = vdwg.mxu0
    %1964 = vmatprep.subr.bf16.mxu0 %v553
    %1965 = vmatpush1.bf16.msra.mxu0 %v552
    %1966 = vmatprep.subr.bf16.mxu0 %v557
    %1967 = vmatpush1.bf16.msra.mxu0 %v556
    %1968 = vmatprep.subr.bf16.mxu0 %v561
    %1969 = vmatpush1.bf16.msra.mxu0 %v560
    %1970 = vmatprep.subr.bf16.mxu0 %v565
    %1971 = vmatpush1.bf16.msra.mxu0 %v564
    %1972 = vmatprep.subr.bf16.mxu0 %v569
    %1973 = vmatpush1.bf16.msra.mxu0 %v568
    %1974 = vmatprep.subr.bf16.mxu0 %v573
    %1975 = vmatpush1.bf16.msra.mxu0 %v572
    %1976 = vmatprep.subr.bf16.mxu0 %v577
    %1977 = vmatpush1.bf16.msra.mxu0 %v576
    %1978 = vmatprep.subr.bf16.mxu0 %v581
    %1979 = vmatpush1.bf16.msra.mxu0 %v580
    %1980 = vmatprep.subr.bf16.mxu0 0
    %1981 = vmatpush1.bf16.msra.mxu0 0
    %1982 = vmatprep.subr.bf16.mxu0 0
    %1983 = vmatpush1.bf16.msra.mxu0 0
    %1984 = vmatprep.subr.bf16.mxu0 0
    %1985 = vmatpush1.bf16.msra.mxu0 0
    %1986 = vmatprep.subr.bf16.mxu0 0
    %1987 = vmatpush1.bf16.msra.mxu0 0
    %1988 = vmatprep.subr.bf16.mxu0 0
    %1989 = vmatpush1.bf16.msra.mxu0 0
    %1990 = vmatprep.subr.bf16.mxu0 0
    %1991 = vmatpush1.bf16.msra.mxu0 0
    %1992 = vmatprep.subr.bf16.mxu0 0
    %1993 = vmatpush1.bf16.msra.mxu0 0
    %1994 = vmatprep.subr.bf16.mxu0 0
    %1995 = vmatpush1.bf16.msra.mxu0 0
    %1996 = vmatprep.mubr.bf16.mxu0 0
    %1997 = vmatmul.mubr.bf16.gmra.mrb[0].mxu0 %v1815
    %v1998 = vpop.f32.mrb[0].mxu0
    %v1999 = vadd.f32 0.0, %v1998
    %v2000 = vpop.f32.mrb[0].mxu0
    %v2001 = vadd.f32 0.0, %v2000
    %v2002 = vpop.f32.mrb[0].mxu0
    %v2003 = vpop.f32.mrb[0].mxu0
    %2004 = vdwg.mxu0
    %2005 = vmatprep.subr.bf16.mxu0 %v829
    %2006 = vmatpush1.bf16.msra.mxu0 %v828
    %2007 = vmatprep.subr.bf16.mxu0 %v833
    %2008 = vmatpush1.bf16.msra.mxu0 %v832
    %2009 = vmatprep.subr.bf16.mxu0 %v837
    %2010 = vmatpush1.bf16.msra.mxu0 %v836
    %2011 = vmatprep.subr.bf16.mxu0 %v841
    %2012 = vmatpush1.bf16.msra.mxu0 %v840
    %2013 = vmatprep.subr.bf16.mxu0 %v845
    %2014 = vmatpush1.bf16.msra.mxu0 %v844
    %2015 = vmatprep.subr.bf16.mxu0 %v849
    %2016 = vmatpush1.bf16.msra.mxu0 %v848
    %2017 = vmatprep.subr.bf16.mxu0 %v853
    %2018 = vmatpush1.bf16.msra.mxu0 %v852
    %2019 = vmatprep.subr.bf16.mxu0 %v857
    %2020 = vmatpush1.bf16.msra.mxu0 %v856
    %2021 = vmatprep.subr.bf16.mxu0 0
    %2022 = vmatpush1.bf16.msra.mxu0 0
    %2023 = vmatprep.subr.bf16.mxu0 0
    %2024 = vmatpush1.bf16.msra.mxu0 0
    %2025 = vmatprep.subr.bf16.mxu0 0
    %2026 = vmatpush1.bf16.msra.mxu0 0
    %2027 = vmatprep.subr.bf16.mxu0 0
    %2028 = vmatpush1.bf16.msra.mxu0 0
    %2029 = vmatprep.subr.bf16.mxu0 0
    %2030 = vmatpush1.bf16.msra.mxu0 0
    %2031 = vmatprep.subr.bf16.mxu0 0
    %2032 = vmatpush1.bf16.msra.mxu0 0
    %2033 = vmatprep.subr.bf16.mxu0 0
    %2034 = vmatpush1.bf16.msra.mxu0 0
    %2035 = vmatprep.subr.bf16.mxu0 0
    %2036 = vmatpush1.bf16.msra.mxu0 0
    %2037 = vmatprep.mubr.bf16.mxu0 0
    %2038 = vmatmul.mubr.bf16.gmra.mrb[0].mxu0 %v1922
    %v2039 = vpop.f32.mrb[0].mxu0
    %v2040 = vadd.f32 %v728, %v2039
    %v2041 = vpop.f32.mrb[0].mxu0
    %v2042 = vadd.f32 %v729, %v2041
    %v2043 = vpop.f32.mrb[0].mxu0
    %v2044 = vpop.f32.mrb[0].mxu0
    %2045 = vdwg.mxu0
    %2046 = vmatprep.subr.bf16.mxu0 %v831
    %2047 = vmatpush1.bf16.msra.mxu0 %v830
    %2048 = vmatprep.subr.bf16.mxu0 %v835
    %2049 = vmatpush1.bf16.msra.mxu0 %v834
    %2050 = vmatprep.subr.bf16.mxu0 %v839
    %2051 = vmatpush1.bf16.msra.mxu0 %v838
    %2052 = vmatprep.subr.bf16.mxu0 %v843
    %2053 = vmatpush1.bf16.msra.mxu0 %v842
    %2054 = vmatprep.subr.bf16.mxu0 %v847
    %2055 = vmatpush1.bf16.msra.mxu0 %v846
    %2056 = vmatprep.subr.bf16.mxu0 %v851
    %2057 = vmatpush1.bf16.msra.mxu0 %v850
    %2058 = vmatprep.subr.bf16.mxu0 %v855
    %2059 = vmatpush1.bf16.msra.mxu0 %v854
    %2060 = vmatprep.subr.bf16.mxu0 %v859
    %2061 = vmatpush1.bf16.msra.mxu0 %v858
    %2062 = vmatprep.subr.bf16.mxu0 0
    %2063 = vmatpush1.bf16.msra.mxu0 0
    %2064 = vmatprep.subr.bf16.mxu0 0
    %2065 = vmatpush1.bf16.msra.mxu0 0
    %2066 = vmatprep.subr.bf16.mxu0 0
    %2067 = vmatpush1.bf16.msra.mxu0 0
    %2068 = vmatprep.subr.bf16.mxu0 0
    %2069 = vmatpush1.bf16.msra.mxu0 0
    %2070 = vmatprep.subr.bf16.mxu0 0
    %2071 = vmatpush1.bf16.msra.mxu0 0
    %2072 = vmatprep.subr.bf16.mxu0 0
    %2073 = vmatpush1.bf16.msra.mxu0 0
    %2074 = vmatprep.subr.bf16.mxu0 0
    %2075 = vmatpush1.bf16.msra.mxu0 0
    %2076 = vmatprep.subr.bf16.mxu0 0
    %2077 = vmatpush1.bf16.msra.mxu0 0
    %2078 = vmatprep.mubr.bf16.mxu0 0
    %2079 = vmatmul.mubr.bf16.gmra.mrb[0].mxu0 %v1922
    %v2080 = vpop.f32.mrb[0].mxu0
    %v2081 = vadd.f32 %v730, %v2080
    %v2082 = vpop.f32.mrb[0].mxu0
    %v2083 = vadd.f32 %v731, %v2082
    %v2084 = vpop.f32.mrb[0].mxu0
    %v2085 = vpop.f32.mrb[0].mxu0
    %2086 = vdwg.mxu0
    %s2087 = smul.u32 3, 4
    %s2088 = smul.addr %s2087, 8
    %s2089 = scalar_lea.vmem [#allocation2], %s2088
    %v2090 = vld [vmem:[%s2089] sm:$0xff]
    %v2091 = vld [vmem:[%s2089 + $0x8] sm:$0xff]
    %v2092 = vld [vmem:[%s2089 + $0x10] sm:$0xff]
    %v2093 = vld [vmem:[%s2089 + $0x18] sm:$0xff]
    %v2094 = vadd.f32 %v2090, %v1958
    %v2095 = vadd.f32 %v2091, %v1960
    %v2096 = vadd.f32 %v2092, %v1999
    %v2097 = vadd.f32 %v2093, %v2001
    %v2098 = vxor.u32 %v2094, 2147483648
    %v2099 = vxor.u32 %v2095, 2147483648
    %v2100 = vxor.u32 %v2096, 2147483648
    %v2101 = vmul.f32 %v2098, 1.442695
    %v2102 = vpow.pop %v2101
    %v2103 = vmul.f32 %v2099, 1.442695
    %v2104 = vpow.pop %v2103
    %v2105 = vmul.f32 %v2100, 1.442695
    %v2106 = vpow.pop %v2105
    %v2107 = vadd.f32 %v2102, 1.0
    %v2108 = vadd.f32 %v2104, 1.0
    %v2109 = vadd.f32 %v2106, 1.0
    %v2110 = vrcp.pop %v2107
    %v2111 = vmul.f32 1.0, %v2110
    %v2112 = vrcp.pop %v2108
    %v2113 = vmul.f32 1.0, %v2112
    %v2114 = vrcp.pop %v2109
    %v2115 = vmul.f32 1.0, %v2114
    %v2116 = vtanh.pop %v2097
    %v2117 = vmul.f32 %v2113, %v1812
    %v2118 = vmul.f32 %v2111, %v2116
    %v2119 = vadd.f32 %v2117, %v2118
    %v2120 = vtanh.pop %v2119
    %v2121 = vmul.f32 %v2115, %v2120
    %v2122 = vpack.c.bf16 %v2121, %v2121
    %2123 = vmatprep.subr.bf16.mxu0 %v1139
    %2124 = vmatpush1.bf16.msra.mxu0 %v1138
    %2125 = vmatprep.subr.bf16.mxu0 %v1143
    %2126 = vmatpush1.bf16.msra.mxu0 %v1142
    %2127 = vmatprep.subr.bf16.mxu0 %v1147
    %2128 = vmatpush1.bf16.msra.mxu0 %v1146
    %2129 = vmatprep.subr.bf16.mxu0 %v1151
    %2130 = vmatpush1.bf16.msra.mxu0 %v1150
    %2131 = vmatprep.subr.bf16.mxu0 %v1155
    %2132 = vmatpush1.bf16.msra.mxu0 %v1154
    %2133 = vmatprep.subr.bf16.mxu0 %v1159
    %2134 = vmatpush1.bf16.msra.mxu0 %v1158
    %2135 = vmatprep.subr.bf16.mxu0 %v1163
    %2136 = vmatpush1.bf16.msra.mxu0 %v1162
    %2137 = vmatprep.subr.bf16.mxu0 %v1167
    %2138 = vmatpush1.bf16.msra.mxu0 %v1166
    %2139 = vmatprep.subr.bf16.mxu0 0
    %2140 = vmatpush1.bf16.msra.mxu0 0
    %2141 = vmatprep.subr.bf16.mxu0 0
    %2142 = vmatpush1.bf16.msra.mxu0 0
    %2143 = vmatprep.subr.bf16.mxu0 0
    %2144 = vmatpush1.bf16.msra.mxu0 0
    %2145 = vmatprep.subr.bf16.mxu0 0
    %2146 = vmatpush1.bf16.msra.mxu0 0
    %2147 = vmatprep.subr.bf16.mxu0 0
    %2148 = vmatpush1.bf16.msra.mxu0 0
    %2149 = vmatprep.subr.bf16.mxu0 0
    %2150 = vmatpush1.bf16.msra.mxu0 0
    %2151 = vmatprep.subr.bf16.mxu0 0
    %2152 = vmatpush1.bf16.msra.mxu0 0
    %2153 = vmatprep.subr.bf16.mxu0 0
    %2154 = vmatpush1.bf16.msra.mxu0 0
    %2155 = vmatprep.mubr.bf16.mxu0 0
    %2156 = vmatmul.mubr.bf16.gmra.mrb[0].mxu0 %v2122
    %v2157 = vpop.f32.mrb[0].mxu0
    %v2158 = vadd.f32 %v2040, %v2157
    %v2159 = vpop.f32.mrb[0].mxu0
    %v2160 = vadd.f32 %v2042, %v2159
    %v2161 = vpop.f32.mrb[0].mxu0
    %v2162 = vpop.f32.mrb[0].mxu0
    %2163 = vdwg.mxu0
    %2164 = vmatprep.subr.bf16.mxu0 %v1141
    %2165 = vmatpush1.bf16.msra.mxu0 %v1140
    %2166 = vmatprep.subr.bf16.mxu0 %v1145
    %2167 = vmatpush1.bf16.msra.mxu0 %v1144
    %2168 = vmatprep.subr.bf16.mxu0 %v1149
    %2169 = vmatpush1.bf16.msra.mxu0 %v1148
    %2170 = vmatprep.subr.bf16.mxu0 %v1153
    %2171 = vmatpush1.bf16.msra.mxu0 %v1152
    %2172 = vmatprep.subr.bf16.mxu0 %v1157
    %2173 = vmatpush1.bf16.msra.mxu0 %v1156
    %2174 = vmatprep.subr.bf16.mxu0 %v1161
    %2175 = vmatpush1.bf16.msra.mxu0 %v1160
    %2176 = vmatprep.subr.bf16.mxu0 %v1165
    %2177 = vmatpush1.bf16.msra.mxu0 %v1164
    %2178 = vmatprep.subr.bf16.mxu0 %v1169
    %2179 = vmatpush1.bf16.msra.mxu0 %v1168
    %2180 = vmatprep.subr.bf16.mxu0 0
    %2181 = vmatpush1.bf16.msra.mxu0 0
    %2182 = vmatprep.subr.bf16.mxu0 0
    %2183 = vmatpush1.bf16.msra.mxu0 0
    %2184 = vmatprep.subr.bf16.mxu0 0
    %2185 = vmatpush1.bf16.msra.mxu0 0
    %2186 = vmatprep.subr.bf16.mxu0 0
    %2187 = vmatpush1.bf16.msra.mxu0 0
    %2188 = vmatprep.subr.bf16.mxu0 0
    %2189 = vmatpush1.bf16.msra.mxu0 0
    %2190 = vmatprep.subr.bf16.mxu0 0
    %2191 = vmatpush1.bf16.msra.mxu0 0
    %2192 = vmatprep.subr.bf16.mxu0 0
    %2193 = vmatpush1.bf16.msra.mxu0 0
    %2194 = vmatprep.subr.bf16.mxu0 0
    %2195 = vmatpush1.bf16.msra.mxu0 0
    %2196 = vmatprep.mubr.bf16.mxu0 0
    %2197 = vmatmul.mubr.bf16.gmra.mrb[0].mxu0 %v2122
    %v2198 = vpop.f32.mrb[0].mxu0
    %v2199 = vadd.f32 %v2081, %v2198
    %v2200 = vpop.f32.mrb[0].mxu0
    %v2201 = vadd.f32 %v2083, %v2200
    %v2202 = vpop.f32.mrb[0].mxu0
    %v2203 = vpop.f32.mrb[0].mxu0
    %2204 = vdwg.mxu0
    %v2205 = vxor.u32 %v2158, 2147483648
    %v2206 = vxor.u32 %v2160, 2147483648
    %v2207 = vxor.u32 %v2199, 2147483648
    %v2208 = vmul.f32 %v2205, 1.442695
    %v2209 = vpow.pop %v2208
    %v2210 = vmul.f32 %v2206, 1.442695
    %v2211 = vpow.pop %v2210
    %v2212 = vmul.f32 %v2207, 1.442695
    %v2213 = vpow.pop %v2212
    %v2214 = vadd.f32 %v2209, 1.0
    %v2215 = vadd.f32 %v2211, 1.0
    %v2216 = vadd.f32 %v2213, 1.0
    %v2217 = vrcp.pop %v2214
    %v2218 = vmul.f32 1.0, %v2217
    %v2219 = vrcp.pop %v2215
    %v2220 = vmul.f32 1.0, %v2219
    %v2221 = vrcp.pop %v2216
    %v2222 = vmul.f32 1.0, %v2221
    %v2223 = vtanh.pop %v2201
    %v2224 = vmul.f32 %v2220, %v1919
    %v2225 = vmul.f32 %v2218, %v2223
    %v2226 = vadd.f32 %v2224, %v2225
    %v2227 = vtanh.pop %v2226
    %v2228 = vmul.f32 %v2222, %v2227
    %v2229 = vpack.c.bf16 %v2228, %v2228
    %2230 = vmatprep.subr.bf16.mxu0 %v551
    %2231 = vmatpush1.bf16.msra.mxu0 %v550
    %2232 = vmatprep.subr.bf16.mxu0 %v555
    %2233 = vmatpush1.bf16.msra.mxu0 %v554
    %2234 = vmatprep.subr.bf16.mxu0 %v559
    %2235 = vmatpush1.bf16.msra.mxu0 %v558
    %2236 = vmatprep.subr.bf16.mxu0 %v563
    %2237 = vmatpush1.bf16.msra.mxu0 %v562
    %2238 = vmatprep.subr.bf16.mxu0 %v567
    %2239 = vmatpush1.bf16.msra.mxu0 %v566
    %2240 = vmatprep.subr.bf16.mxu0 %v571
    %2241 = vmatpush1.bf16.msra.mxu0 %v570
    %2242 = vmatprep.subr.bf16.mxu0 %v575
    %2243 = vmatpush1.bf16.msra.mxu0 %v574
    %2244 = vmatprep.subr.bf16.mxu0 %v579
    %2245 = vmatpush1.bf16.msra.mxu0 %v578
    %2246 = vmatprep.subr.bf16.mxu0 0
    %2247 = vmatpush1.bf16.msra.mxu0 0
    %2248 = vmatprep.subr.bf16.mxu0 0
    %2249 = vmatpush1.bf16.msra.mxu0 0
    %2250 = vmatprep.subr.bf16.mxu0 0
    %2251 = vmatpush1.bf16.msra.mxu0 0
    %2252 = vmatprep.subr.bf16.mxu0 0
    %2253 = vmatpush1.bf16.msra.mxu0 0
    %2254 = vmatprep.subr.bf16.mxu0 0
    %2255 = vmatpush1.bf16.msra.mxu0 0
    %2256 = vmatprep.subr.bf16.mxu0 0
    %2257 = vmatpush1.bf16.msra.mxu0 0
    %2258 = vmatprep.subr.bf16.mxu0 0
    %2259 = vmatpush1.bf16.msra.mxu0 0
    %2260 = vmatprep.subr.bf16.mxu0 0
    %2261 = vmatpush1.bf16.msra.mxu0 0
    %2262 = vmatprep.mubr.bf16.mxu0 0
    %2263 = vmatmul.mubr.bf16.gmra.mrb[0].mxu0 %v2122
    %v2264 = vpop.f32.mrb[0].mxu0
    %v2265 = vadd.f32 0.0, %v2264
    %v2266 = vpop.f32.mrb[0].mxu0
    %v2267 = vadd.f32 0.0, %v2266
    %v2268 = vpop.f32.mrb[0].mxu0
    %v2269 = vpop.f32.mrb[0].mxu0
    %2270 = vdwg.mxu0
    %2271 = vmatprep.subr.bf16.mxu0 %v553
    %2272 = vmatpush1.bf16.msra.mxu0 %v552
    %2273 = vmatprep.subr.bf16.mxu0 %v557
    %2274 = vmatpush1.bf16.msra.mxu0 %v556
    %2275 = vmatprep.subr.bf16.mxu0 %v561
    %2276 = vmatpush1.bf16.msra.mxu0 %v560
    %2277 = vmatprep.subr.bf16.mxu0 %v565
    %2278 = vmatpush1.bf16.msra.mxu0 %v564
    %2279 = vmatprep.subr.bf16.mxu0 %v569
    %2280 = vmatpush1.bf16.msra.mxu0 %v568
    %2281 = vmatprep.subr.bf16.mxu0 %v573
    %2282 = vmatpush1.bf16.msra.mxu0 %v572
    %2283 = vmatprep.subr.bf16.mxu0 %v577
    %2284 = vmatpush1.bf16.msra.mxu0 %v576
    %2285 = vmatprep.subr.bf16.mxu0 %v581
    %2286 = vmatpush1.bf16.msra.mxu0 %v580
    %2287 = vmatprep.subr.bf16.mxu0 0
    %2288 = vmatpush1.bf16.msra.mxu0 0
    %2289 = vmatprep.subr.bf16.mxu0 0
    %2290 = vmatpush1.bf16.msra.mxu0 0
    %2291 = vmatprep.subr.bf16.mxu0 0
    %2292 = vmatpush1.bf16.msra.mxu0 0
    %2293 = vmatprep.subr.bf16.mxu0 0
    %2294 = vmatpush1.bf16.msra.mxu0 0
    %2295 = vmatprep.subr.bf16.mxu0 0
    %2296 = vmatpush1.bf16.msra.mxu0 0
    %2297 = vmatprep.subr.bf16.mxu0 0
    %2298 = vmatpush1.bf16.msra.mxu0 0
    %2299 = vmatprep.subr.bf16.mxu0 0
    %2300 = vmatpush1.bf16.msra.mxu0 0
    %2301 = vmatprep.subr.bf16.mxu0 0
    %2302 = vmatpush1.bf16.msra.mxu0 0
    %2303 = vmatprep.mubr.bf16.mxu0 0
    %2304 = vmatmul.mubr.bf16.gmra.mrb[0].mxu0 %v2122
    %v2305 = vpop.f32.mrb[0].mxu0
    %v2306 = vadd.f32 0.0, %v2305
    %v2307 = vpop.f32.mrb[0].mxu0
    %v2308 = vadd.f32 0.0, %v2307
    %v2309 = vpop.f32.mrb[0].mxu0
    %v2310 = vpop.f32.mrb[0].mxu0
    %2311 = vdwg.mxu0
    %2312 = vmatprep.subr.bf16.mxu0 %v829
    %2313 = vmatpush1.bf16.msra.mxu0 %v828
    %2314 = vmatprep.subr.bf16.mxu0 %v833
    %2315 = vmatpush1.bf16.msra.mxu0 %v832
    %2316 = vmatprep.subr.bf16.mxu0 %v837
    %2317 = vmatpush1.bf16.msra.mxu0 %v836
    %2318 = vmatprep.subr.bf16.mxu0 %v841
    %2319 = vmatpush1.bf16.msra.mxu0 %v840
    %2320 = vmatprep.subr.bf16.mxu0 %v845
    %2321 = vmatpush1.bf16.msra.mxu0 %v844
    %2322 = vmatprep.subr.bf16.mxu0 %v849
    %2323 = vmatpush1.bf16.msra.mxu0 %v848
    %2324 = vmatprep.subr.bf16.mxu0 %v853
    %2325 = vmatpush1.bf16.msra.mxu0 %v852
    %2326 = vmatprep.subr.bf16.mxu0 %v857
    %2327 = vmatpush1.bf16.msra.mxu0 %v856
    %2328 = vmatprep.subr.bf16.mxu0 0
    %2329 = vmatpush1.bf16.msra.mxu0 0
    %2330 = vmatprep.subr.bf16.mxu0 0
    %2331 = vmatpush1.bf16.msra.mxu0 0
    %2332 = vmatprep.subr.bf16.mxu0 0
    %2333 = vmatpush1.bf16.msra.mxu0 0
    %2334 = vmatprep.subr.bf16.mxu0 0
    %2335 = vmatpush1.bf16.msra.mxu0 0
    %2336 = vmatprep.subr.bf16.mxu0 0
    %2337 = vmatpush1.bf16.msra.mxu0 0
    %2338 = vmatprep.subr.bf16.mxu0 0
    %2339 = vmatpush1.bf16.msra.mxu0 0
    %2340 = vmatprep.subr.bf16.mxu0 0
    %2341 = vmatpush1.bf16.msra.mxu0 0
    %2342 = vmatprep.subr.bf16.mxu0 0
    %2343 = vmatpush1.bf16.msra.mxu0 0
    %2344 = vmatprep.mubr.bf16.mxu0 0
    %2345 = vmatmul.mubr.bf16.gmra.mrb[0].mxu0 %v2229
    %v2346 = vpop.f32.mrb[0].mxu0
    %v2347 = vadd.f32 %v728, %v2346
    %v2348 = vpop.f32.mrb[0].mxu0
    %v2349 = vadd.f32 %v729, %v2348
    %v2350 = vpop.f32.mrb[0].mxu0
    %v2351 = vpop.f32.mrb[0].mxu0
    %2352 = vdwg.mxu0
    %2353 = vmatprep.subr.bf16.mxu0 %v831
    %2354 = vmatpush1.bf16.msra.mxu0 %v830
    %2355 = vmatprep.subr.bf16.mxu0 %v835
    %2356 = vmatpush1.bf16.msra.mxu0 %v834
    %2357 = vmatprep.subr.bf16.mxu0 %v839
    %2358 = vmatpush1.bf16.msra.mxu0 %v838
    %2359 = vmatprep.subr.bf16.mxu0 %v843
    %2360 = vmatpush1.bf16.msra.mxu0 %v842
    %2361 = vmatprep.subr.bf16.mxu0 %v847
    %2362 = vmatpush1.bf16.msra.mxu0 %v846
    %2363 = vmatprep.subr.bf16.mxu0 %v851
    %2364 = vmatpush1.bf16.msra.mxu0 %v850
    %2365 = vmatprep.subr.bf16.mxu0 %v855
    %2366 = vmatpush1.bf16.msra.mxu0 %v854
    %2367 = vmatprep.subr.bf16.mxu0 %v859
    %2368 = vmatpush1.bf16.msra.mxu0 %v858
    %2369 = vmatprep.subr.bf16.mxu0 0
    %2370 = vmatpush1.bf16.msra.mxu0 0
    %2371 = vmatprep.subr.bf16.mxu0 0
    %2372 = vmatpush1.bf16.msra.mxu0 0
    %2373 = vmatprep.subr.bf16.mxu0 0
    %2374 = vmatpush1.bf16.msra.mxu0 0
    %2375 = vmatprep.subr.bf16.mxu0 0
    %2376 = vmatpush1.bf16.msra.mxu0 0
    %2377 = vmatprep.subr.bf16.mxu0 0
    %2378 = vmatpush1.bf16.msra.mxu0 0
    %2379 = vmatprep.subr.bf16.mxu0 0
    %2380 = vmatpush1.bf16.msra.mxu0 0
    %2381 = vmatprep.subr.bf16.mxu0 0
    %2382 = vmatpush1.bf16.msra.mxu0 0
    %2383 = vmatprep.subr.bf16.mxu0 0
    %2384 = vmatpush1.bf16.msra.mxu0 0
    %2385 = vmatprep.mubr.bf16.mxu0 0
    %2386 = vmatmul.mubr.bf16.gmra.mrb[0].mxu0 %v2229
    %v2387 = vpop.f32.mrb[0].mxu0
    %v2388 = vadd.f32 %v730, %v2387
    %v2389 = vpop.f32.mrb[0].mxu0
    %v2390 = vadd.f32 %v731, %v2389
    %v2391 = vpop.f32.mrb[0].mxu0
    %v2392 = vpop.f32.mrb[0].mxu0
    %2393 = vdwg.mxu0
    %s2394 = smul.u32 4, 4
    %s2395 = smul.addr %s2394, 8
    %s2396 = scalar_lea.vmem [#allocation2], %s2395
    %v2397 = vld [vmem:[%s2396] sm:$0xff]
    %v2398 = vld [vmem:[%s2396 + $0x8] sm:$0xff]
    %v2399 = vld [vmem:[%s2396 + $0x10] sm:$0xff]
    %v2400 = vld [vmem:[%s2396 + $0x18] sm:$0xff]
    %v2401 = vadd.f32 %v2397, %v2265
    %v2402 = vadd.f32 %v2398, %v2267
    %v2403 = vadd.f32 %v2399, %v2306
    %v2404 = vadd.f32 %v2400, %v2308
    %v2405 = vxor.u32 %v2401, 2147483648
    %v2406 = vxor.u32 %v2402, 2147483648
    %v2407 = vxor.u32 %v2403, 2147483648
    %v2408 = vmul.f32 %v2405, 1.442695
    %v2409 = vpow.pop %v2408
    %v2410 = vmul.f32 %v2406, 1.442695
    %v2411 = vpow.pop %v2410
    %v2412 = vmul.f32 %v2407, 1.442695
    %v2413 = vpow.pop %v2412
    %v2414 = vadd.f32 %v2409, 1.0
    %v2415 = vadd.f32 %v2411, 1.0
    %v2416 = vadd.f32 %v2413, 1.0
    %v2417 = vrcp.pop %v2414
    %v2418 = vmul.f32 1.0, %v2417
    %v2419 = vrcp.pop %v2415
    %v2420 = vmul.f32 1.0, %v2419
    %v2421 = vrcp.pop %v2416
    %v2422 = vmul.f32 1.0, %v2421
    %v2423 = vtanh.pop %v2404
    %v2424 = vmul.f32 %v2420, %v2119
    %v2425 = vmul.f32 %v2418, %v2423
    %v2426 = vadd.f32 %v2424, %v2425
    %v2427 = vtanh.pop %v2426
    %v2428 = vmul.f32 %v2422, %v2427
    %v2429 = vpack.c.bf16 %v2428, %v2428
    %2430 = vmatprep.subr.bf16.mxu0 %v1139
    %2431 = vmatpush1.bf16.msra.mxu0 %v1138
    %2432 = vmatprep.subr.bf16.mxu0 %v1143
    %2433 = vmatpush1.bf16.msra.mxu0 %v1142
    %2434 = vmatprep.subr.bf16.mxu0 %v1147
    %2435 = vmatpush1.bf16.msra.mxu0 %v1146
    %2436 = vmatprep.subr.bf16.mxu0 %v1151
    %2437 = vmatpush1.bf16.msra.mxu0 %v1150
    %2438 = vmatprep.subr.bf16.mxu0 %v1155
    %2439 = vmatpush1.bf16.msra.mxu0 %v1154
    %2440 = vmatprep.subr.bf16.mxu0 %v1159
    %2441 = vmatpush1.bf16.msra.mxu0 %v1158
    %2442 = vmatprep.subr.bf16.mxu0 %v1163
    %2443 = vmatpush1.bf16.msra.mxu0 %v1162
    %2444 = vmatprep.subr.bf16.mxu0 %v1167
    %2445 = vmatpush1.bf16.msra.mxu0 %v1166
    %2446 = vmatprep.subr.bf16.mxu0 0
    %2447 = vmatpush1.bf16.msra.mxu0 0
    %2448 = vmatprep.subr.bf16.mxu0 0
    %2449 = vmatpush1.bf16.msra.mxu0 0
    %2450 = vmatprep.subr.bf16.mxu0 0
    %2451 = vmatpush1.bf16.msra.mxu0 0
    %2452 = vmatprep.subr.bf16.mxu0 0
    %2453 = vmatpush1.bf16.msra.mxu0 0
    %2454 = vmatprep.subr.bf16.mxu0 0
    %2455 = vmatpush1.bf16.msra.mxu0 0
    %2456 = vmatprep.subr.bf16.mxu0 0
    %2457 = vmatpush1.bf16.msra.mxu0 0
    %2458 = vmatprep.subr.bf16.mxu0 0
    %2459 = vmatpush1.bf16.msra.mxu0 0
    %2460 = vmatprep.subr.bf16.mxu0 0
    %2461 = vmatpush1.bf16.msra.mxu0 0
    %2462 = vmatprep.mubr.bf16.mxu0 0
    %2463 = vmatmul.mubr.bf16.gmra.mrb[0].mxu0 %v2429
    %v2464 = vpop.f32.mrb[0].mxu0
    %v2465 = vadd.f32 %v2347, %v2464
    %v2466 = vpop.f32.mrb[0].mxu0
    %v2467 = vadd.f32 %v2349, %v2466
    %v2468 = vpop.f32.mrb[0].mxu0
    %v2469 = vpop.f32.mrb[0].mxu0
    %2470 = vdwg.mxu0
    %2471 = vmatprep.subr.bf16.mxu0 %v1141
    %2472 = vmatpush1.bf16.msra.mxu0 %v1140
    %2473 = vmatprep.subr.bf16.mxu0 %v1145
    %2474 = vmatpush1.bf16.msra.mxu0 %v1144
    %2475 = vmatprep.subr.bf16.mxu0 %v1149
    %2476 = vmatpush1.bf16.msra.mxu0 %v1148
    %2477 = vmatprep.subr.bf16.mxu0 %v1153
    %2478 = vmatpush1.bf16.msra.mxu0 %v1152
    %2479 = vmatprep.subr.bf16.mxu0 %v1157
    %2480 = vmatpush1.bf16.msra.mxu0 %v1156
    %2481 = vmatprep.subr.bf16.mxu0 %v1161
    %2482 = vmatpush1.bf16.msra.mxu0 %v1160
    %2483 = vmatprep.subr.bf16.mxu0 %v1165
    %2484 = vmatpush1.bf16.msra.mxu0 %v1164
    %2485 = vmatprep.subr.bf16.mxu0 %v1169
    %2486 = vmatpush1.bf16.msra.mxu0 %v1168
    %2487 = vmatprep.subr.bf16.mxu0 0
    %2488 = vmatpush1.bf16.msra.mxu0 0
    %2489 = vmatprep.subr.bf16.mxu0 0
    %2490 = vmatpush1.bf16.msra.mxu0 0
    %2491 = vmatprep.subr.bf16.mxu0 0
    %2492 = vmatpush1.bf16.msra.mxu0 0
    %2493 = vmatprep.subr.bf16.mxu0 0
    %2494 = vmatpush1.bf16.msra.mxu0 0
    %2495 = vmatprep.subr.bf16.mxu0 0
    %2496 = vmatpush1.bf16.msra.mxu0 0
    %2497 = vmatprep.subr.bf16.mxu0 0
    %2498 = vmatpush1.bf16.msra.mxu0 0
    %2499 = vmatprep.subr.bf16.mxu0 0
    %2500 = vmatpush1.bf16.msra.mxu0 0
    %2501 = vmatprep.subr.bf16.mxu0 0
    %2502 = vmatpush1.bf16.msra.mxu0 0
    %2503 = vmatprep.mubr.bf16.mxu0 0
    %2504 = vmatmul.mubr.bf16.gmra.mrb[0].mxu0 %v2429
    %v2505 = vpop.f32.mrb[0].mxu0
    %v2506 = vadd.f32 %v2388, %v2505
    %v2507 = vpop.f32.mrb[0].mxu0
    %v2508 = vadd.f32 %v2390, %v2507
    %v2509 = vpop.f32.mrb[0].mxu0
    %v2510 = vpop.f32.mrb[0].mxu0
    %2511 = vdwg.mxu0
    %v2512 = vxor.u32 %v2465, 2147483648
    %v2513 = vxor.u32 %v2467, 2147483648
    %v2514 = vxor.u32 %v2506, 2147483648
    %v2515 = vmul.f32 %v2512, 1.442695
    %v2516 = vpow.pop %v2515
    %v2517 = vmul.f32 %v2513, 1.442695
    %v2518 = vpow.pop %v2517
    %v2519 = vmul.f32 %v2514, 1.442695
    %v2520 = vpow.pop %v2519
    %v2521 = vadd.f32 %v2516, 1.0
    %v2522 = vadd.f32 %v2518, 1.0
    %v2523 = vadd.f32 %v2520, 1.0
    %v2524 = vrcp.pop %v2521
    %v2525 = vmul.f32 1.0, %v2524
    %v2526 = vrcp.pop %v2522
    %v2527 = vmul.f32 1.0, %v2526
    %v2528 = vrcp.pop %v2523
    %v2529 = vmul.f32 1.0, %v2528
    %v2530 = vtanh.pop %v2508
    %v2531 = vmul.f32 %v2527, %v2226
    %v2532 = vmul.f32 %v2525, %v2530
    %v2533 = vadd.f32 %v2531, %v2532
    %v2534 = vtanh.pop %v2533
    %v2535 = vmul.f32 %v2529, %v2534
    %v2536 = vpack.c.bf16 %v2535, %v2535
    %2537 = vmatprep.subr.bf16.mxu0 %v551
    %2538 = vmatpush1.bf16.msra.mxu0 %v550
    %2539 = vmatprep.subr.bf16.mxu0 %v555
    %2540 = vmatpush1.bf16.msra.mxu0 %v554
    %2541 = vmatprep.subr.bf16.mxu0 %v559
    %2542 = vmatpush1.bf16.msra.mxu0 %v558
    %2543 = vmatprep.subr.bf16.mxu0 %v563
    %2544 = vmatpush1.bf16.msra.mxu0 %v562
    %2545 = vmatprep.subr.bf16.mxu0 %v567
    %2546 = vmatpush1.bf16.msra.mxu0 %v566
    %2547 = vmatprep.subr.bf16.mxu0 %v571
    %2548 = vmatpush1.bf16.msra.mxu0 %v570
    %2549 = vmatprep.subr.bf16.mxu0 %v575
    %2550 = vmatpush1.bf16.msra.mxu0 %v574
    %2551 = vmatprep.subr.bf16.mxu0 %v579
    %2552 = vmatpush1.bf16.msra.mxu0 %v578
    %2553 = vmatprep.subr.bf16.mxu0 0
    %2554 = vmatpush1.bf16.msra.mxu0 0
    %2555 = vmatprep.subr.bf16.mxu0 0
    %2556 = vmatpush1.bf16.msra.mxu0 0
    %2557 = vmatprep.subr.bf16.mxu0 0
    %2558 = vmatpush1.bf16.msra.mxu0 0
    %2559 = vmatprep.subr.bf16.mxu0 0
    %2560 = vmatpush1.bf16.msra.mxu0 0
    %2561 = vmatprep.subr.bf16.mxu0 0
    %2562 = vmatpush1.bf16.msra.mxu0 0
    %2563 = vmatprep.subr.bf16.mxu0 0
    %2564 = vmatpush1.bf16.msra.mxu0 0
    %2565 = vmatprep.subr.bf16.mxu0 0
    %2566 = vmatpush1.bf16.msra.mxu0 0
    %2567 = vmatprep.subr.bf16.mxu0 0
    %2568 = vmatpush1.bf16.msra.mxu0 0
    %2569 = vmatprep.mubr.bf16.mxu0 0
    %2570 = vmatmul.mubr.bf16.gmra.mrb[0].mxu0 %v2429
    %v2571 = vpop.f32.mrb[0].mxu0
    %v2572 = vadd.f32 0.0, %v2571
    %v2573 = vpop.f32.mrb[0].mxu0
    %v2574 = vadd.f32 0.0, %v2573
    %v2575 = vpop.f32.mrb[0].mxu0
    %v2576 = vpop.f32.mrb[0].mxu0
    %2577 = vdwg.mxu0
    %2578 = vmatprep.subr.bf16.mxu0 %v553
    %2579 = vmatpush1.bf16.msra.mxu0 %v552
    %2580 = vmatprep.subr.bf16.mxu0 %v557
    %2581 = vmatpush1.bf16.msra.mxu0 %v556
    %2582 = vmatprep.subr.bf16.mxu0 %v561
    %2583 = vmatpush1.bf16.msra.mxu0 %v560
    %2584 = vmatprep.subr.bf16.mxu0 %v565
    %2585 = vmatpush1.bf16.msra.mxu0 %v564
    %2586 = vmatprep.subr.bf16.mxu0 %v569
    %2587 = vmatpush1.bf16.msra.mxu0 %v568
    %2588 = vmatprep.subr.bf16.mxu0 %v573
    %2589 = vmatpush1.bf16.msra.mxu0 %v572
    %2590 = vmatprep.subr.bf16.mxu0 %v577
    %2591 = vmatpush1.bf16.msra.mxu0 %v576
    %2592 = vmatprep.subr.bf16.mxu0 %v581
    %2593 = vmatpush1.bf16.msra.mxu0 %v580
    %2594 = vmatprep.subr.bf16.mxu0 0
    %2595 = vmatpush1.bf16.msra.mxu0 0
    %2596 = vmatprep.subr.bf16.mxu0 0
    %2597 = vmatpush1.bf16.msra.mxu0 0
    %2598 = vmatprep.subr.bf16.mxu0 0
    %2599 = vmatpush1.bf16.msra.mxu0 0
    %2600 = vmatprep.subr.bf16.mxu0 0
    %2601 = vmatpush1.bf16.msra.mxu0 0
    %2602 = vmatprep.subr.bf16.mxu0 0
    %2603 = vmatpush1.bf16.msra.mxu0 0
    %2604 = vmatprep.subr.bf16.mxu0 0
    %2605 = vmatpush1.bf16.msra.mxu0 0
    %2606 = vmatprep.subr.bf16.mxu0 0
    %2607 = vmatpush1.bf16.msra.mxu0 0
    %2608 = vmatprep.subr.bf16.mxu0 0
    %2609 = vmatpush1.bf16.msra.mxu0 0
    %2610 = vmatprep.mubr.bf16.mxu0 0
    %2611 = vmatmul.mubr.bf16.gmra.mrb[0].mxu0 %v2429
    %v2612 = vpop.f32.mrb[0].mxu0
    %v2613 = vadd.f32 0.0, %v2612
    %v2614 = vpop.f32.mrb[0].mxu0
    %v2615 = vadd.f32 0.0, %v2614
    %v2616 = vpop.f32.mrb[0].mxu0
    %v2617 = vpop.f32.mrb[0].mxu0
    %2618 = vdwg.mxu0
    %2619 = vmatprep.subr.bf16.mxu0 %v829
    %2620 = vmatpush1.bf16.msra.mxu0 %v828
    %2621 = vmatprep.subr.bf16.mxu0 %v833
    %2622 = vmatpush1.bf16.msra.mxu0 %v832
    %2623 = vmatprep.subr.bf16.mxu0 %v837
    %2624 = vmatpush1.bf16.msra.mxu0 %v836
    %2625 = vmatprep.subr.bf16.mxu0 %v841
    %2626 = vmatpush1.bf16.msra.mxu0 %v840
    %2627 = vmatprep.subr.bf16.mxu0 %v845
    %2628 = vmatpush1.bf16.msra.mxu0 %v844
    %2629 = vmatprep.subr.bf16.mxu0 %v849
    %2630 = vmatpush1.bf16.msra.mxu0 %v848
    %2631 = vmatprep.subr.bf16.mxu0 %v853
    %2632 = vmatpush1.bf16.msra.mxu0 %v852
    %2633 = vmatprep.subr.bf16.mxu0 %v857
    %2634 = vmatpush1.bf16.msra.mxu0 %v856
    %2635 = vmatprep.subr.bf16.mxu0 0
    %2636 = vmatpush1.bf16.msra.mxu0 0
    %2637 = vmatprep.subr.bf16.mxu0 0
    %2638 = vmatpush1.bf16.msra.mxu0 0
    %2639 = vmatprep.subr.bf16.mxu0 0
    %2640 = vmatpush1.bf16.msra.mxu0 0
    %2641 = vmatprep.subr.bf16.mxu0 0
    %2642 = vmatpush1.bf16.msra.mxu0 0
    %2643 = vmatprep.subr.bf16.mxu0 0
    %2644 = vmatpush1.bf16.msra.mxu0 0
    %2645 = vmatprep.subr.bf16.mxu0 0
    %2646 = vmatpush1.bf16.msra.mxu0 0
    %2647 = vmatprep.subr.bf16.mxu0 0
    %2648 = vmatpush1.bf16.msra.mxu0 0
    %2649 = vmatprep.subr.bf16.mxu0 0
    %2650 = vmatpush1.bf16.msra.mxu0 0
    %2651 = vmatprep.mubr.bf16.mxu0 0
    %2652 = vmatmul.mubr.bf16.gmra.mrb[0].mxu0 %v2536
    %v2653 = vpop.f32.mrb[0].mxu0
    %v2654 = vadd.f32 %v728, %v2653
    %v2655 = vpop.f32.mrb[0].mxu0
    %v2656 = vadd.f32 %v729, %v2655
    %v2657 = vpop.f32.mrb[0].mxu0
    %v2658 = vpop.f32.mrb[0].mxu0
    %2659 = vdwg.mxu0
    %2660 = vmatprep.subr.bf16.mxu0 %v831
    %2661 = vmatpush1.bf16.msra.mxu0 %v830
    %2662 = vmatprep.subr.bf16.mxu0 %v835
    %2663 = vmatpush1.bf16.msra.mxu0 %v834
    %2664 = vmatprep.subr.bf16.mxu0 %v839
    %2665 = vmatpush1.bf16.msra.mxu0 %v838
    %2666 = vmatprep.subr.bf16.mxu0 %v843
    %2667 = vmatpush1.bf16.msra.mxu0 %v842
    %2668 = vmatprep.subr.bf16.mxu0 %v847
    %2669 = vmatpush1.bf16.msra.mxu0 %v846
    %2670 = vmatprep.subr.bf16.mxu0 %v851
    %2671 = vmatpush1.bf16.msra.mxu0 %v850
    %2672 = vmatprep.subr.bf16.mxu0 %v855
    %2673 = vmatpush1.bf16.msra.mxu0 %v854
    %2674 = vmatprep.subr.bf16.mxu0 %v859
    %2675 = vmatpush1.bf16.msra.mxu0 %v858
    %2676 = vmatprep.subr.bf16.mxu0 0
    %2677 = vmatpush1.bf16.msra.mxu0 0
    %2678 = vmatprep.subr.bf16.mxu0 0
    %2679 = vmatpush1.bf16.msra.mxu0 0
    %2680 = vmatprep.subr.bf16.mxu0 0
    %2681 = vmatpush1.bf16.msra.mxu0 0
    %2682 = vmatprep.subr.bf16.mxu0 0
    %2683 = vmatpush1.bf16.msra.mxu0 0
    %2684 = vmatprep.subr.bf16.mxu0 0
    %2685 = vmatpush1.bf16.msra.mxu0 0
    %2686 = vmatprep.subr.bf16.mxu0 0
    %2687 = vmatpush1.bf16.msra.mxu0 0
    %2688 = vmatprep.subr.bf16.mxu0 0
    %2689 = vmatpush1.bf16.msra.mxu0 0
    %2690 = vmatprep.subr.bf16.mxu0 0
    %2691 = vmatpush1.bf16.msra.mxu0 0
    %2692 = vmatprep.mubr.bf16.mxu0 0
    %2693 = vmatmul.mubr.bf16.gmra.mrb[0].mxu0 %v2536
    %v2694 = vpop.f32.mrb[0].mxu0
    %v2695 = vadd.f32 %v730, %v2694
    %v2696 = vpop.f32.mrb[0].mxu0
    %v2697 = vadd.f32 %v731, %v2696
    %v2698 = vpop.f32.mrb[0].mxu0
    %v2699 = vpop.f32.mrb[0].mxu0
    %2700 = vdwg.mxu0
    %s2701 = smul.u32 5, 4
    %s2702 = smul.addr %s2701, 8
    %s2703 = scalar_lea.vmem [#allocation2], %s2702
    %v2704 = vld [vmem:[%s2703] sm:$0xff]
    %v2705 = vld [vmem:[%s2703 + $0x8] sm:$0xff]
    %v2706 = vld [vmem:[%s2703 + $0x10] sm:$0xff]
    %v2707 = vld [vmem:[%s2703 + $0x18] sm:$0xff]
    %v2708 = vadd.f32 %v2704, %v2572
    %v2709 = vadd.f32 %v2705, %v2574
    %v2710 = vadd.f32 %v2706, %v2613
    %v2711 = vadd.f32 %v2707, %v2615
    %v2712 = vxor.u32 %v2708, 2147483648
    %v2713 = vxor.u32 %v2709, 2147483648
    %v2714 = vxor.u32 %v2710, 2147483648
    %v2715 = vmul.f32 %v2712, 1.442695
    %v2716 = vpow.pop %v2715
    %v2717 = vmul.f32 %v2713, 1.442695
    %v2718 = vpow.pop %v2717
    %v2719 = vmul.f32 %v2714, 1.442695
    %v2720 = vpow.pop %v2719
    %v2721 = vadd.f32 %v2716, 1.0
    %v2722 = vadd.f32 %v2718, 1.0
    %v2723 = vadd.f32 %v2720, 1.0
    %v2724 = vrcp.pop %v2721
    %v2725 = vmul.f32 1.0, %v2724
    %v2726 = vrcp.pop %v2722
    %v2727 = vmul.f32 1.0, %v2726
    %v2728 = vrcp.pop %v2723
    %v2729 = vmul.f32 1.0, %v2728
    %v2730 = vtanh.pop %v2711
    %v2731 = vmul.f32 %v2727, %v2426
    %v2732 = vmul.f32 %v2725, %v2730
    %v2733 = vadd.f32 %v2731, %v2732
    %v2734 = vtanh.pop %v2733
    %v2735 = vmul.f32 %v2729, %v2734
    %v2736 = vpack.c.bf16 %v2735, %v2735
    %2737 = vmatprep.subr.bf16.mxu0 %v1139
    %2738 = vmatpush1.bf16.msra.mxu0 %v1138
    %2739 = vmatprep.subr.bf16.mxu0 %v1143
    %2740 = vmatpush1.bf16.msra.mxu0 %v1142
    %2741 = vmatprep.subr.bf16.mxu0 %v1147
    %2742 = vmatpush1.bf16.msra.mxu0 %v1146
    %2743 = vmatprep.subr.bf16.mxu0 %v1151
    %2744 = vmatpush1.bf16.msra.mxu0 %v1150
    %2745 = vmatprep.subr.bf16.mxu0 %v1155
    %2746 = vmatpush1.bf16.msra.mxu0 %v1154
    %2747 = vmatprep.subr.bf16.mxu0 %v1159
    %2748 = vmatpush1.bf16.msra.mxu0 %v1158
    %2749 = vmatprep.subr.bf16.mxu0 %v1163
    %2750 = vmatpush1.bf16.msra.mxu0 %v1162
    %2751 = vmatprep.subr.bf16.mxu0 %v1167
    %2752 = vmatpush1.bf16.msra.mxu0 %v1166
    %2753 = vmatprep.subr.bf16.mxu0 0
    %2754 = vmatpush1.bf16.msra.mxu0 0
    %2755 = vmatprep.subr.bf16.mxu0 0
    %2756 = vmatpush1.bf16.msra.mxu0 0
    %2757 = vmatprep.subr.bf16.mxu0 0
    %2758 = vmatpush1.bf16.msra.mxu0 0
    %2759 = vmatprep.subr.bf16.mxu0 0
    %2760 = vmatpush1.bf16.msra.mxu0 0
    %2761 = vmatprep.subr.bf16.mxu0 0
    %2762 = vmatpush1.bf16.msra.mxu0 0
    %2763 = vmatprep.subr.bf16.mxu0 0
    %2764 = vmatpush1.bf16.msra.mxu0 0
    %2765 = vmatprep.subr.bf16.mxu0 0
    %2766 = vmatpush1.bf16.msra.mxu0 0
    %2767 = vmatprep.subr.bf16.mxu0 0
    %2768 = vmatpush1.bf16.msra.mxu0 0
    %2769 = vmatprep.mubr.bf16.mxu0 0
    %2770 = vmatmul.mubr.bf16.gmra.mrb[0].mxu0 %v2736
    %v2771 = vpop.f32.mrb[0].mxu0
    %v2772 = vadd.f32 %v2654, %v2771
    %v2773 = vpop.f32.mrb[0].mxu0
    %v2774 = vadd.f32 %v2656, %v2773
    %v2775 = vpop.f32.mrb[0].mxu0
    %v2776 = vpop.f32.mrb[0].mxu0
    %2777 = vdwg.mxu0
    %2778 = vmatprep.subr.bf16.mxu0 %v1141
    %2779 = vmatpush1.bf16.msra.mxu0 %v1140
    %2780 = vmatprep.subr.bf16.mxu0 %v1145
    %2781 = vmatpush1.bf16.msra.mxu0 %v1144
    %2782 = vmatprep.subr.bf16.mxu0 %v1149
    %2783 = vmatpush1.bf16.msra.mxu0 %v1148
    %2784 = vmatprep.subr.bf16.mxu0 %v1153
    %2785 = vmatpush1.bf16.msra.mxu0 %v1152
    %2786 = vmatprep.subr.bf16.mxu0 %v1157
    %2787 = vmatpush1.bf16.msra.mxu0 %v1156
    %2788 = vmatprep.subr.bf16.mxu0 %v1161
    %2789 = vmatpush1.bf16.msra.mxu0 %v1160
    %2790 = vmatprep.subr.bf16.mxu0 %v1165
    %2791 = vmatpush1.bf16.msra.mxu0 %v1164
    %2792 = vmatprep.subr.bf16.mxu0 %v1169
    %2793 = vmatpush1.bf16.msra.mxu0 %v1168
    %2794 = vmatprep.subr.bf16.mxu0 0
    %2795 = vmatpush1.bf16.msra.mxu0 0
    %2796 = vmatprep.subr.bf16.mxu0 0
    %2797 = vmatpush1.bf16.msra.mxu0 0
    %2798 = vmatprep.subr.bf16.mxu0 0
    %2799 = vmatpush1.bf16.msra.mxu0 0
    %2800 = vmatprep.subr.bf16.mxu0 0
    %2801 = vmatpush1.bf16.msra.mxu0 0
    %2802 = vmatprep.subr.bf16.mxu0 0
    %2803 = vmatpush1.bf16.msra.mxu0 0
    %2804 = vmatprep.subr.bf16.mxu0 0
    %2805 = vmatpush1.bf16.msra.mxu0 0
    %2806 = vmatprep.subr.bf16.mxu0 0
    %2807 = vmatpush1.bf16.msra.mxu0 0
    %2808 = vmatprep.subr.bf16.mxu0 0
    %2809 = vmatpush1.bf16.msra.mxu0 0
    %2810 = vmatprep.mubr.bf16.mxu0 0
    %2811 = vmatmul.mubr.bf16.gmra.mrb[0].mxu0 %v2736
    %v2812 = vpop.f32.mrb[0].mxu0
    %v2813 = vadd.f32 %v2695, %v2812
    %v2814 = vpop.f32.mrb[0].mxu0
    %v2815 = vadd.f32 %v2697, %v2814
    %v2816 = vpop.f32.mrb[0].mxu0
    %v2817 = vpop.f32.mrb[0].mxu0
    %2818 = vdwg.mxu0
    %v2819 = vxor.u32 %v2772, 2147483648
    %v2820 = vxor.u32 %v2774, 2147483648
    %v2821 = vxor.u32 %v2813, 2147483648
    %v2822 = vmul.f32 %v2819, 1.442695
    %v2823 = vpow.pop %v2822
    %v2824 = vmul.f32 %v2820, 1.442695
    %v2825 = vpow.pop %v2824
    %v2826 = vmul.f32 %v2821, 1.442695
    %v2827 = vpow.pop %v2826
    %v2828 = vadd.f32 %v2823, 1.0
    %v2829 = vadd.f32 %v2825, 1.0
    %v2830 = vadd.f32 %v2827, 1.0
    %v2831 = vrcp.pop %v2828
    %v2832 = vmul.f32 1.0, %v2831
    %v2833 = vrcp.pop %v2829
    %v2834 = vmul.f32 1.0, %v2833
    %v2835 = vrcp.pop %v2830
    %v2836 = vmul.f32 1.0, %v2835
    %v2837 = vtanh.pop %v2815
    %v2838 = vmul.f32 %v2834, %v2533
    %v2839 = vmul.f32 %v2832, %v2837
    %v2840 = vadd.f32 %v2838, %v2839
    %v2841 = vtanh.pop %v2840
    %v2842 = vmul.f32 %v2836, %v2841
    %v2843 = vpack.c.bf16 %v2842, %v2842
    %2844 = vmatprep.subr.bf16.mxu0 %v551
    %2845 = vmatpush1.bf16.msra.mxu0 %v550
    %2846 = vmatprep.subr.bf16.mxu0 %v555
    %2847 = vmatpush1.bf16.msra.mxu0 %v554
    %2848 = vmatprep.subr.bf16.mxu0 %v559
    %2849 = vmatpush1.bf16.msra.mxu0 %v558
    %2850 = vmatprep.subr.bf16.mxu0 %v563
    %2851 = vmatpush1.bf16.msra.mxu0 %v562
    %2852 = vmatprep.subr.bf16.mxu0 %v567
    %2853 = vmatpush1.bf16.msra.mxu0 %v566
    %2854 = vmatprep.subr.bf16.mxu0 %v571
    %2855 = vmatpush1.bf16.msra.mxu0 %v570
    %2856 = vmatprep.subr.bf16.mxu0 %v575
    %2857 = vmatpush1.bf16.msra.mxu0 %v574
    %2858 = vmatprep.subr.bf16.mxu0 %v579
    %2859 = vmatpush1.bf16.msra.mxu0 %v578
    %2860 = vmatprep.subr.bf16.mxu0 0
    %2861 = vmatpush1.bf16.msra.mxu0 0
    %2862 = vmatprep.subr.bf16.mxu0 0
    %2863 = vmatpush1.bf16.msra.mxu0 0
    %2864 = vmatprep.subr.bf16.mxu0 0
    %2865 = vmatpush1.bf16.msra.mxu0 0
    %2866 = vmatprep.subr.bf16.mxu0 0
    %2867 = vmatpush1.bf16.msra.mxu0 0
    %2868 = vmatprep.subr.bf16.mxu0 0
    %2869 = vmatpush1.bf16.msra.mxu0 0
    %2870 = vmatprep.subr.bf16.mxu0 0
    %2871 = vmatpush1.bf16.msra.mxu0 0
    %2872 = vmatprep.subr.bf16.mxu0 0
    %2873 = vmatpush1.bf16.msra.mxu0 0
    %2874 = vmatprep.subr.bf16.mxu0 0
    %2875 = vmatpush1.bf16.msra.mxu0 0
    %2876 = vmatprep.mubr.bf16.mxu0 0
    %2877 = vmatmul.mubr.bf16.gmra.mrb[0].mxu0 %v2736
    %v2878 = vpop.f32.mrb[0].mxu0
    %v2879 = vadd.f32 0.0, %v2878
    %v2880 = vpop.f32.mrb[0].mxu0
    %v2881 = vadd.f32 0.0, %v2880
    %v2882 = vpop.f32.mrb[0].mxu0
    %v2883 = vpop.f32.mrb[0].mxu0
    %2884 = vdwg.mxu0
    %2885 = vmatprep.subr.bf16.mxu0 %v553
    %2886 = vmatpush1.bf16.msra.mxu0 %v552
    %2887 = vmatprep.subr.bf16.mxu0 %v557
    %2888 = vmatpush1.bf16.msra.mxu0 %v556
    %2889 = vmatprep.subr.bf16.mxu0 %v561
    %2890 = vmatpush1.bf16.msra.mxu0 %v560
    %2891 = vmatprep.subr.bf16.mxu0 %v565
    %2892 = vmatpush1.bf16.msra.mxu0 %v564
    %2893 = vmatprep.subr.bf16.mxu0 %v569
    %2894 = vmatpush1.bf16.msra.mxu0 %v568
    %2895 = vmatprep.subr.bf16.mxu0 %v573
    %2896 = vmatpush1.bf16.msra.mxu0 %v572
    %2897 = vmatprep.subr.bf16.mxu0 %v577
    %2898 = vmatpush1.bf16.msra.mxu0 %v576
    %2899 = vmatprep.subr.bf16.mxu0 %v581
    %2900 = vmatpush1.bf16.msra.mxu0 %v580
    %2901 = vmatprep.subr.bf16.mxu0 0
    %2902 = vmatpush1.bf16.msra.mxu0 0
    %2903 = vmatprep.subr.bf16.mxu0 0
    %2904 = vmatpush1.bf16.msra.mxu0 0
    %2905 = vmatprep.subr.bf16.mxu0 0
    %2906 = vmatpush1.bf16.msra.mxu0 0
    %2907 = vmatprep.subr.bf16.mxu0 0
    %2908 = vmatpush1.bf16.msra.mxu0 0
    %2909 = vmatprep.subr.bf16.mxu0 0
    %2910 = vmatpush1.bf16.msra.mxu0 0
    %2911 = vmatprep.subr.bf16.mxu0 0
    %2912 = vmatpush1.bf16.msra.mxu0 0
    %2913 = vmatprep.subr.bf16.mxu0 0
    %2914 = vmatpush1.bf16.msra.mxu0 0
    %2915 = vmatprep.subr.bf16.mxu0 0
    %2916 = vmatpush1.bf16.msra.mxu0 0
    %2917 = vmatprep.mubr.bf16.mxu0 0
    %2918 = vmatmul.mubr.bf16.gmra.mrb[0].mxu0 %v2736
    %v2919 = vpop.f32.mrb[0].mxu0
    %v2920 = vadd.f32 0.0, %v2919
    %v2921 = vpop.f32.mrb[0].mxu0
    %v2922 = vadd.f32 0.0, %v2921
    %v2923 = vpop.f32.mrb[0].mxu0
    %v2924 = vpop.f32.mrb[0].mxu0
    %2925 = vdwg.mxu0
    %2926 = vmatprep.subr.bf16.mxu0 %v829
    %2927 = vmatpush1.bf16.msra.mxu0 %v828
    %2928 = vmatprep.subr.bf16.mxu0 %v833
    %2929 = vmatpush1.bf16.msra.mxu0 %v832
    %2930 = vmatprep.subr.bf16.mxu0 %v837
    %2931 = vmatpush1.bf16.msra.mxu0 %v836
    %2932 = vmatprep.subr.bf16.mxu0 %v841
    %2933 = vmatpush1.bf16.msra.mxu0 %v840
    %2934 = vmatprep.subr.bf16.mxu0 %v845
    %2935 = vmatpush1.bf16.msra.mxu0 %v844
    %2936 = vmatprep.subr.bf16.mxu0 %v849
    %2937 = vmatpush1.bf16.msra.mxu0 %v848
    %2938 = vmatprep.subr.bf16.mxu0 %v853
    %2939 = vmatpush1.bf16.msra.mxu0 %v852
    %2940 = vmatprep.subr.bf16.mxu0 %v857
    %2941 = vmatpush1.bf16.msra.mxu0 %v856
    %2942 = vmatprep.subr.bf16.mxu0 0
    %2943 = vmatpush1.bf16.msra.mxu0 0
    %2944 = vmatprep.subr.bf16.mxu0 0
    %2945 = vmatpush1.bf16.msra.mxu0 0
    %2946 = vmatprep.subr.bf16.mxu0 0
    %2947 = vmatpush1.bf16.msra.mxu0 0
    %2948 = vmatprep.subr.bf16.mxu0 0
    %2949 = vmatpush1.bf16.msra.mxu0 0
    %2950 = vmatprep.subr.bf16.mxu0 0
    %2951 = vmatpush1.bf16.msra.mxu0 0
    %2952 = vmatprep.subr.bf16.mxu0 0
    %2953 = vmatpush1.bf16.msra.mxu0 0
    %2954 = vmatprep.subr.bf16.mxu0 0
    %2955 = vmatpush1.bf16.msra.mxu0 0
    %2956 = vmatprep.subr.bf16.mxu0 0
    %2957 = vmatpush1.bf16.msra.mxu0 0
    %2958 = vmatprep.mubr.bf16.mxu0 0
    %2959 = vmatmul.mubr.bf16.gmra.mrb[0].mxu0 %v2843
    %v2960 = vpop.f32.mrb[0].mxu0
    %v2961 = vadd.f32 %v728, %v2960
    %v2962 = vpop.f32.mrb[0].mxu0
    %v2963 = vadd.f32 %v729, %v2962
    %v2964 = vpop.f32.mrb[0].mxu0
    %v2965 = vpop.f32.mrb[0].mxu0
    %2966 = vdwg.mxu0
    %2967 = vmatprep.subr.bf16.mxu0 %v831
    %2968 = vmatpush1.bf16.msra.mxu0 %v830
    %2969 = vmatprep.subr.bf16.mxu0 %v835
    %2970 = vmatpush1.bf16.msra.mxu0 %v834
    %2971 = vmatprep.subr.bf16.mxu0 %v839
    %2972 = vmatpush1.bf16.msra.mxu0 %v838
    %2973 = vmatprep.subr.bf16.mxu0 %v843
    %2974 = vmatpush1.bf16.msra.mxu0 %v842
    %2975 = vmatprep.subr.bf16.mxu0 %v847
    %2976 = vmatpush1.bf16.msra.mxu0 %v846
    %2977 = vmatprep.subr.bf16.mxu0 %v851
    %2978 = vmatpush1.bf16.msra.mxu0 %v850
    %2979 = vmatprep.subr.bf16.mxu0 %v855
    %2980 = vmatpush1.bf16.msra.mxu0 %v854
    %2981 = vmatprep.subr.bf16.mxu0 %v859
    %2982 = vmatpush1.bf16.msra.mxu0 %v858
    %2983 = vmatprep.subr.bf16.mxu0 0
    %2984 = vmatpush1.bf16.msra.mxu0 0
    %2985 = vmatprep.subr.bf16.mxu0 0
    %2986 = vmatpush1.bf16.msra.mxu0 0
    %2987 = vmatprep.subr.bf16.mxu0 0
    %2988 = vmatpush1.bf16.msra.mxu0 0
    %2989 = vmatprep.subr.bf16.mxu0 0
    %2990 = vmatpush1.bf16.msra.mxu0 0
    %2991 = vmatprep.subr.bf16.mxu0 0
    %2992 = vmatpush1.bf16.msra.mxu0 0
    %2993 = vmatprep.subr.bf16.mxu0 0
    %2994 = vmatpush1.bf16.msra.mxu0 0
    %2995 = vmatprep.subr.bf16.mxu0 0
    %2996 = vmatpush1.bf16.msra.mxu0 0
    %2997 = vmatprep.subr.bf16.mxu0 0
    %2998 = vmatpush1.bf16.msra.mxu0 0
    %2999 = vmatprep.mubr.bf16.mxu0 0
    %3000 = vmatmul.mubr.bf16.gmra.mrb[0].mxu0 %v2843
    %v3001 = vpop.f32.mrb[0].mxu0
    %v3002 = vadd.f32 %v730, %v3001
    %v3003 = vpop.f32.mrb[0].mxu0
    %v3004 = vadd.f32 %v731, %v3003
    %v3005 = vpop.f32.mrb[0].mxu0
    %v3006 = vpop.f32.mrb[0].mxu0
    %3007 = vdwg.mxu0
    %s3008 = smul.u32 6, 4
    %s3009 = smul.addr %s3008, 8
    %s3010 = scalar_lea.vmem [#allocation2], %s3009
    %v3011 = vld [vmem:[%s3010] sm:$0xff]
    %v3012 = vld [vmem:[%s3010 + $0x8] sm:$0xff]
    %v3013 = vld [vmem:[%s3010 + $0x10] sm:$0xff]
    %v3014 = vld [vmem:[%s3010 + $0x18] sm:$0xff]
    %v3015 = vadd.f32 %v3011, %v2879
    %v3016 = vadd.f32 %v3012, %v2881
    %v3017 = vadd.f32 %v3013, %v2920
    %v3018 = vadd.f32 %v3014, %v2922
    %v3019 = vxor.u32 %v3015, 2147483648
    %v3020 = vxor.u32 %v3016, 2147483648
    %v3021 = vxor.u32 %v3017, 2147483648
    %v3022 = vmul.f32 %v3019, 1.442695
    %v3023 = vpow.pop %v3022
    %v3024 = vmul.f32 %v3020, 1.442695
    %v3025 = vpow.pop %v3024
    %v3026 = vmul.f32 %v3021, 1.442695
    %v3027 = vpow.pop %v3026
    %v3028 = vadd.f32 %v3023, 1.0
    %v3029 = vadd.f32 %v3025, 1.0
    %v3030 = vadd.f32 %v3027, 1.0
    %v3031 = vrcp.pop %v3028
    %v3032 = vmul.f32 1.0, %v3031
    %v3033 = vrcp.pop %v3029
    %v3034 = vmul.f32 1.0, %v3033
    %v3035 = vrcp.pop %v3030
    %v3036 = vmul.f32 1.0, %v3035
    %v3037 = vtanh.pop %v3018
    %v3038 = vmul.f32 %v3034, %v2733
    %v3039 = vmul.f32 %v3032, %v3037
    %v3040 = vadd.f32 %v3038, %v3039
    %v3041 = vtanh.pop %v3040
    %v3042 = vmul.f32 %v3036, %v3041
    %v3043 = vpack.c.bf16 %v3042, %v3042
    %3044 = vmatprep.subr.bf16.mxu0 %v1139
    %3045 = vmatpush1.bf16.msra.mxu0 %v1138
    %3046 = vmatprep.subr.bf16.mxu0 %v1143
    %3047 = vmatpush1.bf16.msra.mxu0 %v1142
    %3048 = vmatprep.subr.bf16.mxu0 %v1147
    %3049 = vmatpush1.bf16.msra.mxu0 %v1146
    %3050 = vmatprep.subr.bf16.mxu0 %v1151
    %3051 = vmatpush1.bf16.msra.mxu0 %v1150
    %3052 = vmatprep.subr.bf16.mxu0 %v1155
    %3053 = vmatpush1.bf16.msra.mxu0 %v1154
    %3054 = vmatprep.subr.bf16.mxu0 %v1159
    %3055 = vmatpush1.bf16.msra.mxu0 %v1158
    %3056 = vmatprep.subr.bf16.mxu0 %v1163
    %3057 = vmatpush1.bf16.msra.mxu0 %v1162
    %3058 = vmatprep.subr.bf16.mxu0 %v1167
    %3059 = vmatpush1.bf16.msra.mxu0 %v1166
    %3060 = vmatprep.subr.bf16.mxu0 0
    %3061 = vmatpush1.bf16.msra.mxu0 0
    %3062 = vmatprep.subr.bf16.mxu0 0
    %3063 = vmatpush1.bf16.msra.mxu0 0
    %3064 = vmatprep.subr.bf16.mxu0 0
    %3065 = vmatpush1.bf16.msra.mxu0 0
    %3066 = vmatprep.subr.bf16.mxu0 0
    %3067 = vmatpush1.bf16.msra.mxu0 0
    %3068 = vmatprep.subr.bf16.mxu0 0
    %3069 = vmatpush1.bf16.msra.mxu0 0
    %3070 = vmatprep.subr.bf16.mxu0 0
    %3071 = vmatpush1.bf16.msra.mxu0 0
    %3072 = vmatprep.subr.bf16.mxu0 0
    %3073 = vmatpush1.bf16.msra.mxu0 0
    %3074 = vmatprep.subr.bf16.mxu0 0
    %3075 = vmatpush1.bf16.msra.mxu0 0
    %3076 = vmatprep.mubr.bf16.mxu0 0
    %3077 = vmatmul.mubr.bf16.gmra.mrb[0].mxu0 %v3043
    %v3078 = vpop.f32.mrb[0].mxu0
    %v3079 = vadd.f32 %v2961, %v3078
    %v3080 = vpop.f32.mrb[0].mxu0
    %v3081 = vadd.f32 %v2963, %v3080
    %v3082 = vpop.f32.mrb[0].mxu0
    %v3083 = vpop.f32.mrb[0].mxu0
    %3084 = vdwg.mxu0
    %3085 = vmatprep.subr.bf16.mxu0 %v1141
    %3086 = vmatpush1.bf16.msra.mxu0 %v1140
    %3087 = vmatprep.subr.bf16.mxu0 %v1145
    %3088 = vmatpush1.bf16.msra.mxu0 %v1144
    %3089 = vmatprep.subr.bf16.mxu0 %v1149
    %3090 = vmatpush1.bf16.msra.mxu0 %v1148
    %3091 = vmatprep.subr.bf16.mxu0 %v1153
    %3092 = vmatpush1.bf16.msra.mxu0 %v1152
    %3093 = vmatprep.subr.bf16.mxu0 %v1157
    %3094 = vmatpush1.bf16.msra.mxu0 %v1156
    %3095 = vmatprep.subr.bf16.mxu0 %v1161
    %3096 = vmatpush1.bf16.msra.mxu0 %v1160
    %3097 = vmatprep.subr.bf16.mxu0 %v1165
    %3098 = vmatpush1.bf16.msra.mxu0 %v1164
    %3099 = vmatprep.subr.bf16.mxu0 %v1169
    %3100 = vmatpush1.bf16.msra.mxu0 %v1168
    %3101 = vmatprep.subr.bf16.mxu0 0
    %3102 = vmatpush1.bf16.msra.mxu0 0
    %3103 = vmatprep.subr.bf16.mxu0 0
    %3104 = vmatpush1.bf16.msra.mxu0 0
    %3105 = vmatprep.subr.bf16.mxu0 0
    %3106 = vmatpush1.bf16.msra.mxu0 0
    %3107 = vmatprep.subr.bf16.mxu0 0
    %3108 = vmatpush1.bf16.msra.mxu0 0
    %3109 = vmatprep.subr.bf16.mxu0 0
    %3110 = vmatpush1.bf16.msra.mxu0 0
    %3111 = vmatprep.subr.bf16.mxu0 0
    %3112 = vmatpush1.bf16.msra.mxu0 0
    %3113 = vmatprep.subr.bf16.mxu0 0
    %3114 = vmatpush1.bf16.msra.mxu0 0
    %3115 = vmatprep.subr.bf16.mxu0 0
    %3116 = vmatpush1.bf16.msra.mxu0 0
    %3117 = vmatprep.mubr.bf16.mxu0 0
    %3118 = vmatmul.mubr.bf16.gmra.mrb[0].mxu0 %v3043
    %v3119 = vpop.f32.mrb[0].mxu0
    %v3120 = vadd.f32 %v3002, %v3119
    %v3121 = vpop.f32.mrb[0].mxu0
    %v3122 = vadd.f32 %v3004, %v3121
    %v3123 = vpop.f32.mrb[0].mxu0
    %v3124 = vpop.f32.mrb[0].mxu0
    %3125 = vdwg.mxu0
    %v3126 = vxor.u32 %v3079, 2147483648
    %v3127 = vxor.u32 %v3081, 2147483648
    %v3128 = vxor.u32 %v3120, 2147483648
    %v3129 = vmul.f32 %v3126, 1.442695
    %v3130 = vpow.pop %v3129
    %v3131 = vmul.f32 %v3127, 1.442695
    %v3132 = vpow.pop %v3131
    %v3133 = vmul.f32 %v3128, 1.442695
    %v3134 = vpow.pop %v3133
    %v3135 = vadd.f32 %v3130, 1.0
    %v3136 = vadd.f32 %v3132, 1.0
    %v3137 = vadd.f32 %v3134, 1.0
    %v3138 = vrcp.pop %v3135
    %v3139 = vmul.f32 1.0, %v3138
    %v3140 = vrcp.pop %v3136
    %v3141 = vmul.f32 1.0, %v3140
    %v3142 = vrcp.pop %v3137
    %v3143 = vmul.f32 1.0, %v3142
    %v3144 = vtanh.pop %v3122
    %v3145 = vmul.f32 %v3141, %v2840
    %v3146 = vmul.f32 %v3139, %v3144
    %v3147 = vadd.f32 %v3145, %v3146
    %v3148 = vtanh.pop %v3147
    %v3149 = vmul.f32 %v3143, %v3148
    %v3150 = vpack.c.bf16 %v3149, %v3149
    %3151 = vmatprep.subr.bf16.mxu0 %v551
    %3152 = vmatpush1.bf16.msra.mxu0 %v550
    %3153 = vmatprep.subr.bf16.mxu0 %v555
    %3154 = vmatpush1.bf16.msra.mxu0 %v554
    %3155 = vmatprep.subr.bf16.mxu0 %v559
    %3156 = vmatpush1.bf16.msra.mxu0 %v558
    %3157 = vmatprep.subr.bf16.mxu0 %v563
    %3158 = vmatpush1.bf16.msra.mxu0 %v562
    %3159 = vmatprep.subr.bf16.mxu0 %v567
    %3160 = vmatpush1.bf16.msra.mxu0 %v566
    %3161 = vmatprep.subr.bf16.mxu0 %v571
    %3162 = vmatpush1.bf16.msra.mxu0 %v570
    %3163 = vmatprep.subr.bf16.mxu0 %v575
    %3164 = vmatpush1.bf16.msra.mxu0 %v574
    %3165 = vmatprep.subr.bf16.mxu0 %v579
    %3166 = vmatpush1.bf16.msra.mxu0 %v578
    %3167 = vmatprep.subr.bf16.mxu0 0
    %3168 = vmatpush1.bf16.msra.mxu0 0
    %3169 = vmatprep.subr.bf16.mxu0 0
    %3170 = vmatpush1.bf16.msra.mxu0 0
    %3171 = vmatprep.subr.bf16.mxu0 0
    %3172 = vmatpush1.bf16.msra.mxu0 0
    %3173 = vmatprep.subr.bf16.mxu0 0
    %3174 = vmatpush1.bf16.msra.mxu0 0
    %3175 = vmatprep.subr.bf16.mxu0 0
    %3176 = vmatpush1.bf16.msra.mxu0 0
    %3177 = vmatprep.subr.bf16.mxu0 0
    %3178 = vmatpush1.bf16.msra.mxu0 0
    %3179 = vmatprep.subr.bf16.mxu0 0
    %3180 = vmatpush1.bf16.msra.mxu0 0
    %3181 = vmatprep.subr.bf16.mxu0 0
    %3182 = vmatpush1.bf16.msra.mxu0 0
    %3183 = vmatprep.mubr.bf16.mxu0 0
    %3184 = vmatmul.mubr.bf16.gmra.mrb[0].mxu0 %v3043
    %v3185 = vpop.f32.mrb[0].mxu0
    %v3186 = vadd.f32 0.0, %v3185
    %v3187 = vpop.f32.mrb[0].mxu0
    %v3188 = vadd.f32 0.0, %v3187
    %v3189 = vpop.f32.mrb[0].mxu0
    %v3190 = vpop.f32.mrb[0].mxu0
    %3191 = vdwg.mxu0
    %3192 = vmatprep.subr.bf16.mxu0 %v553
    %3193 = vmatpush1.bf16.msra.mxu0 %v552
    %3194 = vmatprep.subr.bf16.mxu0 %v557
    %3195 = vmatpush1.bf16.msra.mxu0 %v556
    %3196 = vmatprep.subr.bf16.mxu0 %v561
    %3197 = vmatpush1.bf16.msra.mxu0 %v560
    %3198 = vmatprep.subr.bf16.mxu0 %v565
    %3199 = vmatpush1.bf16.msra.mxu0 %v564
    %3200 = vmatprep.subr.bf16.mxu0 %v569
    %3201 = vmatpush1.bf16.msra.mxu0 %v568
    %3202 = vmatprep.subr.bf16.mxu0 %v573
    %3203 = vmatpush1.bf16.msra.mxu0 %v572
    %3204 = vmatprep.subr.bf16.mxu0 %v577
    %3205 = vmatpush1.bf16.msra.mxu0 %v576
    %3206 = vmatprep.subr.bf16.mxu0 %v581
    %3207 = vmatpush1.bf16.msra.mxu0 %v580
    %3208 = vmatprep.subr.bf16.mxu0 0
    %3209 = vmatpush1.bf16.msra.mxu0 0
    %3210 = vmatprep.subr.bf16.mxu0 0
    %3211 = vmatpush1.bf16.msra.mxu0 0
    %3212 = vmatprep.subr.bf16.mxu0 0
    %3213 = vmatpush1.bf16.msra.mxu0 0
    %3214 = vmatprep.subr.bf16.mxu0 0
    %3215 = vmatpush1.bf16.msra.mxu0 0
    %3216 = vmatprep.subr.bf16.mxu0 0
    %3217 = vmatpush1.bf16.msra.mxu0 0
    %3218 = vmatprep.subr.bf16.mxu0 0
    %3219 = vmatpush1.bf16.msra.mxu0 0
    %3220 = vmatprep.subr.bf16.mxu0 0
    %3221 = vmatpush1.bf16.msra.mxu0 0
    %3222 = vmatprep.subr.bf16.mxu0 0
    %3223 = vmatpush1.bf16.msra.mxu0 0
    %3224 = vmatprep.mubr.bf16.mxu0 0
    %3225 = vmatmul.mubr.bf16.gmra.mrb[0].mxu0 %v3043
    %v3226 = vpop.f32.mrb[0].mxu0
    %v3227 = vadd.f32 0.0, %v3226
    %v3228 = vpop.f32.mrb[0].mxu0
    %v3229 = vadd.f32 0.0, %v3228
    %v3230 = vpop.f32.mrb[0].mxu0
    %v3231 = vpop.f32.mrb[0].mxu0
    %3232 = vdwg.mxu0
    %3233 = vmatprep.subr.bf16.mxu0 %v829
    %3234 = vmatpush1.bf16.msra.mxu0 %v828
    %3235 = vmatprep.subr.bf16.mxu0 %v833
    %3236 = vmatpush1.bf16.msra.mxu0 %v832
    %3237 = vmatprep.subr.bf16.mxu0 %v837
    %3238 = vmatpush1.bf16.msra.mxu0 %v836
    %3239 = vmatprep.subr.bf16.mxu0 %v841
    %3240 = vmatpush1.bf16.msra.mxu0 %v840
    %3241 = vmatprep.subr.bf16.mxu0 %v845
    %3242 = vmatpush1.bf16.msra.mxu0 %v844
    %3243 = vmatprep.subr.bf16.mxu0 %v849
    %3244 = vmatpush1.bf16.msra.mxu0 %v848
    %3245 = vmatprep.subr.bf16.mxu0 %v853
    %3246 = vmatpush1.bf16.msra.mxu0 %v852
    %3247 = vmatprep.subr.bf16.mxu0 %v857
    %3248 = vmatpush1.bf16.msra.mxu0 %v856
    %3249 = vmatprep.subr.bf16.mxu0 0
    %3250 = vmatpush1.bf16.msra.mxu0 0
    %3251 = vmatprep.subr.bf16.mxu0 0
    %3252 = vmatpush1.bf16.msra.mxu0 0
    %3253 = vmatprep.subr.bf16.mxu0 0
    %3254 = vmatpush1.bf16.msra.mxu0 0
    %3255 = vmatprep.subr.bf16.mxu0 0
    %3256 = vmatpush1.bf16.msra.mxu0 0
    %3257 = vmatprep.subr.bf16.mxu0 0
    %3258 = vmatpush1.bf16.msra.mxu0 0
    %3259 = vmatprep.subr.bf16.mxu0 0
    %3260 = vmatpush1.bf16.msra.mxu0 0
    %3261 = vmatprep.subr.bf16.mxu0 0
    %3262 = vmatpush1.bf16.msra.mxu0 0
    %3263 = vmatprep.subr.bf16.mxu0 0
    %3264 = vmatpush1.bf16.msra.mxu0 0
    %3265 = vmatprep.mubr.bf16.mxu0 0
    %3266 = vmatmul.mubr.bf16.gmra.mrb[0].mxu0 %v3150
    %v3267 = vpop.f32.mrb[0].mxu0
    %v3268 = vadd.f32 %v728, %v3267
    %v3269 = vpop.f32.mrb[0].mxu0
    %v3270 = vadd.f32 %v729, %v3269
    %v3271 = vpop.f32.mrb[0].mxu0
    %v3272 = vpop.f32.mrb[0].mxu0
    %3273 = vdwg.mxu0
    %3274 = vmatprep.subr.bf16.mxu0 %v831
    %3275 = vmatpush1.bf16.msra.mxu0 %v830
    %3276 = vmatprep.subr.bf16.mxu0 %v835
    %3277 = vmatpush1.bf16.msra.mxu0 %v834
    %3278 = vmatprep.subr.bf16.mxu0 %v839
    %3279 = vmatpush1.bf16.msra.mxu0 %v838
    %3280 = vmatprep.subr.bf16.mxu0 %v843
    %3281 = vmatpush1.bf16.msra.mxu0 %v842
    %3282 = vmatprep.subr.bf16.mxu0 %v847
    %3283 = vmatpush1.bf16.msra.mxu0 %v846
    %3284 = vmatprep.subr.bf16.mxu0 %v851
    %3285 = vmatpush1.bf16.msra.mxu0 %v850
    %3286 = vmatprep.subr.bf16.mxu0 %v855
    %3287 = vmatpush1.bf16.msra.mxu0 %v854
    %3288 = vmatprep.subr.bf16.mxu0 %v859
    %3289 = vmatpush1.bf16.msra.mxu0 %v858
    %3290 = vmatprep.subr.bf16.mxu0 0
    %3291 = vmatpush1.bf16.msra.mxu0 0
    %3292 = vmatprep.subr.bf16.mxu0 0
    %3293 = vmatpush1.bf16.msra.mxu0 0
    %3294 = vmatprep.subr.bf16.mxu0 0
    %3295 = vmatpush1.bf16.msra.mxu0 0
    %3296 = vmatprep.subr.bf16.mxu0 0
    %3297 = vmatpush1.bf16.msra.mxu0 0
    %3298 = vmatprep.subr.bf16.mxu0 0
    %3299 = vmatpush1.bf16.msra.mxu0 0
    %3300 = vmatprep.subr.bf16.mxu0 0
    %3301 = vmatpush1.bf16.msra.mxu0 0
    %3302 = vmatprep.subr.bf16.mxu0 0
    %3303 = vmatpush1.bf16.msra.mxu0 0
    %3304 = vmatprep.subr.bf16.mxu0 0
    %3305 = vmatpush1.bf16.msra.mxu0 0
    %3306 = vmatprep.mubr.bf16.mxu0 0
    %3307 = vmatmul.mubr.bf16.gmra.mrb[0].mxu0 %v3150
    %v3308 = vpop.f32.mrb[0].mxu0
    %v3309 = vadd.f32 %v730, %v3308
    %v3310 = vpop.f32.mrb[0].mxu0
    %v3311 = vadd.f32 %v731, %v3310
    %v3312 = vpop.f32.mrb[0].mxu0
    %v3313 = vpop.f32.mrb[0].mxu0
    %3314 = vdwg.mxu0
    %s3315 = smul.u32 7, 4
    %s3316 = smul.addr %s3315, 8
    %s3317 = scalar_lea.vmem [#allocation2], %s3316
    %v3318 = vld [vmem:[%s3317] sm:$0xff]
    %v3319 = vld [vmem:[%s3317 + $0x8] sm:$0xff]
    %v3320 = vld [vmem:[%s3317 + $0x10] sm:$0xff]
    %v3321 = vld [vmem:[%s3317 + $0x18] sm:$0xff]
    %v3322 = vadd.f32 %v3318, %v3186
    %v3323 = vadd.f32 %v3319, %v3188
    %v3324 = vadd.f32 %v3320, %v3227
    %v3325 = vadd.f32 %v3321, %v3229
    %v3326 = vxor.u32 %v3322, 2147483648
    %v3327 = vxor.u32 %v3323, 2147483648
    %v3328 = vxor.u32 %v3324, 2147483648
    %v3329 = vmul.f32 %v3326, 1.442695
    %v3330 = vpow.pop %v3329
    %v3331 = vmul.f32 %v3327, 1.442695
    %v3332 = vpow.pop %v3331
    %v3333 = vmul.f32 %v3328, 1.442695
    %v3334 = vpow.pop %v3333
    %v3335 = vadd.f32 %v3330, 1.0
    %v3336 = vadd.f32 %v3332, 1.0
    %v3337 = vadd.f32 %v3334, 1.0
    %v3338 = vrcp.pop %v3335
    %v3339 = vmul.f32 1.0, %v3338
    %v3340 = vrcp.pop %v3336
    %v3341 = vmul.f32 1.0, %v3340
    %v3342 = vrcp.pop %v3337
    %v3343 = vmul.f32 1.0, %v3342
    %v3344 = vtanh.pop %v3325
    %v3345 = vmul.f32 %v3341, %v3040
    %v3346 = vmul.f32 %v3339, %v3344
    %v3347 = vadd.f32 %v3345, %v3346
    %v3348 = vtanh.pop %v3347
    %v3349 = vmul.f32 %v3343, %v3348
    %v3350 = vpack.c.bf16 %v3349, %v3349
    %3351 = vmatprep.subr.bf16.mxu0 %v1139
    %3352 = vmatpush1.bf16.msra.mxu0 %v1138
    %3353 = vmatprep.subr.bf16.mxu0 %v1143
    %3354 = vmatpush1.bf16.msra.mxu0 %v1142
    %3355 = vmatprep.subr.bf16.mxu0 %v1147
    %3356 = vmatpush1.bf16.msra.mxu0 %v1146
    %3357 = vmatprep.subr.bf16.mxu0 %v1151
    %3358 = vmatpush1.bf16.msra.mxu0 %v1150
    %3359 = vmatprep.subr.bf16.mxu0 %v1155
    %3360 = vmatpush1.bf16.msra.mxu0 %v1154
    %3361 = vmatprep.subr.bf16.mxu0 %v1159
    %3362 = vmatpush1.bf16.msra.mxu0 %v1158
    %3363 = vmatprep.subr.bf16.mxu0 %v1163
    %3364 = vmatpush1.bf16.msra.mxu0 %v1162
    %3365 = vmatprep.subr.bf16.mxu0 %v1167
    %3366 = vmatpush1.bf16.msra.mxu0 %v1166
    %3367 = vmatprep.subr.bf16.mxu0 0
    %3368 = vmatpush1.bf16.msra.mxu0 0
    %3369 = vmatprep.subr.bf16.mxu0 0
    %3370 = vmatpush1.bf16.msra.mxu0 0
    %3371 = vmatprep.subr.bf16.mxu0 0
    %3372 = vmatpush1.bf16.msra.mxu0 0
    %3373 = vmatprep.subr.bf16.mxu0 0
    %3374 = vmatpush1.bf16.msra.mxu0 0
    %3375 = vmatprep.subr.bf16.mxu0 0
    %3376 = vmatpush1.bf16.msra.mxu0 0
    %3377 = vmatprep.subr.bf16.mxu0 0
    %3378 = vmatpush1.bf16.msra.mxu0 0
    %3379 = vmatprep.subr.bf16.mxu0 0
    %3380 = vmatpush1.bf16.msra.mxu0 0
    %3381 = vmatprep.subr.bf16.mxu0 0
    %3382 = vmatpush1.bf16.msra.mxu0 0
    %3383 = vmatprep.mubr.bf16.mxu0 0
    %3384 = vmatmul.mubr.bf16.gmra.mrb[0].mxu0 %v3350
    %v3385 = vpop.f32.mrb[0].mxu0
    %v3386 = vadd.f32 %v3268, %v3385
    %v3387 = vpop.f32.mrb[0].mxu0
    %v3388 = vadd.f32 %v3270, %v3387
    %v3389 = vpop.f32.mrb[0].mxu0
    %v3390 = vpop.f32.mrb[0].mxu0
    %3391 = vdwg.mxu0
    %3392 = vmatprep.subr.bf16.mxu0 %v1141
    %3393 = vmatpush1.bf16.msra.mxu0 %v1140
    %3394 = vmatprep.subr.bf16.mxu0 %v1145
    %3395 = vmatpush1.bf16.msra.mxu0 %v1144
    %3396 = vmatprep.subr.bf16.mxu0 %v1149
    %3397 = vmatpush1.bf16.msra.mxu0 %v1148
    %3398 = vmatprep.subr.bf16.mxu0 %v1153
    %3399 = vmatpush1.bf16.msra.mxu0 %v1152
    %3400 = vmatprep.subr.bf16.mxu0 %v1157
    %3401 = vmatpush1.bf16.msra.mxu0 %v1156
    %3402 = vmatprep.subr.bf16.mxu0 %v1161
    %3403 = vmatpush1.bf16.msra.mxu0 %v1160
    %3404 = vmatprep.subr.bf16.mxu0 %v1165
    %3405 = vmatpush1.bf16.msra.mxu0 %v1164
    %3406 = vmatprep.subr.bf16.mxu0 %v1169
    %3407 = vmatpush1.bf16.msra.mxu0 %v1168
    %3408 = vmatprep.subr.bf16.mxu0 0
    %3409 = vmatpush1.bf16.msra.mxu0 0
    %3410 = vmatprep.subr.bf16.mxu0 0
    %3411 = vmatpush1.bf16.msra.mxu0 0
    %3412 = vmatprep.subr.bf16.mxu0 0
    %3413 = vmatpush1.bf16.msra.mxu0 0
    %3414 = vmatprep.subr.bf16.mxu0 0
    %3415 = vmatpush1.bf16.msra.mxu0 0
    %3416 = vmatprep.subr.bf16.mxu0 0
    %3417 = vmatpush1.bf16.msra.mxu0 0
    %3418 = vmatprep.subr.bf16.mxu0 0
    %3419 = vmatpush1.bf16.msra.mxu0 0
    %3420 = vmatprep.subr.bf16.mxu0 0
    %3421 = vmatpush1.bf16.msra.mxu0 0
    %3422 = vmatprep.subr.bf16.mxu0 0
    %3423 = vmatpush1.bf16.msra.mxu0 0
    %3424 = vmatprep.mubr.bf16.mxu0 0
    %3425 = vmatmul.mubr.bf16.gmra.mrb[0].mxu0 %v3350
    %v3426 = vpop.f32.mrb[0].mxu0
    %v3427 = vadd.f32 %v3309, %v3426
    %v3428 = vpop.f32.mrb[0].mxu0
    %v3429 = vadd.f32 %v3311, %v3428
    %v3430 = vpop.f32.mrb[0].mxu0
    %v3431 = vpop.f32.mrb[0].mxu0
    %3432 = vdwg.mxu0
    %v3433 = vxor.u32 %v3386, 2147483648
    %v3434 = vxor.u32 %v3388, 2147483648
    %v3435 = vxor.u32 %v3427, 2147483648
    %v3436 = vmul.f32 %v3433, 1.442695
    %v3437 = vpow.pop %v3436
    %v3438 = vmul.f32 %v3434, 1.442695
    %v3439 = vpow.pop %v3438
    %v3440 = vmul.f32 %v3435, 1.442695
    %v3441 = vpow.pop %v3440
    %v3442 = vadd.f32 %v3437, 1.0
    %v3443 = vadd.f32 %v3439, 1.0
    %v3444 = vadd.f32 %v3441, 1.0
    %v3445 = vrcp.pop %v3442
    %v3446 = vmul.f32 1.0, %v3445
    %v3447 = vrcp.pop %v3443
    %v3448 = vmul.f32 1.0, %v3447
    %v3449 = vrcp.pop %v3444
    %v3450 = vmul.f32 1.0, %v3449
    %v3451 = vtanh.pop %v3429
    %v3452 = vmul.f32 %v3448, %v3147
    %v3453 = vmul.f32 %v3446, %v3451
    %v3454 = vadd.f32 %v3452, %v3453
    %v3455 = vtanh.pop %v3454
    %v3456 = vmul.f32 %v3450, %v3455
    %v3457 = vpack.c.bf16 %v3456, %v3456
    %v3458 = vld [vmem:[%s7] sm:$0xf]
    %v3459 = vld [vmem:[%s7 + $0x4] sm:$0xf]
    %v3460 = vld [vmem:[%s7 + $0x8] sm:$0xf]
    %v3461 = vld [vmem:[%s7 + $0xc] sm:$0xf]
    %v3462 = vld [vmem:[%s7 + $0x10] sm:$0xf]
    %v3463 = vld [vmem:[%s7 + $0x14] sm:$0xf]
    %v3464 = vld [vmem:[%s7 + $0x18] sm:$0xf]
    %v3465 = vld [vmem:[%s7 + $0x1c] sm:$0xf]
    %v3466 = vld [vmem:[%s7 + $0x20] sm:$0xf]
    %v3467 = vld [vmem:[%s7 + $0x24] sm:$0xf]
    %v3468 = vld [vmem:[%s7 + $0x28] sm:$0xf]
    %v3469 = vld [vmem:[%s7 + $0x2c] sm:$0xf]
    %v3470 = vld [vmem:[%s7 + $0x30] sm:$0xf]
    %v3471 = vld [vmem:[%s7 + $0x34] sm:$0xf]
    %v3472 = vld [vmem:[%s7 + $0x38] sm:$0xf]
    %v3473 = vld [vmem:[%s7 + $0x3c] sm:$0xf]
    %v3490 = vunpack.c.l.b16 %v3458
    %v3491 = vunpack.c.l.b16 %v3459
    %v3492 = vunpack.c.l.b16 %v3460
    %v3493 = vunpack.c.l.b16 %v3461
    %v3494 = vunpack.c.l.b16 %v3462
    %v3495 = vunpack.c.l.b16 %v3463
    %v3496 = vunpack.c.l.b16 %v3464
    %v3497 = vunpack.c.l.b16 %v3465
    %v3498 = vunpack.c.l.b16 %v3466
    %v3499 = vunpack.c.l.b16 %v3467
    %v3500 = vunpack.c.l.b16 %v3468
    %v3501 = vunpack.c.l.b16 %v3469
    %v3502 = vunpack.c.l.b16 %v3470
    %v3503 = vunpack.c.l.b16 %v3471
    %v3504 = vunpack.c.l.b16 %v3472
    %v3505 = vunpack.c.l.b16 %v3473
    %v3506 = vpack.c.b16 %v3491, %v3490
    %v3507 = vpack.c.b16 %v3493, %v3492
    %v3508 = vpack.c.b16 %v3495, %v3494
    %v3509 = vpack.c.b16 %v3497, %v3496
    %v3510 = vpack.c.b16 %v3499, %v3498
    %v3511 = vpack.c.b16 %v3501, %v3500
    %v3512 = vpack.c.b16 %v3503, %v3502
    %v3513 = vpack.c.b16 %v3505, %v3504
    %3522 = vmatprep.subr.bf16.mxu0 0
    %3523 = vmatpush1.bf16.msra.mxu0 %v3506
    %3524 = vmatprep.subr.bf16.mxu0 0
    %3525 = vmatpush1.bf16.msra.mxu0 %v3507
    %3526 = vmatprep.subr.bf16.mxu0 0
    %3527 = vmatpush1.bf16.msra.mxu0 %v3508
    %3528 = vmatprep.subr.bf16.mxu0 0
    %3529 = vmatpush1.bf16.msra.mxu0 %v3509
    %3530 = vmatprep.subr.bf16.mxu0 0
    %3531 = vmatpush1.bf16.msra.mxu0 %v3510
    %3532 = vmatprep.subr.bf16.mxu0 0
    %3533 = vmatpush1.bf16.msra.mxu0 %v3511
    %3534 = vmatprep.subr.bf16.mxu0 0
    %3535 = vmatpush1.bf16.msra.mxu0 %v3512
    %3536 = vmatprep.subr.bf16.mxu0 0
    %3537 = vmatpush1.bf16.msra.mxu0 %v3513
    %3538 = vmatprep.subr.bf16.mxu0 0
    %3539 = vmatpush1.bf16.msra.mxu0 0
    %3540 = vmatprep.subr.bf16.mxu0 0
    %3541 = vmatpush1.bf16.msra.mxu0 0
    %3542 = vmatprep.subr.bf16.mxu0 0
    %3543 = vmatpush1.bf16.msra.mxu0 0
    %3544 = vmatprep.subr.bf16.mxu0 0
    %3545 = vmatpush1.bf16.msra.mxu0 0
    %3546 = vmatprep.subr.bf16.mxu0 0
    %3547 = vmatpush1.bf16.msra.mxu0 0
    %3548 = vmatprep.subr.bf16.mxu0 0
    %3549 = vmatpush1.bf16.msra.mxu0 0
    %3550 = vmatprep.subr.bf16.mxu0 0
    %3551 = vmatpush1.bf16.msra.mxu0 0
    %3552 = vmatprep.subr.bf16.mxu0 0
    %3553 = vmatpush1.bf16.msra.mxu0 0
    %3554 = vmatprep.mubr.bf16.mxu0 0
    %3555 = vmatmul.mubr.bf16.gmra.mrb[0].mxu0 %v3457
    %v3556 = vpop.f32.mrb[0].mxu0
    %v3557 = vadd.f32 0.0, %v3556
    %v3558 = vpop.f32.mrb[0].mxu0
    %v3559 = vpop.f32.mrb[0].mxu0
    %v3560 = vpop.f32.mrb[0].mxu0
    %3561 = vdwg.mxu0
    %v3562 = vld [vmem:[%s8] sm:$0x1]
    %v3564 = vlaneseq
    %v3565 = vshrl.u32 %v3564, 7
    %v3566 = vsub.s32 0, %v3565
    %v3567 = vrot.slane %v3562, %v3566
    %v3569 = vmul.f32 %v3557, %v3567
    %v3570 = vld [vmem:[%s9] sm:$0x1]
    %v3572 = vlaneseq
    %v3573 = vshrl.u32 %v3572, 7
    %v3574 = vsub.s32 0, %v3573
    %v3575 = vrot.slane %v3570, %v3574
    %v3577 = vadd.f32 %v3569, %v3575
    %v3578 = vmax.f32 %v3577, 0.0
    %v3579 = vpack.c.bf16 %v3578, %v3578
    %v3580 = vld [vmem:[#allocation14] sm:$0xf]
    %v3581 = vld [vmem:[#allocation14 + $0x4] sm:$0xf]
    %v3582 = vld [vmem:[#allocation14 + $0x8] sm:$0xf]
    %v3583 = vld [vmem:[#allocation14 + $0xc] sm:$0xf]
    %v3584 = vld [vmem:[#allocation14 + $0x10] sm:$0xf]
    %v3585 = vld [vmem:[#allocation14 + $0x14] sm:$0xf]
    %v3586 = vld [vmem:[#allocation14 + $0x18] sm:$0xf]
    %v3587 = vld [vmem:[#allocation14 + $0x1c] sm:$0xf]
    %v3588 = vld [vmem:[#allocation14 + $0x20] sm:$0xf]
    %v3589 = vld [vmem:[#allocation14 + $0x24] sm:$0xf]
    %v3590 = vld [vmem:[#allocation14 + $0x28] sm:$0xf]
    %v3591 = vld [vmem:[#allocation14 + $0x2c] sm:$0xf]
    %v3592 = vld [vmem:[#allocation14 + $0x30] sm:$0xf]
    %v3593 = vld [vmem:[#allocation14 + $0x34] sm:$0xf]
    %v3594 = vld [vmem:[#allocation14 + $0x38] sm:$0xf]
    %v3595 = vld [vmem:[#allocation14 + $0x3c] sm:$0xf]
    %v3612 = vunpack.c.l.b16 %v3580
    %v3613 = vunpack.c.l.b16 %v3581
    %v3614 = vunpack.c.l.b16 %v3582
    %v3615 = vunpack.c.l.b16 %v3583
    %v3616 = vunpack.c.l.b16 %v3584
    %v3617 = vunpack.c.l.b16 %v3585
    %v3618 = vunpack.c.l.b16 %v3586
    %v3619 = vunpack.c.l.b16 %v3587
    %v3620 = vunpack.c.l.b16 %v3588
    %v3621 = vunpack.c.l.b16 %v3589
    %v3622 = vunpack.c.l.b16 %v3590
    %v3623 = vunpack.c.l.b16 %v3591
    %v3624 = vunpack.c.l.b16 %v3592
    %v3625 = vunpack.c.l.b16 %v3593
    %v3626 = vunpack.c.l.b16 %v3594
    %v3627 = vunpack.c.l.b16 %v3595
    %v3628 = vpack.c.b16 %v3613, %v3612
    %v3629 = vpack.c.b16 %v3615, %v3614
    %v3630 = vpack.c.b16 %v3617, %v3616
    %v3631 = vpack.c.b16 %v3619, %v3618
    %v3632 = vpack.c.b16 %v3621, %v3620
    %v3633 = vpack.c.b16 %v3623, %v3622
    %v3634 = vpack.c.b16 %v3625, %v3624
    %v3635 = vpack.c.b16 %v3627, %v3626
    %3644 = vmatprep.subr.bf16.mxu0 0
    %3645 = vmatpush1.bf16.msra.mxu0 %v3628
    %3646 = vmatprep.subr.bf16.mxu0 0
    %3647 = vmatpush1.bf16.msra.mxu0 %v3629
    %3648 = vmatprep.subr.bf16.mxu0 0
    %3649 = vmatpush1.bf16.msra.mxu0 %v3630
    %3650 = vmatprep.subr.bf16.mxu0 0
    %3651 = vmatpush1.bf16.msra.mxu0 %v3631
    %3652 = vmatprep.subr.bf16.mxu0 0
    %3653 = vmatpush1.bf16.msra.mxu0 %v3632
    %3654 = vmatprep.subr.bf16.mxu0 0
    %3655 = vmatpush1.bf16.msra.mxu0 %v3633
    %3656 = vmatprep.subr.bf16.mxu0 0
    %3657 = vmatpush1.bf16.msra.mxu0 %v3634
    %3658 = vmatprep.subr.bf16.mxu0 0
    %3659 = vmatpush1.bf16.msra.mxu0 %v3635
    %3660 = vmatprep.subr.bf16.mxu0 0
    %3661 = vmatpush1.bf16.msra.mxu0 0
    %3662 = vmatprep.subr.bf16.mxu0 0
    %3663 = vmatpush1.bf16.msra.mxu0 0
    %3664 = vmatprep.subr.bf16.mxu0 0
    %3665 = vmatpush1.bf16.msra.mxu0 0
    %3666 = vmatprep.subr.bf16.mxu0 0
    %3667 = vmatpush1.bf16.msra.mxu0 0
    %3668 = vmatprep.subr.bf16.mxu0 0
    %3669 = vmatpush1.bf16.msra.mxu0 0
    %3670 = vmatprep.subr.bf16.mxu0 0
    %3671 = vmatpush1.bf16.msra.mxu0 0
    %3672 = vmatprep.subr.bf16.mxu0 0
    %3673 = vmatpush1.bf16.msra.mxu0 0
    %3674 = vmatprep.subr.bf16.mxu0 0
    %3675 = vmatpush1.bf16.msra.mxu0 0
    %3676 = vmatprep.mubr.bf16.mxu0 0
    %3677 = vmatmul.mubr.bf16.gmra.mrb[0].mxu0 %v3579
    %v3678 = vpop.f32.mrb[0].mxu0
    %v3679 = vadd.f32 0.0, %v3678
    %v3680 = vpop.f32.mrb[0].mxu0
    %v3681 = vpop.f32.mrb[0].mxu0
    %v3682 = vpop.f32.mrb[0].mxu0
    %3683 = vdwg.mxu0
    %v3684 = vld [vmem:[%s11] sm:$0x1]
    %v3686 = vlaneseq
    %v3687 = vshrl.u32 %v3686, 7
    %v3688 = vsub.s32 0, %v3687
    %v3689 = vrot.slane %v3684, %v3688
    %v3691 = vmul.f32 %v3679, %v3689
    %v3692 = vld [vmem:[%s12] sm:$0x1]
    %v3694 = vlaneseq
    %v3695 = vshrl.u32 %v3694, 7
    %v3696 = vsub.s32 0, %v3695
    %v3697 = vrot.slane %v3692, %v3696
    %v3699 = vadd.f32 %v3691, %v3697
    %v3700 = vmax.f32 %v3699, 0.0
    %v3701 = vpack.c.bf16 %v3700, %v3700
    %v3702 = vld [vmem:[#allocation15] sm:$0xf]
    %v3703 = vld [vmem:[#allocation15 + $0x4] sm:$0xf]
    %v3704 = vld [vmem:[#allocation15 + $0x8] sm:$0xf]
    %v3705 = vld [vmem:[#allocation15 + $0xc] sm:$0xf]
    %v3706 = vld [vmem:[#allocation15 + $0x10] sm:$0xf]
    %v3707 = vld [vmem:[#allocation15 + $0x14] sm:$0xf]
    %v3708 = vld [vmem:[#allocation15 + $0x18] sm:$0xf]
    %v3709 = vld [vmem:[#allocation15 + $0x1c] sm:$0xf]
    %v3710 = vld [vmem:[#allocation15 + $0x20] sm:$0xf]
    %v3711 = vld [vmem:[#allocation15 + $0x24] sm:$0xf]
    %v3712 = vld [vmem:[#allocation15 + $0x28] sm:$0xf]
    %v3713 = vld [vmem:[#allocation15 + $0x2c] sm:$0xf]
    %v3714 = vld [vmem:[#allocation15 + $0x30] sm:$0xf]
    %v3715 = vld [vmem:[#allocation15 + $0x34] sm:$0xf]
    %v3716 = vld [vmem:[#allocation15 + $0x38] sm:$0xf]
    %v3717 = vld [vmem:[#allocation15 + $0x3c] sm:$0xf]
    %v3718 = vld [vmem:[%s14] sm:$0x1]
    %v3720 = vlaneseq
    %v3721 = vshrl.u32 %v3720, 7
    %v3722 = vsub.s32 0, %v3721
    %v3723 = vrot.slane %v3718, %v3722
    %v3741 = vunpack.c.l.b16 %v3702
    %v3742 = vunpack.c.l.b16 %v3703
    %v3743 = vunpack.c.l.b16 %v3704
    %v3744 = vunpack.c.l.b16 %v3705
    %v3745 = vunpack.c.l.b16 %v3706
    %v3746 = vunpack.c.l.b16 %v3707
    %v3747 = vunpack.c.l.b16 %v3708
    %v3748 = vunpack.c.l.b16 %v3709
    %v3749 = vunpack.c.l.b16 %v3710
    %v3750 = vunpack.c.l.b16 %v3711
    %v3751 = vunpack.c.l.b16 %v3712
    %v3752 = vunpack.c.l.b16 %v3713
    %v3753 = vunpack.c.l.b16 %v3714
    %v3754 = vunpack.c.l.b16 %v3715
    %v3755 = vunpack.c.l.b16 %v3716
    %v3756 = vunpack.c.l.b16 %v3717
    %v3757 = vpack.c.b16 %v3742, %v3741
    %v3758 = vpack.c.b16 %v3744, %v3743
    %v3759 = vpack.c.b16 %v3746, %v3745
    %v3760 = vpack.c.b16 %v3748, %v3747
    %v3761 = vpack.c.b16 %v3750, %v3749
    %v3762 = vpack.c.b16 %v3752, %v3751
    %v3763 = vpack.c.b16 %v3754, %v3753
    %v3764 = vpack.c.b16 %v3756, %v3755
    %3773 = vmatprep.subr.bf16.mxu0 0
    %3774 = vmatpush1.bf16.msra.mxu0 %v3757
    %3775 = vmatprep.subr.bf16.mxu0 0
    %3776 = vmatpush1.bf16.msra.mxu0 %v3758
    %3777 = vmatprep.subr.bf16.mxu0 0
    %3778 = vmatpush1.bf16.msra.mxu0 %v3759
    %3779 = vmatprep.subr.bf16.mxu0 0
    %3780 = vmatpush1.bf16.msra.mxu0 %v3760
    %3781 = vmatprep.subr.bf16.mxu0 0
    %3782 = vmatpush1.bf16.msra.mxu0 %v3761
    %3783 = vmatprep.subr.bf16.mxu0 0
    %3784 = vmatpush1.bf16.msra.mxu0 %v3762
    %3785 = vmatprep.subr.bf16.mxu0 0
    %3786 = vmatpush1.bf16.msra.mxu0 %v3763
    %3787 = vmatprep.subr.bf16.mxu0 0
    %3788 = vmatpush1.bf16.msra.mxu0 %v3764
    %3789 = vmatprep.subr.bf16.mxu0 0
    %3790 = vmatpush1.bf16.msra.mxu0 0
    %3791 = vmatprep.subr.bf16.mxu0 0
    %3792 = vmatpush1.bf16.msra.mxu0 0
    %3793 = vmatprep.subr.bf16.mxu0 0
    %3794 = vmatpush1.bf16.msra.mxu0 0
    %3795 = vmatprep.subr.bf16.mxu0 0
    %3796 = vmatpush1.bf16.msra.mxu0 0
    %3797 = vmatprep.subr.bf16.mxu0 0
    %3798 = vmatpush1.bf16.msra.mxu0 0
    %3799 = vmatprep.subr.bf16.mxu0 0
    %3800 = vmatpush1.bf16.msra.mxu0 0
    %3801 = vmatprep.subr.bf16.mxu0 0
    %3802 = vmatpush1.bf16.msra.mxu0 0
    %3803 = vmatprep.subr.bf16.mxu0 0
    %3804 = vmatpush1.bf16.msra.mxu0 0
    %3805 = vmatprep.mubr.bf16.mxu0 0
    %3806 = vmatmul.mubr.bf16.gmra.mrb[0].mxu0 %v3701
    %v3807 = vpop.f32.mrb[0].mxu0
    %v3808 = vadd.f32 %v3723, %v3807
    %v3809 = vpop.f32.mrb[0].mxu0
    %v3810 = vpop.f32.mrb[0].mxu0
    %v3811 = vpop.f32.mrb[0].mxu0
    %3812 = vdwg.mxu0
    %3813 = vst [vmem:[#allocation17] sm:$0xff] %v3808
    // Predicated region
    $region94: #{tpu_custom_call.1} parent=1 // pred_check
      _
    $region95: #{tpu_custom_call.1} parent=1 // pred_check_branch
      %3815 = sbr.rel (0) target = $region97
    $region96: #{tpu_custom_call.1} parent=1 // pred_region
      %s3817 = ssub.s32 128, 128
      %3818 = vsyncadd [#allocation5], %s3817
      %s3820 = sshll.u32 [#allocation17], 4
      %s3821 = int_to_ptr.vmem [resolvable:$true] %s3820
      %3823 = dma.vmem_to_hbm [thread:$0]  %s3821, 128, %s15, [#allocation5]
    $region97: #{tpu_custom_call.1} parent=1 // pred_fallthru
      _
    // Predicated region
    $region98: #{tpu_custom_call.1} parent=1 // pred_check
      _
    $region99: #{tpu_custom_call.1} parent=1 // pred_check_branch
      %3825 = sbr.rel (0) target = $region101
    $region100: #{tpu_custom_call.1} parent=1 // pred_region
      %3826 = dma.done [#allocation5], 128
    $region101: #{tpu_custom_call.1} parent=1 // pred_fallthru
      _
    %3827 = vsyncpa [#allocation4], 1
    %3828 = vsyncpa [#allocation7], 1
    %3829 = vsyncpa [#allocation10], 1
    %3830 = vsyncpa [#allocation13], 1
    %3831 = vsyncpa [#allocation16], 1
    %3832 = vsyncpa [#allocation5], 1

</llo_original>
